<compile_context>
chip_gen: v7x
topology: tpu7x:2x2x1
jax: 0.10.0
libtpu: 0.0.40
codegen_flags: <defaults>
</compile_context>

<pallas_src>
import functools

import jax
import jax.numpy as jnp
from jax import lax
from jax.experimental import pallas as pl
from jax.experimental.pallas import tpu as pltpu


def _round_up(x, m):
    return (x + m - 1) // m * m


# --------------------------------------------------------------------------
# LinearTrans:  y = x @ W + b    (row-tiled, lane-dense padded output)
# --------------------------------------------------------------------------
def _linear_kernel(x_ref, w_ref, b_ref, o_ref):
    o_ref[...] = (
        jnp.dot(x_ref[...], w_ref[...], preferred_element_type=jnp.float32)
        + b_ref[...]
    )


def linear_trans_forward(x, w, b):
    # x: [B, S, Din], w: [Din, Dout], b: [Dout]
    B, S, Din = x.shape
    Dout = w.shape[1]
    M = B * S

    # lane-dense output: pad Dout to a multiple of 128 with zero weight/bias
    # columns; sliced back off in the wrapper.
    Doutp = _round_up(Dout, 128)
    if Doutp != Dout:
        w = jnp.pad(w, ((0, 0), (0, Doutp - Dout)))
        b = jnp.pad(b, ((0, Doutp - Dout),))
    b2 = b.reshape(1, Doutp)

    # row tiling so DMA and MXU pipeline; 1024 rows per tile (HBM-bound op).
    tile_m = min(1024, _round_up(M, 8))
    Mp = _round_up(M, tile_m)
    x2 = x.reshape(M, Din)
    if Mp != M:
        x2 = jnp.pad(x2, ((0, Mp - M), (0, 0)))

    out2 = pl.pallas_call(
        _linear_kernel,
        out_shape=jax.ShapeDtypeStruct((Mp, Doutp), jnp.float32),
        grid_spec=pl.GridSpec(
            grid=(Mp // tile_m,),
            in_specs=[
                pl.BlockSpec((tile_m, Din), lambda i: (i, 0)),
                pl.BlockSpec((Din, Doutp), lambda i: (0, 0)),
                pl.BlockSpec((1, Doutp), lambda i: (0, 0)),
            ],
            out_specs=pl.BlockSpec((tile_m, Doutp), lambda i: (i, 0)),
        ),
        compiler_params=pltpu.CompilerParams(dimension_semantics=("parallel",)),
    )(x2, w, b2)
    return out2[:M, :Dout].reshape(B, S, Dout)


# --------------------------------------------------------------------------
# CTCModule:  2-layer LSTM + softmax + bmm, batched inside the kernel
# --------------------------------------------------------------------------
def _pick_batch_tile(B):
    """Batch rows processed per grid step.

    Large enough to feed the MXU row dimension, but capped so the batch still
    splits into >= 2 grid steps (second v7x TensorCore gets work) whenever the
    batch allows it.  Restricted to powers of two so the strided prob reads
    in the epilogue use a power-of-two sublane stride.
    """
    bp8 = _round_up(B, 8)
    if bp8 <= 8:
        return 8
    for tb in (32, 16, 8):          # desired TB = 32, capped at Bp // 2
        if bp8 >= 2 * tb:
            return tb
    return 8


def _ctc_kernel(xp_ref, x_ref, wih1_ref, whh1_ref, b1_ref, w2_ref, b2_ref,
                o_ref, xin_ref, hs_ref, *, hidden, unroll):
    # Per grid step (TB batch rows), H = true hidden, G = round_up(4H, 128):
    #   xp_ref : (T, TB, S)   time-major LSTM input
    #   x_ref  : (TB, S, T)   original layout, used for the final bmm
    #   wih1   : (S, G)    whh1 : (H, G)    w2 = [wih2 ; whh2] : (2H, G)
    #   b1/b2  : (1, G)
    #   o_ref  : (TB, S, H)
    #   xin_ref: (T*TB, G)  scratch — hoisted layer-1 input projection (+ b1)
    #   hs_ref : (T*TB, H)  scratch — layer-2 hidden states, then softmax probs
    T, TB, S = xp_ref.shape
    H = hidden
    G = w2_ref.shape[1]

    # ---- hoisted layer-1 input projection: one (T*TB, S)@(S, G) matmul -----
    xp2 = xp_ref[...].reshape(T * TB, S)
    xin_ref[...] = (
        jnp.dot(xp2, wih1_ref[...], preferred_element_type=jnp.float32)
        + b1_ref[...]
    )

    whh1 = whh1_ref[...]
    w2 = w2_ref[...]
    # bias broadcast hoisted out of the (unrolled) time loop
    b2b = jnp.broadcast_to(b2_ref[...], (TB, G))

    def gates(g):
        i = jax.nn.sigmoid(g[:, 0 * H:1 * H])
        f = jax.nn.sigmoid(g[:, 1 * H:2 * H])
        gg = jnp.tanh(g[:, 2 * H:3 * H])
        o = jax.nn.sigmoid(g[:, 3 * H:4 * H])
        return i, f, gg, o

    def step(t, carry):
        h1, c1, h2, c2 = carry
        r = pl.multiple_of(t * TB, TB)

        # layer 1: only the recurrent matmul is left in the serial chain
        g1 = xin_ref[pl.ds(r, TB), :] + jnp.dot(
            h1, whh1, preferred_element_type=jnp.float32)
        i1, f1, gg1, o1 = gates(g1)
        c1 = f1 * c1 + i1 * gg1
        h1 = o1 * jnp.tanh(c1)

        # layer 2: single fused matmul  [h1 | h2] @ [wih2 ; whh2]
        hcat = jnp.concatenate([h1, h2], axis=1)          # (TB, 2H)
        g2 = jnp.dot(hcat, w2, preferred_element_type=jnp.float32) + b2b
        i2, f2, gg2, o2 = gates(g2)
        c2 = f2 * c2 + i2 * gg2
        h2 = o2 * jnp.tanh(c2)

        hs_ref[pl.ds(r, TB), :] = h2                      # dense (TB, H) store
        return h1, c1, h2, c2

    z = jnp.zeros((TB, H), jnp.float32)
    lax.fori_loop(0, T, step, (z, z, z, z), unroll=unroll)

    # ---- softmax over hidden dim (width is exactly H: no masking needed;
    #      exact reciprocal, runs once per grid step) ------------------------
    hs = hs_ref[...]                                      # (T*TB, H)
    m = jnp.max(hs, axis=-1, keepdims=True)
    e = jnp.exp(hs - m)
    hs_ref[...] = e / jnp.sum(e, axis=-1, keepdims=True)

    # ---- pseudo alignment:  out[b] = x[b] (S, T) @ prob[b] (T, H) -----------
    # batch b's probs live on every TB-th sublane of hs_ref -> strided load,
    # no cross-sublane gather of a register value.
    for b in range(TB):                                   # static unroll
        prob_b = hs_ref[pl.ds(b, T, stride=TB), :]
        o_ref[b] = jnp.dot(x_ref[b], prob_b,
                           preferred_element_type=jnp.float32)


def ctc_forward(x, params):
    # x: [B, S, T]  with S = seq_len (LSTM input_size), T = in_dim (time steps)
    B, S, T = x.shape
    H = params['whh1'].shape[0]
    # pad the TOTAL gate width (4H) up to the next lane group, not each gate.
    G = _round_up(4 * H, 128)

    def pad_g(w):
        return w if G == 4 * H else jnp.pad(w, ((0, 0), (0, G - 4 * H)))

    wih1 = pad_g(params['wih1'])                                   # (S, G)
    whh1 = pad_g(params['whh1'])                                   # (H, G)
    # fused layer-2 weight: one matmul per step instead of two
    w2 = pad_g(jnp.concatenate([params['wih2'], params['whh2']], axis=0))  # (2H, G)
    b1 = pad_g(params['b1'])                                       # (1, G)
    b2 = pad_g(params['b2'])                                       # (1, G)

    TB = _pick_batch_tile(B)
    Bp = _round_up(B, TB)
    if Bp != B:
        x = jnp.pad(x, ((0, Bp - B), (0, 0), (0, 0)))
    xp = jnp.transpose(x, (2, 0, 1))                               # (T, Bp, S)

    # cap the unroll when the batch tile is large to limit vreg live ranges
    unroll = 2 if TB >= 32 else (True if T <= 16 else 4)

    # VMEM budget (v7x has only 64 MiB physical / 32 MiB scoped default).
    est_vmem = 4 * (
        2 * T * TB * S            # xp blocks (double-buffered)
        + 2 * TB * S * T          # x blocks
        + 2 * TB * S * H          # out blocks
        + 2 * (S * G + H * G + 2 * H * G + 2 * G)   # weight / bias blocks
        + T * TB * G + T * TB * H                   # scratch
    )
    vmem_limit = None
    if est_vmem > 30 * (1 << 20):
        # TODO(synk): for very large in_dim (T), chunk the hoisted projection
        # with pltpu.emit_pipeline instead of raising the limit.
        vmem_limit = min(int(est_vmem * 1.25), 100 * (1 << 20))

    kernel = functools.partial(_ctc_kernel, hidden=H, unroll=unroll)
    out = pl.pallas_call(
        kernel,
        out_shape=jax.ShapeDtypeStruct((Bp, S, H), jnp.float32),
        grid_spec=pltpu.PrefetchScalarGridSpec(
            num_scalar_prefetch=0,
            grid=(Bp // TB,),
            in_specs=[
                pl.BlockSpec((T, TB, S), lambda g: (0, g, 0)),
                pl.BlockSpec((TB, S, T), lambda g: (g, 0, 0)),
                pl.BlockSpec((S, G), lambda g: (0, 0)),
                pl.BlockSpec((H, G), lambda g: (0, 0)),
                pl.BlockSpec((1, G), lambda g: (0, 0)),
                pl.BlockSpec((2 * H, G), lambda g: (0, 0)),
                pl.BlockSpec((1, G), lambda g: (0, 0)),
            ],
            out_specs=pl.BlockSpec((TB, S, H), lambda g: (g, 0, 0)),
            scratch_shapes=[
                pltpu.VMEM((T * TB, G), jnp.float32),   # hoisted x-projection
                pltpu.VMEM((T * TB, H), jnp.float32),   # layer-2 h states / probs
            ],
        ),
        compiler_params=pltpu.CompilerParams(
            dimension_semantics=("parallel",),          # megacore over batch chunks
            vmem_limit_bytes=vmem_limit),
    )(xp, x, wih1, whh1, b1, w2, b2)
    return out[:B]


# --------------------------------------------------------------------------
# Generator wrapper (parameter construction = glue, deterministic init)
# --------------------------------------------------------------------------
class Generator:
    def __init__(self, args, modality='text', key=None):
        self.module = args.generatorModule
        key = jax.random.PRNGKey(0) if key is None else key
        idx = {'text': 0, 'audio': 1, 'vision': 2}[modality]
        s = 0.1
        if self.module == 'ctc':
            out_dim, seq_len = args.feature_dims[idx], args.seq_lens[idx]
            H = out_dim
            k = jax.random.split(key, 6)
            self.params = dict(
                wih1=s * jax.random.normal(k[0], (seq_len, 4 * H), jnp.float32),
                whh1=s * jax.random.normal(k[1], (H, 4 * H), jnp.float32),
                b1=s * jax.random.normal(k[2], (1, 4 * H), jnp.float32),
                wih2=s * jax.random.normal(k[3], (H, 4 * H), jnp.float32),
                whh2=s * jax.random.normal(k[4], (H, 4 * H), jnp.float32),
                b2=s * jax.random.normal(k[5], (1, 4 * H), jnp.float32),
            )
        elif self.module == 'linear':
            in_dim = args.dst_feature_dim_nheads[0] * 3
            out_dim = args.feature_dims[idx]
            k = jax.random.split(key, 2)
            self.params = dict(
                w=s * jax.random.normal(k[0], (in_dim, out_dim), jnp.float32),
                b=s * jax.random.normal(k[1], (out_dim,), jnp.float32),
            )
        else:
            raise ValueError(self.module)

    def __call__(self, x):
        if self.module == 'ctc':
            return ctc_forward(x, self.params)
        return linear_trans_forward(x, self.params['w'], self.params['b'])


# --------------------------------------------------------------------------
# Pure-JAX references for validation
# --------------------------------------------------------------------------
def ctc_reference(x, p):
    B, S, T = x.shape
    H = p['whh1'].shape[0]
    xp = jnp.transpose(x, (0, 2, 1))      # [B, T, S]

    def cell(xt, h, c, wih, whh, b):
        g = xt @ wih + h @ whh + b
        i = jax.nn.sigmoid(g[:, :H]); f = jax.nn.sigmoid(g[:, H:2 * H])
        gg = jnp.tanh(g[:, 2 * H:3 * H]); o = jax.nn.sigmoid(g[:, 3 * H:])
        c = f * c + i * gg
        h = o * jnp.tanh(c)
        return h, c

    def step(carry, xt):
        h1, c1, h2, c2 = carry
        h1, c1 = cell(xt, h1, c1, p['wih1'], p['whh1'], p['b1'])
        h2, c2 = cell(h1, h2, c2, p['wih2'], p['whh2'], p['b2'])
        return (h1, c1, h2, c2), h2

    z = jnp.zeros((B, H), jnp.float32)
    _, hs = lax.scan(step, (z, z, z, z), jnp.transpose(xp, (1, 0, 2)))
    hs = jnp.transpose(hs, (1, 0, 2))     # [B, T, H]
    prob = jax.nn.softmax(hs, axis=2)
    return jnp.einsum('bst,bth->bsh', x, prob)


if __name__ == "__main__":
    from types import SimpleNamespace

    feature_dims = (32, 16, 24)
    seq_lens = (8, 10, 12)
    dst_feature_dim_nheads = (16, 8)
    base_key = jax.random.PRNGKey(0)
    k_ctc_p, k_ctc_x, k_ctc2_p, k_ctc2_x, k_lin_p, k_lin_x = \
        jax.random.split(base_key, 6)

    args = SimpleNamespace(generatorModule='ctc', feature_dims=feature_dims,
                           seq_lens=seq_lens,
                           dst_feature_dim_nheads=dst_feature_dim_nheads)

    # --- CTC generator path (text: H=32, exact lane-group gate width) -------
    gen_ctc = Generator(args, modality='text', key=k_ctc_p)
    B, in_dim = 2, 16
    x_ctc = jax.random.normal(k_ctc_x, (B, seq_lens[0], in_dim), jnp.float32)
    out_ctc = jax.block_until_ready(gen_ctc(x_ctc))
    ref_ctc = ctc_reference(x_ctc, gen_ctc.params)
    assert out_ctc.shape == (B, seq_lens[0], feature_dims[0])
    assert jnp.allclose(out_ctc, ref_ctc, atol=1e-2, rtol=1e-2), \
        float(jnp.max(jnp.abs(out_ctc - ref_ctc)))

    # --- CTC generator path (audio: H=16, padded gate width + batch pad) ----
    gen_ctc2 = Generator(args, modality='audio', key=k_ctc2_p)
    B2, in_dim2 = 3, 12
    x_ctc2 = jax.random.normal(k_ctc2_x, (B2, seq_lens[1], in_dim2), jnp.float32)
    out_ctc2 = jax.block_until_ready(gen_ctc2(x_ctc2))
    ref_ctc2 = ctc_reference(x_ctc2, gen_ctc2.params)
    assert out_ctc2.shape == (B2, seq_lens[1], feature_dims[1])
    assert jnp.allclose(out_ctc2, ref_ctc2, atol=1e-2, rtol=1e-2), \
        float(jnp.max(jnp.abs(out_ctc2 - ref_ctc2)))

    # --- Linear generator path -----------------------------------------------
    args_lin = SimpleNamespace(generatorModule='linear', feature_dims=feature_dims,
                               seq_lens=seq_lens,
                               dst_feature_dim_nheads=dst_feature_dim_nheads)
    gen_lin = Generator(args_lin, modality='text', key=k_lin_p)
    x_lin = jax.random.normal(k_lin_x,
                              (B, seq_lens[0], dst_feature_dim_nheads[0] * 3),
                              jnp.float32)
    out_lin = jax.block_until_ready(gen_lin(x_lin))
    ref_lin = x_lin @ gen_lin.params['w'] + gen_lin.params['b']
    assert out_lin.shape == (B, seq_lens[0], feature_dims[0])
    assert jnp.allclose(out_lin, ref_lin, atol=1e-2, rtol=1e-2), \
        float(jnp.max(jnp.abs(out_lin - ref_lin)))

    print("KERNEL_OK")
</pallas_src>

<mosaic_0001>
module attributes {stable_mosaic.version = 11 : i64} {
  func.func @_ctc_kernel(%arg0: i32, %arg1: memref<16x8x8xf32, #tpu.memory_space<vmem>>, %arg2: memref<8x8x16xf32, #tpu.memory_space<vmem>>, %arg3: memref<8x128xf32, #tpu.memory_space<vmem>>, %arg4: memref<32x128xf32, #tpu.memory_space<vmem>>, %arg5: memref<1x128xf32, #tpu.memory_space<vmem>>, %arg6: memref<64x128xf32, #tpu.memory_space<vmem>>, %arg7: memref<1x128xf32, #tpu.memory_space<vmem>>, %arg8: memref<8x8x32xf32, #tpu.memory_space<vmem>>, %arg9: memref<128x128xf32, #tpu.memory_space<vmem>>, %arg10: memref<128x32xf32, #tpu.memory_space<vmem>>) attributes {dimension_semantics = [#tpu.dimension_semantics<parallel>], iteration_bounds = array<i64: 1>, scalar_prefetch = 0 : i64, scratch_operands = 2 : i64, tpu.core_type = #tpu.core_type<tc>, window_params = [{transform_indices = @transform_0, window_bounds = array<i64: 16, 8, 8>}, {transform_indices = @transform_1, window_bounds = array<i64: 8, 8, 16>}, {pipeline_mode = #tpu.pipeline_mode<synchronous>, transform_indices = @transform_2, window_bounds = array<i64: 8, 128>}, {pipeline_mode = #tpu.pipeline_mode<synchronous>, transform_indices = @transform_3, window_bounds = array<i64: 32, 128>}, {pipeline_mode = #tpu.pipeline_mode<synchronous>, transform_indices = @transform_4, window_bounds = array<i64: 1, 128>}, {pipeline_mode = #tpu.pipeline_mode<synchronous>, transform_indices = @transform_5, window_bounds = array<i64: 64, 128>}, {pipeline_mode = #tpu.pipeline_mode<synchronous>, transform_indices = @transform_6, window_bounds = array<i64: 1, 128>}, {transform_indices = @transform_7, window_bounds = array<i64: 8, 8, 32>}]} {
    %c0 = arith.constant 0 : index
    %c0_0 = arith.constant 0 : index
    %c0_1 = arith.constant 0 : index
    %0 = vector.load %arg1[%c0, %c0_0, %c0_1] : memref<16x8x8xf32, #tpu.memory_space<vmem>>, vector<16x8x8xf32>
    %1 = vector.shape_cast %0 : vector<16x8x8xf32> to vector<128x8xf32>
    %c0_2 = arith.constant 0 : index
    %c0_3 = arith.constant 0 : index
    %2 = vector.load %arg3[%c0_2, %c0_3] : memref<8x128xf32, #tpu.memory_space<vmem>>, vector<8x128xf32>
    %cst = arith.constant dense<0.000000e+00> : vector<128x128xf32>
    %3 = tpu.matmul %1, %2, %cst {dimension_numbers = #tpu.dot_dimension_numbers<[1], [0], [0], [1], [0, 0, 1, 1], [], []>} : vector<128x8xf32>, vector<8x128xf32>, vector<128x128xf32> -> vector<128x128xf32>
    %c0_4 = arith.constant 0 : index
    %c0_5 = arith.constant 0 : index
    %4 = vector.load %arg5[%c0_4, %c0_5] : memref<1x128xf32, #tpu.memory_space<vmem>>, vector<1x128xf32>
    %5 = vector.broadcast %4 : vector<1x128xf32> to vector<128x128xf32>
    %6 = arith.addf %3, %5 : vector<128x128xf32>
    %c0_6 = arith.constant 0 : index
    %c0_7 = arith.constant 0 : index
    %7 = vector.load %arg9[%c0_6, %c0_7] : memref<128x128xf32, #tpu.memory_space<vmem>>, vector<128x128xf32>
    tpu.vector_store %arg9[%c0_6, %c0_7], %6 {strides = array<i32>} : memref<128x128xf32, #tpu.memory_space<vmem>>, vector<128x128xf32>,
    %c0_8 = arith.constant 0 : index
    %c0_9 = arith.constant 0 : index
    %8 = vector.load %arg4[%c0_8, %c0_9] : memref<32x128xf32, #tpu.memory_space<vmem>>, vector<32x128xf32>
    %c0_10 = arith.constant 0 : index
    %c0_11 = arith.constant 0 : index
    %9 = vector.load %arg6[%c0_10, %c0_11] : memref<64x128xf32, #tpu.memory_space<vmem>>, vector<64x128xf32>
    %c0_12 = arith.constant 0 : index
    %c0_13 = arith.constant 0 : index
    %10 = vector.load %arg7[%c0_12, %c0_13] : memref<1x128xf32, #tpu.memory_space<vmem>>, vector<1x128xf32>
    %11 = vector.shape_cast %10 : vector<1x128xf32> to vector<1x128xf32>
    %12 = vector.broadcast %11 : vector<1x128xf32> to vector<8x128xf32>
    %cst_14 = arith.constant 0.000000e+00 : f32
    %13 = vector.broadcast %cst_14 : f32 to vector<8x32xf32>
    %c0_i32 = arith.constant 0 : i32
    %c8_i32 = arith.constant 8 : i32
    %14 = arith.muli %c0_i32, %c8_i32 : i32
    %15 = tpu.assume_multiple %14, 8 : i32
    %16 = arith.index_cast %15 : i32 to index
    %c0_15 = arith.constant 0 : index
    %17 = vector.load %arg9[%16, %c0_15] : memref<128x128xf32, #tpu.memory_space<vmem>>, vector<8x128xf32>
    %cst_16 = arith.constant dense<0.000000e+00> : vector<8x128xf32>
    %18 = tpu.matmul %13, %8, %cst_16 {dimension_numbers = #tpu.dot_dimension_numbers<[1], [0], [0], [1], [0, 0, 1, 1], [], []>} : vector<8x32xf32>, vector<32x128xf32>, vector<8x128xf32> -> vector<8x128xf32>
    %19 = arith.addf %17, %18 : vector<8x128xf32>
    %20 = vector.extract_strided_slice %19 {offsets = [0, 0], sizes = [8, 32], strides = [1, 1]} : vector<8x128xf32> to vector<8x32xf32>
    %21 = arith.negf %20 : vector<8x32xf32>
    %22 = math.exp %21 : vector<8x32xf32>
    %cst_17 = arith.constant 1.000000e+00 : f32
    %23 = vector.broadcast %cst_17 : f32 to vector<8x32xf32>
    %24 = arith.addf %23, %22 : vector<8x32xf32>
    %25 = arith.divf %23, %24 : vector<8x32xf32>
    %26 = vector.extract_strided_slice %19 {offsets = [0, 32], sizes = [8, 32], strides = [1, 1]} : vector<8x128xf32> to vector<8x32xf32>
    %27 = arith.negf %26 : vector<8x32xf32>
    %28 = math.exp %27 : vector<8x32xf32>
    %cst_18 = arith.constant 1.000000e+00 : f32
    %29 = vector.broadcast %cst_18 : f32 to vector<8x32xf32>
    %30 = arith.addf %29, %28 : vector<8x32xf32>
    %31 = arith.divf %29, %30 : vector<8x32xf32>
    %32 = vector.extract_strided_slice %19 {offsets = [0, 64], sizes = [8, 32], strides = [1, 1]} : vector<8x128xf32> to vector<8x32xf32>
    %33 = math.tanh %32 : vector<8x32xf32>
    %34 = vector.extract_strided_slice %19 {offsets = [0, 96], sizes = [8, 32], strides = [1, 1]} : vector<8x128xf32> to vector<8x32xf32>
    %35 = arith.negf %34 : vector<8x32xf32>
    %36 = math.exp %35 : vector<8x32xf32>
    %cst_19 = arith.constant 1.000000e+00 : f32
    %37 = vector.broadcast %cst_19 : f32 to vector<8x32xf32>
    %38 = arith.addf %37, %36 : vector<8x32xf32>
    %39 = arith.divf %37, %38 : vector<8x32xf32>
    %40 = arith.mulf %31, %13 : vector<8x32xf32>
    %41 = arith.mulf %25, %33 : vector<8x32xf32>
    %42 = arith.addf %40, %41 : vector<8x32xf32>
    %43 = math.tanh %42 : vector<8x32xf32>
    %44 = arith.mulf %39, %43 : vector<8x32xf32>
    %45 = tpu.concatenate %44, %13 in 1 : vector<8x32xf32>, vector<8x32xf32> -> vector<8x64xf32>
    %cst_20 = arith.constant dense<0.000000e+00> : vector<8x128xf32>
    %46 = tpu.matmul %45, %9, %cst_20 {dimension_numbers = #tpu.dot_dimension_numbers<[1], [0], [0], [1], [0, 0, 1, 1], [], []>} : vector<8x64xf32>, vector<64x128xf32>, vector<8x128xf32> -> vector<8x128xf32>
    %47 = arith.addf %46, %12 : vector<8x128xf32>
    %48 = vector.extract_strided_slice %47 {offsets = [0, 0], sizes = [8, 32], strides = [1, 1]} : vector<8x128xf32> to vector<8x32xf32>
    %49 = arith.negf %48 : vector<8x32xf32>
    %50 = math.exp %49 : vector<8x32xf32>
    %cst_21 = arith.constant 1.000000e+00 : f32
    %51 = vector.broadcast %cst_21 : f32 to vector<8x32xf32>
    %52 = arith.addf %51, %50 : vector<8x32xf32>
    %53 = arith.divf %51, %52 : vector<8x32xf32>
    %54 = vector.extract_strided_slice %47 {offsets = [0, 32], sizes = [8, 32], strides = [1, 1]} : vector<8x128xf32> to vector<8x32xf32>
    %55 = arith.negf %54 : vector<8x32xf32>
    %56 = math.exp %55 : vector<8x32xf32>
    %cst_22 = arith.constant 1.000000e+00 : f32
    %57 = vector.broadcast %cst_22 : f32 to vector<8x32xf32>
    %58 = arith.addf %57, %56 : vector<8x32xf32>
    %59 = arith.divf %57, %58 : vector<8x32xf32>
    %60 = vector.extract_strided_slice %47 {offsets = [0, 64], sizes = [8, 32], strides = [1, 1]} : vector<8x128xf32> to vector<8x32xf32>
    %61 = math.tanh %60 : vector<8x32xf32>
    %62 = vector.extract_strided_slice %47 {offsets = [0, 96], sizes = [8, 32], strides = [1, 1]} : vector<8x128xf32> to vector<8x32xf32>
    %63 = arith.negf %62 : vector<8x32xf32>
    %64 = math.exp %63 : vector<8x32xf32>
    %cst_23 = arith.constant 1.000000e+00 : f32
    %65 = vector.broadcast %cst_23 : f32 to vector<8x32xf32>
    %66 = arith.addf %65, %64 : vector<8x32xf32>
    %67 = arith.divf %65, %66 : vector<8x32xf32>
    %68 = arith.mulf %59, %13 : vector<8x32xf32>
    %69 = arith.mulf %53, %61 : vector<8x32xf32>
    %70 = arith.addf %68, %69 : vector<8x32xf32>
    %71 = math.tanh %70 : vector<8x32xf32>
    %72 = arith.mulf %67, %71 : vector<8x32xf32>
    %73 = arith.index_cast %15 : i32 to index
    %c0_24 = arith.constant 0 : index
    %74 = vector.load %arg10[%73, %c0_24] : memref<128x32xf32, #tpu.memory_space<vmem>>, vector<8x32xf32>
    tpu.vector_store %arg10[%73, %c0_24], %72 {strides = array<i32>} : memref<128x32xf32, #tpu.memory_space<vmem>>, vector<8x32xf32>,
    %c1_i32 = arith.constant 1 : i32
    %c8_i32_25 = arith.constant 8 : i32
    %75 = arith.muli %c1_i32, %c8_i32_25 : i32
    %76 = tpu.assume_multiple %75, 8 : i32
    %77 = arith.index_cast %76 : i32 to index
    %c0_26 = arith.constant 0 : index
    %78 = vector.load %arg9[%77, %c0_26] : memref<128x128xf32, #tpu.memory_space<vmem>>, vector<8x128xf32>
    %cst_27 = arith.constant dense<0.000000e+00> : vector<8x128xf32>
    %79 = tpu.matmul %44, %8, %cst_27 {dimension_numbers = #tpu.dot_dimension_numbers<[1], [0], [0], [1], [0, 0, 1, 1], [], []>} : vector<8x32xf32>, vector<32x128xf32>, vector<8x128xf32> -> vector<8x128xf32>
    %80 = arith.addf %78, %79 : vector<8x128xf32>
    %81 = vector.extract_strided_slice %80 {offsets = [0, 0], sizes = [8, 32], strides = [1, 1]} : vector<8x128xf32> to vector<8x32xf32>
    %82 = arith.negf %81 : vector<8x32xf32>
    %83 = math.exp %82 : vector<8x32xf32>
    %cst_28 = arith.constant 1.000000e+00 : f32
    %84 = vector.broadcast %cst_28 : f32 to vector<8x32xf32>
    %85 = arith.addf %84, %83 : vector<8x32xf32>
    %86 = arith.divf %84, %85 : vector<8x32xf32>
    %87 = vector.extract_strided_slice %80 {offsets = [0, 32], sizes = [8, 32], strides = [1, 1]} : vector<8x128xf32> to vector<8x32xf32>
    %88 = arith.negf %87 : vector<8x32xf32>
    %89 = math.exp %88 : vector<8x32xf32>
    %cst_29 = arith.constant 1.000000e+00 : f32
    %90 = vector.broadcast %cst_29 : f32 to vector<8x32xf32>
    %91 = arith.addf %90, %89 : vector<8x32xf32>
    %92 = arith.divf %90, %91 : vector<8x32xf32>
    %93 = vector.extract_strided_slice %80 {offsets = [0, 64], sizes = [8, 32], strides = [1, 1]} : vector<8x128xf32> to vector<8x32xf32>
    %94 = math.tanh %93 : vector<8x32xf32>
    %95 = vector.extract_strided_slice %80 {offsets = [0, 96], sizes = [8, 32], strides = [1, 1]} : vector<8x128xf32> to vector<8x32xf32>
    %96 = arith.negf %95 : vector<8x32xf32>
    %97 = math.exp %96 : vector<8x32xf32>
    %cst_30 = arith.constant 1.000000e+00 : f32
    %98 = vector.broadcast %cst_30 : f32 to vector<8x32xf32>
    %99 = arith.addf %98, %97 : vector<8x32xf32>
    %100 = arith.divf %98, %99 : vector<8x32xf32>
    %101 = arith.mulf %92, %42 : vector<8x32xf32>
    %102 = arith.mulf %86, %94 : vector<8x32xf32>
    %103 = arith.addf %101, %102 : vector<8x32xf32>
    %104 = math.tanh %103 : vector<8x32xf32>
    %105 = arith.mulf %100, %104 : vector<8x32xf32>
    %106 = tpu.concatenate %105, %72 in 1 : vector<8x32xf32>, vector<8x32xf32> -> vector<8x64xf32>
    %cst_31 = arith.constant dense<0.000000e+00> : vector<8x128xf32>
    %107 = tpu.matmul %106, %9, %cst_31 {dimension_numbers = #tpu.dot_dimension_numbers<[1], [0], [0], [1], [0, 0, 1, 1], [], []>} : vector<8x64xf32>, vector<64x128xf32>, vector<8x128xf32> -> vector<8x128xf32>
    %108 = arith.addf %107, %12 : vector<8x128xf32>
    %109 = vector.extract_strided_slice %108 {offsets = [0, 0], sizes = [8, 32], strides = [1, 1]} : vector<8x128xf32> to vector<8x32xf32>
    %110 = arith.negf %109 : vector<8x32xf32>
    %111 = math.exp %110 : vector<8x32xf32>
    %cst_32 = arith.constant 1.000000e+00 : f32
    %112 = vector.broadcast %cst_32 : f32 to vector<8x32xf32>
    %113 = arith.addf %112, %111 : vector<8x32xf32>
    %114 = arith.divf %112, %113 : vector<8x32xf32>
    %115 = vector.extract_strided_slice %108 {offsets = [0, 32], sizes = [8, 32], strides = [1, 1]} : vector<8x128xf32> to vector<8x32xf32>
    %116 = arith.negf %115 : vector<8x32xf32>
    %117 = math.exp %116 : vector<8x32xf32>
    %cst_33 = arith.constant 1.000000e+00 : f32
    %118 = vector.broadcast %cst_33 : f32 to vector<8x32xf32>
    %119 = arith.addf %118, %117 : vector<8x32xf32>
    %120 = arith.divf %118, %119 : vector<8x32xf32>
    %121 = vector.extract_strided_slice %108 {offsets = [0, 64], sizes = [8, 32], strides = [1, 1]} : vector<8x128xf32> to vector<8x32xf32>
    %122 = math.tanh %121 : vector<8x32xf32>
    %123 = vector.extract_strided_slice %108 {offsets = [0, 96], sizes = [8, 32], strides = [1, 1]} : vector<8x128xf32> to vector<8x32xf32>
    %124 = arith.negf %123 : vector<8x32xf32>
    %125 = math.exp %124 : vector<8x32xf32>
    %cst_34 = arith.constant 1.000000e+00 : f32
    %126 = vector.broadcast %cst_34 : f32 to vector<8x32xf32>
    %127 = arith.addf %126, %125 : vector<8x32xf32>
    %128 = arith.divf %126, %127 : vector<8x32xf32>
    %129 = arith.mulf %120, %70 : vector<8x32xf32>
    %130 = arith.mulf %114, %122 : vector<8x32xf32>
    %131 = arith.addf %129, %130 : vector<8x32xf32>
    %132 = math.tanh %131 : vector<8x32xf32>
    %133 = arith.mulf %128, %132 : vector<8x32xf32>
    %134 = arith.index_cast %76 : i32 to index
    %c0_35 = arith.constant 0 : index
    %135 = vector.load %arg10[%134, %c0_35] : memref<128x32xf32, #tpu.memory_space<vmem>>, vector<8x32xf32>
    tpu.vector_store %arg10[%134, %c0_35], %133 {strides = array<i32>} : memref<128x32xf32, #tpu.memory_space<vmem>>, vector<8x32xf32>,
    %c2_i32 = arith.constant 2 : i32
    %c8_i32_36 = arith.constant 8 : i32
    %136 = arith.muli %c2_i32, %c8_i32_36 : i32
    %137 = tpu.assume_multiple %136, 8 : i32
    %138 = arith.index_cast %137 : i32 to index
    %c0_37 = arith.constant 0 : index
    %139 = vector.load %arg9[%138, %c0_37] : memref<128x128xf32, #tpu.memory_space<vmem>>, vector<8x128xf32>
    %cst_38 = arith.constant dense<0.000000e+00> : vector<8x128xf32>
    %140 = tpu.matmul %105, %8, %cst_38 {dimension_numbers = #tpu.dot_dimension_numbers<[1], [0], [0], [1], [0, 0, 1, 1], [], []>} : vector<8x32xf32>, vector<32x128xf32>, vector<8x128xf32> -> vector<8x128xf32>
    %141 = arith.addf %139, %140 : vector<8x128xf32>
    %142 = vector.extract_strided_slice %141 {offsets = [0, 0], sizes = [8, 32], strides = [1, 1]} : vector<8x128xf32> to vector<8x32xf32>
    %143 = arith.negf %142 : vector<8x32xf32>
    %144 = math.exp %143 : vector<8x32xf32>
    %cst_39 = arith.constant 1.000000e+00 : f32
    %145 = vector.broadcast %cst_39 : f32 to vector<8x32xf32>
    %146 = arith.addf %145, %144 : vector<8x32xf32>
    %147 = arith.divf %145, %146 : vector<8x32xf32>
    %148 = vector.extract_strided_slice %141 {offsets = [0, 32], sizes = [8, 32], strides = [1, 1]} : vector<8x128xf32> to vector<8x32xf32>
    %149 = arith.negf %148 : vector<8x32xf32>
    %150 = math.exp %149 : vector<8x32xf32>
    %cst_40 = arith.constant 1.000000e+00 : f32
    %151 = vector.broadcast %cst_40 : f32 to vector<8x32xf32>
    %152 = arith.addf %151, %150 : vector<8x32xf32>
    %153 = arith.divf %151, %152 : vector<8x32xf32>
    %154 = vector.extract_strided_slice %141 {offsets = [0, 64], sizes = [8, 32], strides = [1, 1]} : vector<8x128xf32> to vector<8x32xf32>
    %155 = math.tanh %154 : vector<8x32xf32>
    %156 = vector.extract_strided_slice %141 {offsets = [0, 96], sizes = [8, 32], strides = [1, 1]} : vector<8x128xf32> to vector<8x32xf32>
    %157 = arith.negf %156 : vector<8x32xf32>
    %158 = math.exp %157 : vector<8x32xf32>
    %cst_41 = arith.constant 1.000000e+00 : f32
    %159 = vector.broadcast %cst_41 : f32 to vector<8x32xf32>
    %160 = arith.addf %159, %158 : vector<8x32xf32>
    %161 = arith.divf %159, %160 : vector<8x32xf32>
    %162 = arith.mulf %153, %103 : vector<8x32xf32>
    %163 = arith.mulf %147, %155 : vector<8x32xf32>
    %164 = arith.addf %162, %163 : vector<8x32xf32>
    %165 = math.tanh %164 : vector<8x32xf32>
    %166 = arith.mulf %161, %165 : vector<8x32xf32>
    %167 = tpu.concatenate %166, %133 in 1 : vector<8x32xf32>, vector<8x32xf32> -> vector<8x64xf32>
    %cst_42 = arith.constant dense<0.000000e+00> : vector<8x128xf32>
    %168 = tpu.matmul %167, %9, %cst_42 {dimension_numbers = #tpu.dot_dimension_numbers<[1], [0], [0], [1], [0, 0, 1, 1], [], []>} : vector<8x64xf32>, vector<64x128xf32>, vector<8x128xf32> -> vector<8x128xf32>
    %169 = arith.addf %168, %12 : vector<8x128xf32>
    %170 = vector.extract_strided_slice %169 {offsets = [0, 0], sizes = [8, 32], strides = [1, 1]} : vector<8x128xf32> to vector<8x32xf32>
    %171 = arith.negf %170 : vector<8x32xf32>
    %172 = math.exp %171 : vector<8x32xf32>
    %cst_43 = arith.constant 1.000000e+00 : f32
    %173 = vector.broadcast %cst_43 : f32 to vector<8x32xf32>
    %174 = arith.addf %173, %172 : vector<8x32xf32>
    %175 = arith.divf %173, %174 : vector<8x32xf32>
    %176 = vector.extract_strided_slice %169 {offsets = [0, 32], sizes = [8, 32], strides = [1, 1]} : vector<8x128xf32> to vector<8x32xf32>
    %177 = arith.negf %176 : vector<8x32xf32>
    %178 = math.exp %177 : vector<8x32xf32>
    %cst_44 = arith.constant 1.000000e+00 : f32
    %179 = vector.broadcast %cst_44 : f32 to vector<8x32xf32>
    %180 = arith.addf %179, %178 : vector<8x32xf32>
    %181 = arith.divf %179, %180 : vector<8x32xf32>
    %182 = vector.extract_strided_slice %169 {offsets = [0, 64], sizes = [8, 32], strides = [1, 1]} : vector<8x128xf32> to vector<8x32xf32>
    %183 = math.tanh %182 : vector<8x32xf32>
    %184 = vector.extract_strided_slice %169 {offsets = [0, 96], sizes = [8, 32], strides = [1, 1]} : vector<8x128xf32> to vector<8x32xf32>
    %185 = arith.negf %184 : vector<8x32xf32>
    %186 = math.exp %185 : vector<8x32xf32>
    %cst_45 = arith.constant 1.000000e+00 : f32
    %187 = vector.broadcast %cst_45 : f32 to vector<8x32xf32>
    %188 = arith.addf %187, %186 : vector<8x32xf32>
    %189 = arith.divf %187, %188 : vector<8x32xf32>
    %190 = arith.mulf %181, %131 : vector<8x32xf32>
    %191 = arith.mulf %175, %183 : vector<8x32xf32>
    %192 = arith.addf %190, %191 : vector<8x32xf32>
    %193 = math.tanh %192 : vector<8x32xf32>
    %194 = arith.mulf %189, %193 : vector<8x32xf32>
    %195 = arith.index_cast %137 : i32 to index
    %c0_46 = arith.constant 0 : index
    %196 = vector.load %arg10[%195, %c0_46] : memref<128x32xf32, #tpu.memory_space<vmem>>, vector<8x32xf32>
    tpu.vector_store %arg10[%195, %c0_46], %194 {strides = array<i32>} : memref<128x32xf32, #tpu.memory_space<vmem>>, vector<8x32xf32>,
    %c3_i32 = arith.constant 3 : i32
    %c8_i32_47 = arith.constant 8 : i32
    %197 = arith.muli %c3_i32, %c8_i32_47 : i32
    %198 = tpu.assume_multiple %197, 8 : i32
    %199 = arith.index_cast %198 : i32 to index
    %c0_48 = arith.constant 0 : index
    %200 = vector.load %arg9[%199, %c0_48] : memref<128x128xf32, #tpu.memory_space<vmem>>, vector<8x128xf32>
    %cst_49 = arith.constant dense<0.000000e+00> : vector<8x128xf32>
    %201 = tpu.matmul %166, %8, %cst_49 {dimension_numbers = #tpu.dot_dimension_numbers<[1], [0], [0], [1], [0, 0, 1, 1], [], []>} : vector<8x32xf32>, vector<32x128xf32>, vector<8x128xf32> -> vector<8x128xf32>
    %202 = arith.addf %200, %201 : vector<8x128xf32>
    %203 = vector.extract_strided_slice %202 {offsets = [0, 0], sizes = [8, 32], strides = [1, 1]} : vector<8x128xf32> to vector<8x32xf32>
    %204 = arith.negf %203 : vector<8x32xf32>
    %205 = math.exp %204 : vector<8x32xf32>
    %cst_50 = arith.constant 1.000000e+00 : f32
    %206 = vector.broadcast %cst_50 : f32 to vector<8x32xf32>
    %207 = arith.addf %206, %205 : vector<8x32xf32>
    %208 = arith.divf %206, %207 : vector<8x32xf32>
    %209 = vector.extract_strided_slice %202 {offsets = [0, 32], sizes = [8, 32], strides = [1, 1]} : vector<8x128xf32> to vector<8x32xf32>
    %210 = arith.negf %209 : vector<8x32xf32>
    %211 = math.exp %210 : vector<8x32xf32>
    %cst_51 = arith.constant 1.000000e+00 : f32
    %212 = vector.broadcast %cst_51 : f32 to vector<8x32xf32>
    %213 = arith.addf %212, %211 : vector<8x32xf32>
    %214 = arith.divf %212, %213 : vector<8x32xf32>
    %215 = vector.extract_strided_slice %202 {offsets = [0, 64], sizes = [8, 32], strides = [1, 1]} : vector<8x128xf32> to vector<8x32xf32>
    %216 = math.tanh %215 : vector<8x32xf32>
    %217 = vector.extract_strided_slice %202 {offsets = [0, 96], sizes = [8, 32], strides = [1, 1]} : vector<8x128xf32> to vector<8x32xf32>
    %218 = arith.negf %217 : vector<8x32xf32>
    %219 = math.exp %218 : vector<8x32xf32>
    %cst_52 = arith.constant 1.000000e+00 : f32
    %220 = vector.broadcast %cst_52 : f32 to vector<8x32xf32>
    %221 = arith.addf %220, %219 : vector<8x32xf32>
    %222 = arith.divf %220, %221 : vector<8x32xf32>
    %223 = arith.mulf %214, %164 : vector<8x32xf32>
    %224 = arith.mulf %208, %216 : vector<8x32xf32>
    %225 = arith.addf %223, %224 : vector<8x32xf32>
    %226 = math.tanh %225 : vector<8x32xf32>
    %227 = arith.mulf %222, %226 : vector<8x32xf32>
    %228 = tpu.concatenate %227, %194 in 1 : vector<8x32xf32>, vector<8x32xf32> -> vector<8x64xf32>
    %cst_53 = arith.constant dense<0.000000e+00> : vector<8x128xf32>
    %229 = tpu.matmul %228, %9, %cst_53 {dimension_numbers = #tpu.dot_dimension_numbers<[1], [0], [0], [1], [0, 0, 1, 1], [], []>} : vector<8x64xf32>, vector<64x128xf32>, vector<8x128xf32> -> vector<8x128xf32>
    %230 = arith.addf %229, %12 : vector<8x128xf32>
    %231 = vector.extract_strided_slice %230 {offsets = [0, 0], sizes = [8, 32], strides = [1, 1]} : vector<8x128xf32> to vector<8x32xf32>
    %232 = arith.negf %231 : vector<8x32xf32>
    %233 = math.exp %232 : vector<8x32xf32>
    %cst_54 = arith.constant 1.000000e+00 : f32
    %234 = vector.broadcast %cst_54 : f32 to vector<8x32xf32>
    %235 = arith.addf %234, %233 : vector<8x32xf32>
    %236 = arith.divf %234, %235 : vector<8x32xf32>
    %237 = vector.extract_strided_slice %230 {offsets = [0, 32], sizes = [8, 32], strides = [1, 1]} : vector<8x128xf32> to vector<8x32xf32>
    %238 = arith.negf %237 : vector<8x32xf32>
    %239 = math.exp %238 : vector<8x32xf32>
    %cst_55 = arith.constant 1.000000e+00 : f32
    %240 = vector.broadcast %cst_55 : f32 to vector<8x32xf32>
    %241 = arith.addf %240, %239 : vector<8x32xf32>
    %242 = arith.divf %240, %241 : vector<8x32xf32>
    %243 = vector.extract_strided_slice %230 {offsets = [0, 64], sizes = [8, 32], strides = [1, 1]} : vector<8x128xf32> to vector<8x32xf32>
    %244 = math.tanh %243 : vector<8x32xf32>
    %245 = vector.extract_strided_slice %230 {offsets = [0, 96], sizes = [8, 32], strides = [1, 1]} : vector<8x128xf32> to vector<8x32xf32>
    %246 = arith.negf %245 : vector<8x32xf32>
    %247 = math.exp %246 : vector<8x32xf32>
    %cst_56 = arith.constant 1.000000e+00 : f32
    %248 = vector.broadcast %cst_56 : f32 to vector<8x32xf32>
    %249 = arith.addf %248, %247 : vector<8x32xf32>
    %250 = arith.divf %248, %249 : vector<8x32xf32>
    %251 = arith.mulf %242, %192 : vector<8x32xf32>
    %252 = arith.mulf %236, %244 : vector<8x32xf32>
    %253 = arith.addf %251, %252 : vector<8x32xf32>
    %254 = math.tanh %253 : vector<8x32xf32>
    %255 = arith.mulf %250, %254 : vector<8x32xf32>
    %256 = arith.index_cast %198 : i32 to index
    %c0_57 = arith.constant 0 : index
    %257 = vector.load %arg10[%256, %c0_57] : memref<128x32xf32, #tpu.memory_space<vmem>>, vector<8x32xf32>
    tpu.vector_store %arg10[%256, %c0_57], %255 {strides = array<i32>} : memref<128x32xf32, #tpu.memory_space<vmem>>, vector<8x32xf32>,
    %c4_i32 = arith.constant 4 : i32
    %c8_i32_58 = arith.constant 8 : i32
    %258 = arith.muli %c4_i32, %c8_i32_58 : i32
    %259 = tpu.assume_multiple %258, 8 : i32
    %260 = arith.index_cast %259 : i32 to index
    %c0_59 = arith.constant 0 : index
    %261 = vector.load %arg9[%260, %c0_59] : memref<128x128xf32, #tpu.memory_space<vmem>>, vector<8x128xf32>
    %cst_60 = arith.constant dense<0.000000e+00> : vector<8x128xf32>
    %262 = tpu.matmul %227, %8, %cst_60 {dimension_numbers = #tpu.dot_dimension_numbers<[1], [0], [0], [1], [0, 0, 1, 1], [], []>} : vector<8x32xf32>, vector<32x128xf32>, vector<8x128xf32> -> vector<8x128xf32>
    %263 = arith.addf %261, %262 : vector<8x128xf32>
    %264 = vector.extract_strided_slice %263 {offsets = [0, 0], sizes = [8, 32], strides = [1, 1]} : vector<8x128xf32> to vector<8x32xf32>
    %265 = arith.negf %264 : vector<8x32xf32>
    %266 = math.exp %265 : vector<8x32xf32>
    %cst_61 = arith.constant 1.000000e+00 : f32
    %267 = vector.broadcast %cst_61 : f32 to vector<8x32xf32>
    %268 = arith.addf %267, %266 : vector<8x32xf32>
    %269 = arith.divf %267, %268 : vector<8x32xf32>
    %270 = vector.extract_strided_slice %263 {offsets = [0, 32], sizes = [8, 32], strides = [1, 1]} : vector<8x128xf32> to vector<8x32xf32>
    %271 = arith.negf %270 : vector<8x32xf32>
    %272 = math.exp %271 : vector<8x32xf32>
    %cst_62 = arith.constant 1.000000e+00 : f32
    %273 = vector.broadcast %cst_62 : f32 to vector<8x32xf32>
    %274 = arith.addf %273, %272 : vector<8x32xf32>
    %275 = arith.divf %273, %274 : vector<8x32xf32>
    %276 = vector.extract_strided_slice %263 {offsets = [0, 64], sizes = [8, 32], strides = [1, 1]} : vector<8x128xf32> to vector<8x32xf32>
    %277 = math.tanh %276 : vector<8x32xf32>
    %278 = vector.extract_strided_slice %263 {offsets = [0, 96], sizes = [8, 32], strides = [1, 1]} : vector<8x128xf32> to vector<8x32xf32>
    %279 = arith.negf %278 : vector<8x32xf32>
    %280 = math.exp %279 : vector<8x32xf32>
    %cst_63 = arith.constant 1.000000e+00 : f32
    %281 = vector.broadcast %cst_63 : f32 to vector<8x32xf32>
    %282 = arith.addf %281, %280 : vector<8x32xf32>
    %283 = arith.divf %281, %282 : vector<8x32xf32>
    %284 = arith.mulf %275, %225 : vector<8x32xf32>
    %285 = arith.mulf %269, %277 : vector<8x32xf32>
    %286 = arith.addf %284, %285 : vector<8x32xf32>
    %287 = math.tanh %286 : vector<8x32xf32>
    %288 = arith.mulf %283, %287 : vector<8x32xf32>
    %289 = tpu.concatenate %288, %255 in 1 : vector<8x32xf32>, vector<8x32xf32> -> vector<8x64xf32>
    %cst_64 = arith.constant dense<0.000000e+00> : vector<8x128xf32>
    %290 = tpu.matmul %289, %9, %cst_64 {dimension_numbers = #tpu.dot_dimension_numbers<[1], [0], [0], [1], [0, 0, 1, 1], [], []>} : vector<8x64xf32>, vector<64x128xf32>, vector<8x128xf32> -> vector<8x128xf32>
    %291 = arith.addf %290, %12 : vector<8x128xf32>
    %292 = vector.extract_strided_slice %291 {offsets = [0, 0], sizes = [8, 32], strides = [1, 1]} : vector<8x128xf32> to vector<8x32xf32>
    %293 = arith.negf %292 : vector<8x32xf32>
    %294 = math.exp %293 : vector<8x32xf32>
    %cst_65 = arith.constant 1.000000e+00 : f32
    %295 = vector.broadcast %cst_65 : f32 to vector<8x32xf32>
    %296 = arith.addf %295, %294 : vector<8x32xf32>
    %297 = arith.divf %295, %296 : vector<8x32xf32>
    %298 = vector.extract_strided_slice %291 {offsets = [0, 32], sizes = [8, 32], strides = [1, 1]} : vector<8x128xf32> to vector<8x32xf32>
    %299 = arith.negf %298 : vector<8x32xf32>
    %300 = math.exp %299 : vector<8x32xf32>
    %cst_66 = arith.constant 1.000000e+00 : f32
    %301 = vector.broadcast %cst_66 : f32 to vector<8x32xf32>
    %302 = arith.addf %301, %300 : vector<8x32xf32>
    %303 = arith.divf %301, %302 : vector<8x32xf32>
    %304 = vector.extract_strided_slice %291 {offsets = [0, 64], sizes = [8, 32], strides = [1, 1]} : vector<8x128xf32> to vector<8x32xf32>
    %305 = math.tanh %304 : vector<8x32xf32>
    %306 = vector.extract_strided_slice %291 {offsets = [0, 96], sizes = [8, 32], strides = [1, 1]} : vector<8x128xf32> to vector<8x32xf32>
    %307 = arith.negf %306 : vector<8x32xf32>
    %308 = math.exp %307 : vector<8x32xf32>
    %cst_67 = arith.constant 1.000000e+00 : f32
    %309 = vector.broadcast %cst_67 : f32 to vector<8x32xf32>
    %310 = arith.addf %309, %308 : vector<8x32xf32>
    %311 = arith.divf %309, %310 : vector<8x32xf32>
    %312 = arith.mulf %303, %253 : vector<8x32xf32>
    %313 = arith.mulf %297, %305 : vector<8x32xf32>
    %314 = arith.addf %312, %313 : vector<8x32xf32>
    %315 = math.tanh %314 : vector<8x32xf32>
    %316 = arith.mulf %311, %315 : vector<8x32xf32>
    %317 = arith.index_cast %259 : i32 to index
    %c0_68 = arith.constant 0 : index
    %318 = vector.load %arg10[%317, %c0_68] : memref<128x32xf32, #tpu.memory_space<vmem>>, vector<8x32xf32>
    tpu.vector_store %arg10[%317, %c0_68], %316 {strides = array<i32>} : memref<128x32xf32, #tpu.memory_space<vmem>>, vector<8x32xf32>,
    %c5_i32 = arith.constant 5 : i32
    %c8_i32_69 = arith.constant 8 : i32
    %319 = arith.muli %c5_i32, %c8_i32_69 : i32
    %320 = tpu.assume_multiple %319, 8 : i32
    %321 = arith.index_cast %320 : i32 to index
    %c0_70 = arith.constant 0 : index
    %322 = vector.load %arg9[%321, %c0_70] : memref<128x128xf32, #tpu.memory_space<vmem>>, vector<8x128xf32>
    %cst_71 = arith.constant dense<0.000000e+00> : vector<8x128xf32>
    %323 = tpu.matmul %288, %8, %cst_71 {dimension_numbers = #tpu.dot_dimension_numbers<[1], [0], [0], [1], [0, 0, 1, 1], [], []>} : vector<8x32xf32>, vector<32x128xf32>, vector<8x128xf32> -> vector<8x128xf32>
    %324 = arith.addf %322, %323 : vector<8x128xf32>
    %325 = vector.extract_strided_slice %324 {offsets = [0, 0], sizes = [8, 32], strides = [1, 1]} : vector<8x128xf32> to vector<8x32xf32>
    %326 = arith.negf %325 : vector<8x32xf32>
    %327 = math.exp %326 : vector<8x32xf32>
    %cst_72 = arith.constant 1.000000e+00 : f32
    %328 = vector.broadcast %cst_72 : f32 to vector<8x32xf32>
    %329 = arith.addf %328, %327 : vector<8x32xf32>
    %330 = arith.divf %328, %329 : vector<8x32xf32>
    %331 = vector.extract_strided_slice %324 {offsets = [0, 32], sizes = [8, 32], strides = [1, 1]} : vector<8x128xf32> to vector<8x32xf32>
    %332 = arith.negf %331 : vector<8x32xf32>
    %333 = math.exp %332 : vector<8x32xf32>
    %cst_73 = arith.constant 1.000000e+00 : f32
    %334 = vector.broadcast %cst_73 : f32 to vector<8x32xf32>
    %335 = arith.addf %334, %333 : vector<8x32xf32>
    %336 = arith.divf %334, %335 : vector<8x32xf32>
    %337 = vector.extract_strided_slice %324 {offsets = [0, 64], sizes = [8, 32], strides = [1, 1]} : vector<8x128xf32> to vector<8x32xf32>
    %338 = math.tanh %337 : vector<8x32xf32>
    %339 = vector.extract_strided_slice %324 {offsets = [0, 96], sizes = [8, 32], strides = [1, 1]} : vector<8x128xf32> to vector<8x32xf32>
    %340 = arith.negf %339 : vector<8x32xf32>
    %341 = math.exp %340 : vector<8x32xf32>
    %cst_74 = arith.constant 1.000000e+00 : f32
    %342 = vector.broadcast %cst_74 : f32 to vector<8x32xf32>
    %343 = arith.addf %342, %341 : vector<8x32xf32>
    %344 = arith.divf %342, %343 : vector<8x32xf32>
    %345 = arith.mulf %336, %286 : vector<8x32xf32>
    %346 = arith.mulf %330, %338 : vector<8x32xf32>
    %347 = arith.addf %345, %346 : vector<8x32xf32>
    %348 = math.tanh %347 : vector<8x32xf32>
    %349 = arith.mulf %344, %348 : vector<8x32xf32>
    %350 = tpu.concatenate %349, %316 in 1 : vector<8x32xf32>, vector<8x32xf32> -> vector<8x64xf32>
    %cst_75 = arith.constant dense<0.000000e+00> : vector<8x128xf32>
    %351 = tpu.matmul %350, %9, %cst_75 {dimension_numbers = #tpu.dot_dimension_numbers<[1], [0], [0], [1], [0, 0, 1, 1], [], []>} : vector<8x64xf32>, vector<64x128xf32>, vector<8x128xf32> -> vector<8x128xf32>
    %352 = arith.addf %351, %12 : vector<8x128xf32>
    %353 = vector.extract_strided_slice %352 {offsets = [0, 0], sizes = [8, 32], strides = [1, 1]} : vector<8x128xf32> to vector<8x32xf32>
    %354 = arith.negf %353 : vector<8x32xf32>
    %355 = math.exp %354 : vector<8x32xf32>
    %cst_76 = arith.constant 1.000000e+00 : f32
    %356 = vector.broadcast %cst_76 : f32 to vector<8x32xf32>
    %357 = arith.addf %356, %355 : vector<8x32xf32>
    %358 = arith.divf %356, %357 : vector<8x32xf32>
    %359 = vector.extract_strided_slice %352 {offsets = [0, 32], sizes = [8, 32], strides = [1, 1]} : vector<8x128xf32> to vector<8x32xf32>
    %360 = arith.negf %359 : vector<8x32xf32>
    %361 = math.exp %360 : vector<8x32xf32>
    %cst_77 = arith.constant 1.000000e+00 : f32
    %362 = vector.broadcast %cst_77 : f32 to vector<8x32xf32>
    %363 = arith.addf %362, %361 : vector<8x32xf32>
    %364 = arith.divf %362, %363 : vector<8x32xf32>
    %365 = vector.extract_strided_slice %352 {offsets = [0, 64], sizes = [8, 32], strides = [1, 1]} : vector<8x128xf32> to vector<8x32xf32>
    %366 = math.tanh %365 : vector<8x32xf32>
    %367 = vector.extract_strided_slice %352 {offsets = [0, 96], sizes = [8, 32], strides = [1, 1]} : vector<8x128xf32> to vector<8x32xf32>
    %368 = arith.negf %367 : vector<8x32xf32>
    %369 = math.exp %368 : vector<8x32xf32>
    %cst_78 = arith.constant 1.000000e+00 : f32
    %370 = vector.broadcast %cst_78 : f32 to vector<8x32xf32>
    %371 = arith.addf %370, %369 : vector<8x32xf32>
    %372 = arith.divf %370, %371 : vector<8x32xf32>
    %373 = arith.mulf %364, %314 : vector<8x32xf32>
    %374 = arith.mulf %358, %366 : vector<8x32xf32>
    %375 = arith.addf %373, %374 : vector<8x32xf32>
    %376 = math.tanh %375 : vector<8x32xf32>
    %377 = arith.mulf %372, %376 : vector<8x32xf32>
    %378 = arith.index_cast %320 : i32 to index
    %c0_79 = arith.constant 0 : index
    %379 = vector.load %arg10[%378, %c0_79] : memref<128x32xf32, #tpu.memory_space<vmem>>, vector<8x32xf32>
    tpu.vector_store %arg10[%378, %c0_79], %377 {strides = array<i32>} : memref<128x32xf32, #tpu.memory_space<vmem>>, vector<8x32xf32>,
    %c6_i32 = arith.constant 6 : i32
    %c8_i32_80 = arith.constant 8 : i32
    %380 = arith.muli %c6_i32, %c8_i32_80 : i32
    %381 = tpu.assume_multiple %380, 8 : i32
    %382 = arith.index_cast %381 : i32 to index
    %c0_81 = arith.constant 0 : index
    %383 = vector.load %arg9[%382, %c0_81] : memref<128x128xf32, #tpu.memory_space<vmem>>, vector<8x128xf32>
    %cst_82 = arith.constant dense<0.000000e+00> : vector<8x128xf32>
    %384 = tpu.matmul %349, %8, %cst_82 {dimension_numbers = #tpu.dot_dimension_numbers<[1], [0], [0], [1], [0, 0, 1, 1], [], []>} : vector<8x32xf32>, vector<32x128xf32>, vector<8x128xf32> -> vector<8x128xf32>
    %385 = arith.addf %383, %384 : vector<8x128xf32>
    %386 = vector.extract_strided_slice %385 {offsets = [0, 0], sizes = [8, 32], strides = [1, 1]} : vector<8x128xf32> to vector<8x32xf32>
    %387 = arith.negf %386 : vector<8x32xf32>
    %388 = math.exp %387 : vector<8x32xf32>
    %cst_83 = arith.constant 1.000000e+00 : f32
    %389 = vector.broadcast %cst_83 : f32 to vector<8x32xf32>
    %390 = arith.addf %389, %388 : vector<8x32xf32>
    %391 = arith.divf %389, %390 : vector<8x32xf32>
    %392 = vector.extract_strided_slice %385 {offsets = [0, 32], sizes = [8, 32], strides = [1, 1]} : vector<8x128xf32> to vector<8x32xf32>
    %393 = arith.negf %392 : vector<8x32xf32>
    %394 = math.exp %393 : vector<8x32xf32>
    %cst_84 = arith.constant 1.000000e+00 : f32
    %395 = vector.broadcast %cst_84 : f32 to vector<8x32xf32>
    %396 = arith.addf %395, %394 : vector<8x32xf32>
    %397 = arith.divf %395, %396 : vector<8x32xf32>
    %398 = vector.extract_strided_slice %385 {offsets = [0, 64], sizes = [8, 32], strides = [1, 1]} : vector<8x128xf32> to vector<8x32xf32>
    %399 = math.tanh %398 : vector<8x32xf32>
    %400 = vector.extract_strided_slice %385 {offsets = [0, 96], sizes = [8, 32], strides = [1, 1]} : vector<8x128xf32> to vector<8x32xf32>
    %401 = arith.negf %400 : vector<8x32xf32>
    %402 = math.exp %401 : vector<8x32xf32>
    %cst_85 = arith.constant 1.000000e+00 : f32
    %403 = vector.broadcast %cst_85 : f32 to vector<8x32xf32>
    %404 = arith.addf %403, %402 : vector<8x32xf32>
    %405 = arith.divf %403, %404 : vector<8x32xf32>
    %406 = arith.mulf %397, %347 : vector<8x32xf32>
    %407 = arith.mulf %391, %399 : vector<8x32xf32>
    %408 = arith.addf %406, %407 : vector<8x32xf32>
    %409 = math.tanh %408 : vector<8x32xf32>
    %410 = arith.mulf %405, %409 : vector<8x32xf32>
    %411 = tpu.concatenate %410, %377 in 1 : vector<8x32xf32>, vector<8x32xf32> -> vector<8x64xf32>
    %cst_86 = arith.constant dense<0.000000e+00> : vector<8x128xf32>
    %412 = tpu.matmul %411, %9, %cst_86 {dimension_numbers = #tpu.dot_dimension_numbers<[1], [0], [0], [1], [0, 0, 1, 1], [], []>} : vector<8x64xf32>, vector<64x128xf32>, vector<8x128xf32> -> vector<8x128xf32>
    %413 = arith.addf %412, %12 : vector<8x128xf32>
    %414 = vector.extract_strided_slice %413 {offsets = [0, 0], sizes = [8, 32], strides = [1, 1]} : vector<8x128xf32> to vector<8x32xf32>
    %415 = arith.negf %414 : vector<8x32xf32>
    %416 = math.exp %415 : vector<8x32xf32>
    %cst_87 = arith.constant 1.000000e+00 : f32
    %417 = vector.broadcast %cst_87 : f32 to vector<8x32xf32>
    %418 = arith.addf %417, %416 : vector<8x32xf32>
    %419 = arith.divf %417, %418 : vector<8x32xf32>
    %420 = vector.extract_strided_slice %413 {offsets = [0, 32], sizes = [8, 32], strides = [1, 1]} : vector<8x128xf32> to vector<8x32xf32>
    %421 = arith.negf %420 : vector<8x32xf32>
    %422 = math.exp %421 : vector<8x32xf32>
    %cst_88 = arith.constant 1.000000e+00 : f32
    %423 = vector.broadcast %cst_88 : f32 to vector<8x32xf32>
    %424 = arith.addf %423, %422 : vector<8x32xf32>
    %425 = arith.divf %423, %424 : vector<8x32xf32>
    %426 = vector.extract_strided_slice %413 {offsets = [0, 64], sizes = [8, 32], strides = [1, 1]} : vector<8x128xf32> to vector<8x32xf32>
    %427 = math.tanh %426 : vector<8x32xf32>
    %428 = vector.extract_strided_slice %413 {offsets = [0, 96], sizes = [8, 32], strides = [1, 1]} : vector<8x128xf32> to vector<8x32xf32>
    %429 = arith.negf %428 : vector<8x32xf32>
    %430 = math.exp %429 : vector<8x32xf32>
    %cst_89 = arith.constant 1.000000e+00 : f32
    %431 = vector.broadcast %cst_89 : f32 to vector<8x32xf32>
    %432 = arith.addf %431, %430 : vector<8x32xf32>
    %433 = arith.divf %431, %432 : vector<8x32xf32>
    %434 = arith.mulf %425, %375 : vector<8x32xf32>
    %435 = arith.mulf %419, %427 : vector<8x32xf32>
    %436 = arith.addf %434, %435 : vector<8x32xf32>
    %437 = math.tanh %436 : vector<8x32xf32>
    %438 = arith.mulf %433, %437 : vector<8x32xf32>
    %439 = arith.index_cast %381 : i32 to index
    %c0_90 = arith.constant 0 : index
    %440 = vector.load %arg10[%439, %c0_90] : memref<128x32xf32, #tpu.memory_space<vmem>>, vector<8x32xf32>
    tpu.vector_store %arg10[%439, %c0_90], %438 {strides = array<i32>} : memref<128x32xf32, #tpu.memory_space<vmem>>, vector<8x32xf32>,
    %c7_i32 = arith.constant 7 : i32
    %c8_i32_91 = arith.constant 8 : i32
    %441 = arith.muli %c7_i32, %c8_i32_91 : i32
    %442 = tpu.assume_multiple %441, 8 : i32
    %443 = arith.index_cast %442 : i32 to index
    %c0_92 = arith.constant 0 : index
    %444 = vector.load %arg9[%443, %c0_92] : memref<128x128xf32, #tpu.memory_space<vmem>>, vector<8x128xf32>
    %cst_93 = arith.constant dense<0.000000e+00> : vector<8x128xf32>
    %445 = tpu.matmul %410, %8, %cst_93 {dimension_numbers = #tpu.dot_dimension_numbers<[1], [0], [0], [1], [0, 0, 1, 1], [], []>} : vector<8x32xf32>, vector<32x128xf32>, vector<8x128xf32> -> vector<8x128xf32>
    %446 = arith.addf %444, %445 : vector<8x128xf32>
    %447 = vector.extract_strided_slice %446 {offsets = [0, 0], sizes = [8, 32], strides = [1, 1]} : vector<8x128xf32> to vector<8x32xf32>
    %448 = arith.negf %447 : vector<8x32xf32>
    %449 = math.exp %448 : vector<8x32xf32>
    %cst_94 = arith.constant 1.000000e+00 : f32
    %450 = vector.broadcast %cst_94 : f32 to vector<8x32xf32>
    %451 = arith.addf %450, %449 : vector<8x32xf32>
    %452 = arith.divf %450, %451 : vector<8x32xf32>
    %453 = vector.extract_strided_slice %446 {offsets = [0, 32], sizes = [8, 32], strides = [1, 1]} : vector<8x128xf32> to vector<8x32xf32>
    %454 = arith.negf %453 : vector<8x32xf32>
    %455 = math.exp %454 : vector<8x32xf32>
    %cst_95 = arith.constant 1.000000e+00 : f32
    %456 = vector.broadcast %cst_95 : f32 to vector<8x32xf32>
    %457 = arith.addf %456, %455 : vector<8x32xf32>
    %458 = arith.divf %456, %457 : vector<8x32xf32>
    %459 = vector.extract_strided_slice %446 {offsets = [0, 64], sizes = [8, 32], strides = [1, 1]} : vector<8x128xf32> to vector<8x32xf32>
    %460 = math.tanh %459 : vector<8x32xf32>
    %461 = vector.extract_strided_slice %446 {offsets = [0, 96], sizes = [8, 32], strides = [1, 1]} : vector<8x128xf32> to vector<8x32xf32>
    %462 = arith.negf %461 : vector<8x32xf32>
    %463 = math.exp %462 : vector<8x32xf32>
    %cst_96 = arith.constant 1.000000e+00 : f32
    %464 = vector.broadcast %cst_96 : f32 to vector<8x32xf32>
    %465 = arith.addf %464, %463 : vector<8x32xf32>
    %466 = arith.divf %464, %465 : vector<8x32xf32>
    %467 = arith.mulf %458, %408 : vector<8x32xf32>
    %468 = arith.mulf %452, %460 : vector<8x32xf32>
    %469 = arith.addf %467, %468 : vector<8x32xf32>
    %470 = math.tanh %469 : vector<8x32xf32>
    %471 = arith.mulf %466, %470 : vector<8x32xf32>
    %472 = tpu.concatenate %471, %438 in 1 : vector<8x32xf32>, vector<8x32xf32> -> vector<8x64xf32>
    %cst_97 = arith.constant dense<0.000000e+00> : vector<8x128xf32>
    %473 = tpu.matmul %472, %9, %cst_97 {dimension_numbers = #tpu.dot_dimension_numbers<[1], [0], [0], [1], [0, 0, 1, 1], [], []>} : vector<8x64xf32>, vector<64x128xf32>, vector<8x128xf32> -> vector<8x128xf32>
    %474 = arith.addf %473, %12 : vector<8x128xf32>
    %475 = vector.extract_strided_slice %474 {offsets = [0, 0], sizes = [8, 32], strides = [1, 1]} : vector<8x128xf32> to vector<8x32xf32>
    %476 = arith.negf %475 : vector<8x32xf32>
    %477 = math.exp %476 : vector<8x32xf32>
    %cst_98 = arith.constant 1.000000e+00 : f32
    %478 = vector.broadcast %cst_98 : f32 to vector<8x32xf32>
    %479 = arith.addf %478, %477 : vector<8x32xf32>
    %480 = arith.divf %478, %479 : vector<8x32xf32>
    %481 = vector.extract_strided_slice %474 {offsets = [0, 32], sizes = [8, 32], strides = [1, 1]} : vector<8x128xf32> to vector<8x32xf32>
    %482 = arith.negf %481 : vector<8x32xf32>
    %483 = math.exp %482 : vector<8x32xf32>
    %cst_99 = arith.constant 1.000000e+00 : f32
    %484 = vector.broadcast %cst_99 : f32 to vector<8x32xf32>
    %485 = arith.addf %484, %483 : vector<8x32xf32>
    %486 = arith.divf %484, %485 : vector<8x32xf32>
    %487 = vector.extract_strided_slice %474 {offsets = [0, 64], sizes = [8, 32], strides = [1, 1]} : vector<8x128xf32> to vector<8x32xf32>
    %488 = math.tanh %487 : vector<8x32xf32>
    %489 = vector.extract_strided_slice %474 {offsets = [0, 96], sizes = [8, 32], strides = [1, 1]} : vector<8x128xf32> to vector<8x32xf32>
    %490 = arith.negf %489 : vector<8x32xf32>
    %491 = math.exp %490 : vector<8x32xf32>
    %cst_100 = arith.constant 1.000000e+00 : f32
    %492 = vector.broadcast %cst_100 : f32 to vector<8x32xf32>
    %493 = arith.addf %492, %491 : vector<8x32xf32>
    %494 = arith.divf %492, %493 : vector<8x32xf32>
    %495 = arith.mulf %486, %436 : vector<8x32xf32>
    %496 = arith.mulf %480, %488 : vector<8x32xf32>
    %497 = arith.addf %495, %496 : vector<8x32xf32>
    %498 = math.tanh %497 : vector<8x32xf32>
    %499 = arith.mulf %494, %498 : vector<8x32xf32>
    %500 = arith.index_cast %442 : i32 to index
    %c0_101 = arith.constant 0 : index
    %501 = vector.load %arg10[%500, %c0_101] : memref<128x32xf32, #tpu.memory_space<vmem>>, vector<8x32xf32>
    tpu.vector_store %arg10[%500, %c0_101], %499 {strides = array<i32>} : memref<128x32xf32, #tpu.memory_space<vmem>>, vector<8x32xf32>,
    %c8_i32_102 = arith.constant 8 : i32
    %c8_i32_103 = arith.constant 8 : i32
    %502 = arith.muli %c8_i32_102, %c8_i32_103 : i32
    %503 = tpu.assume_multiple %502, 8 : i32
    %504 = arith.index_cast %503 : i32 to index
    %c0_104 = arith.constant 0 : index
    %505 = vector.load %arg9[%504, %c0_104] : memref<128x128xf32, #tpu.memory_space<vmem>>, vector<8x128xf32>
    %cst_105 = arith.constant dense<0.000000e+00> : vector<8x128xf32>
    %506 = tpu.matmul %471, %8, %cst_105 {dimension_numbers = #tpu.dot_dimension_numbers<[1], [0], [0], [1], [0, 0, 1, 1], [], []>} : vector<8x32xf32>, vector<32x128xf32>, vector<8x128xf32> -> vector<8x128xf32>
    %507 = arith.addf %505, %506 : vector<8x128xf32>
    %508 = vector.extract_strided_slice %507 {offsets = [0, 0], sizes = [8, 32], strides = [1, 1]} : vector<8x128xf32> to vector<8x32xf32>
    %509 = arith.negf %508 : vector<8x32xf32>
    %510 = math.exp %509 : vector<8x32xf32>
    %cst_106 = arith.constant 1.000000e+00 : f32
    %511 = vector.broadcast %cst_106 : f32 to vector<8x32xf32>
    %512 = arith.addf %511, %510 : vector<8x32xf32>
    %513 = arith.divf %511, %512 : vector<8x32xf32>
    %514 = vector.extract_strided_slice %507 {offsets = [0, 32], sizes = [8, 32], strides = [1, 1]} : vector<8x128xf32> to vector<8x32xf32>
    %515 = arith.negf %514 : vector<8x32xf32>
    %516 = math.exp %515 : vector<8x32xf32>
    %cst_107 = arith.constant 1.000000e+00 : f32
    %517 = vector.broadcast %cst_107 : f32 to vector<8x32xf32>
    %518 = arith.addf %517, %516 : vector<8x32xf32>
    %519 = arith.divf %517, %518 : vector<8x32xf32>
    %520 = vector.extract_strided_slice %507 {offsets = [0, 64], sizes = [8, 32], strides = [1, 1]} : vector<8x128xf32> to vector<8x32xf32>
    %521 = math.tanh %520 : vector<8x32xf32>
    %522 = vector.extract_strided_slice %507 {offsets = [0, 96], sizes = [8, 32], strides = [1, 1]} : vector<8x128xf32> to vector<8x32xf32>
    %523 = arith.negf %522 : vector<8x32xf32>
    %524 = math.exp %523 : vector<8x32xf32>
    %cst_108 = arith.constant 1.000000e+00 : f32
    %525 = vector.broadcast %cst_108 : f32 to vector<8x32xf32>
    %526 = arith.addf %525, %524 : vector<8x32xf32>
    %527 = arith.divf %525, %526 : vector<8x32xf32>
    %528 = arith.mulf %519, %469 : vector<8x32xf32>
    %529 = arith.mulf %513, %521 : vector<8x32xf32>
    %530 = arith.addf %528, %529 : vector<8x32xf32>
    %531 = math.tanh %530 : vector<8x32xf32>
    %532 = arith.mulf %527, %531 : vector<8x32xf32>
    %533 = tpu.concatenate %532, %499 in 1 : vector<8x32xf32>, vector<8x32xf32> -> vector<8x64xf32>
    %cst_109 = arith.constant dense<0.000000e+00> : vector<8x128xf32>
    %534 = tpu.matmul %533, %9, %cst_109 {dimension_numbers = #tpu.dot_dimension_numbers<[1], [0], [0], [1], [0, 0, 1, 1], [], []>} : vector<8x64xf32>, vector<64x128xf32>, vector<8x128xf32> -> vector<8x128xf32>
    %535 = arith.addf %534, %12 : vector<8x128xf32>
    %536 = vector.extract_strided_slice %535 {offsets = [0, 0], sizes = [8, 32], strides = [1, 1]} : vector<8x128xf32> to vector<8x32xf32>
    %537 = arith.negf %536 : vector<8x32xf32>
    %538 = math.exp %537 : vector<8x32xf32>
    %cst_110 = arith.constant 1.000000e+00 : f32
    %539 = vector.broadcast %cst_110 : f32 to vector<8x32xf32>
    %540 = arith.addf %539, %538 : vector<8x32xf32>
    %541 = arith.divf %539, %540 : vector<8x32xf32>
    %542 = vector.extract_strided_slice %535 {offsets = [0, 32], sizes = [8, 32], strides = [1, 1]} : vector<8x128xf32> to vector<8x32xf32>
    %543 = arith.negf %542 : vector<8x32xf32>
    %544 = math.exp %543 : vector<8x32xf32>
    %cst_111 = arith.constant 1.000000e+00 : f32
    %545 = vector.broadcast %cst_111 : f32 to vector<8x32xf32>
    %546 = arith.addf %545, %544 : vector<8x32xf32>
    %547 = arith.divf %545, %546 : vector<8x32xf32>
    %548 = vector.extract_strided_slice %535 {offsets = [0, 64], sizes = [8, 32], strides = [1, 1]} : vector<8x128xf32> to vector<8x32xf32>
    %549 = math.tanh %548 : vector<8x32xf32>
    %550 = vector.extract_strided_slice %535 {offsets = [0, 96], sizes = [8, 32], strides = [1, 1]} : vector<8x128xf32> to vector<8x32xf32>
    %551 = arith.negf %550 : vector<8x32xf32>
    %552 = math.exp %551 : vector<8x32xf32>
    %cst_112 = arith.constant 1.000000e+00 : f32
    %553 = vector.broadcast %cst_112 : f32 to vector<8x32xf32>
    %554 = arith.addf %553, %552 : vector<8x32xf32>
    %555 = arith.divf %553, %554 : vector<8x32xf32>
    %556 = arith.mulf %547, %497 : vector<8x32xf32>
    %557 = arith.mulf %541, %549 : vector<8x32xf32>
    %558 = arith.addf %556, %557 : vector<8x32xf32>
    %559 = math.tanh %558 : vector<8x32xf32>
    %560 = arith.mulf %555, %559 : vector<8x32xf32>
    %561 = arith.index_cast %503 : i32 to index
    %c0_113 = arith.constant 0 : index
    %562 = vector.load %arg10[%561, %c0_113] : memref<128x32xf32, #tpu.memory_space<vmem>>, vector<8x32xf32>
    tpu.vector_store %arg10[%561, %c0_113], %560 {strides = array<i32>} : memref<128x32xf32, #tpu.memory_space<vmem>>, vector<8x32xf32>,
    %c9_i32 = arith.constant 9 : i32
    %c8_i32_114 = arith.constant 8 : i32
    %563 = arith.muli %c9_i32, %c8_i32_114 : i32
    %564 = tpu.assume_multiple %563, 8 : i32
    %565 = arith.index_cast %564 : i32 to index
    %c0_115 = arith.constant 0 : index
    %566 = vector.load %arg9[%565, %c0_115] : memref<128x128xf32, #tpu.memory_space<vmem>>, vector<8x128xf32>
    %cst_116 = arith.constant dense<0.000000e+00> : vector<8x128xf32>
    %567 = tpu.matmul %532, %8, %cst_116 {dimension_numbers = #tpu.dot_dimension_numbers<[1], [0], [0], [1], [0, 0, 1, 1], [], []>} : vector<8x32xf32>, vector<32x128xf32>, vector<8x128xf32> -> vector<8x128xf32>
    %568 = arith.addf %566, %567 : vector<8x128xf32>
    %569 = vector.extract_strided_slice %568 {offsets = [0, 0], sizes = [8, 32], strides = [1, 1]} : vector<8x128xf32> to vector<8x32xf32>
    %570 = arith.negf %569 : vector<8x32xf32>
    %571 = math.exp %570 : vector<8x32xf32>
    %cst_117 = arith.constant 1.000000e+00 : f32
    %572 = vector.broadcast %cst_117 : f32 to vector<8x32xf32>
    %573 = arith.addf %572, %571 : vector<8x32xf32>
    %574 = arith.divf %572, %573 : vector<8x32xf32>
    %575 = vector.extract_strided_slice %568 {offsets = [0, 32], sizes = [8, 32], strides = [1, 1]} : vector<8x128xf32> to vector<8x32xf32>
    %576 = arith.negf %575 : vector<8x32xf32>
    %577 = math.exp %576 : vector<8x32xf32>
    %cst_118 = arith.constant 1.000000e+00 : f32
    %578 = vector.broadcast %cst_118 : f32 to vector<8x32xf32>
    %579 = arith.addf %578, %577 : vector<8x32xf32>
    %580 = arith.divf %578, %579 : vector<8x32xf32>
    %581 = vector.extract_strided_slice %568 {offsets = [0, 64], sizes = [8, 32], strides = [1, 1]} : vector<8x128xf32> to vector<8x32xf32>
    %582 = math.tanh %581 : vector<8x32xf32>
    %583 = vector.extract_strided_slice %568 {offsets = [0, 96], sizes = [8, 32], strides = [1, 1]} : vector<8x128xf32> to vector<8x32xf32>
    %584 = arith.negf %583 : vector<8x32xf32>
    %585 = math.exp %584 : vector<8x32xf32>
    %cst_119 = arith.constant 1.000000e+00 : f32
    %586 = vector.broadcast %cst_119 : f32 to vector<8x32xf32>
    %587 = arith.addf %586, %585 : vector<8x32xf32>
    %588 = arith.divf %586, %587 : vector<8x32xf32>
    %589 = arith.mulf %580, %530 : vector<8x32xf32>
    %590 = arith.mulf %574, %582 : vector<8x32xf32>
    %591 = arith.addf %589, %590 : vector<8x32xf32>
    %592 = math.tanh %591 : vector<8x32xf32>
    %593 = arith.mulf %588, %592 : vector<8x32xf32>
    %594 = tpu.concatenate %593, %560 in 1 : vector<8x32xf32>, vector<8x32xf32> -> vector<8x64xf32>
    %cst_120 = arith.constant dense<0.000000e+00> : vector<8x128xf32>
    %595 = tpu.matmul %594, %9, %cst_120 {dimension_numbers = #tpu.dot_dimension_numbers<[1], [0], [0], [1], [0, 0, 1, 1], [], []>} : vector<8x64xf32>, vector<64x128xf32>, vector<8x128xf32> -> vector<8x128xf32>
    %596 = arith.addf %595, %12 : vector<8x128xf32>
    %597 = vector.extract_strided_slice %596 {offsets = [0, 0], sizes = [8, 32], strides = [1, 1]} : vector<8x128xf32> to vector<8x32xf32>
    %598 = arith.negf %597 : vector<8x32xf32>
    %599 = math.exp %598 : vector<8x32xf32>
    %cst_121 = arith.constant 1.000000e+00 : f32
    %600 = vector.broadcast %cst_121 : f32 to vector<8x32xf32>
    %601 = arith.addf %600, %599 : vector<8x32xf32>
    %602 = arith.divf %600, %601 : vector<8x32xf32>
    %603 = vector.extract_strided_slice %596 {offsets = [0, 32], sizes = [8, 32], strides = [1, 1]} : vector<8x128xf32> to vector<8x32xf32>
    %604 = arith.negf %603 : vector<8x32xf32>
    %605 = math.exp %604 : vector<8x32xf32>
    %cst_122 = arith.constant 1.000000e+00 : f32
    %606 = vector.broadcast %cst_122 : f32 to vector<8x32xf32>
    %607 = arith.addf %606, %605 : vector<8x32xf32>
    %608 = arith.divf %606, %607 : vector<8x32xf32>
    %609 = vector.extract_strided_slice %596 {offsets = [0, 64], sizes = [8, 32], strides = [1, 1]} : vector<8x128xf32> to vector<8x32xf32>
    %610 = math.tanh %609 : vector<8x32xf32>
    %611 = vector.extract_strided_slice %596 {offsets = [0, 96], sizes = [8, 32], strides = [1, 1]} : vector<8x128xf32> to vector<8x32xf32>
    %612 = arith.negf %611 : vector<8x32xf32>
    %613 = math.exp %612 : vector<8x32xf32>
    %cst_123 = arith.constant 1.000000e+00 : f32
    %614 = vector.broadcast %cst_123 : f32 to vector<8x32xf32>
    %615 = arith.addf %614, %613 : vector<8x32xf32>
    %616 = arith.divf %614, %615 : vector<8x32xf32>
    %617 = arith.mulf %608, %558 : vector<8x32xf32>
    %618 = arith.mulf %602, %610 : vector<8x32xf32>
    %619 = arith.addf %617, %618 : vector<8x32xf32>
    %620 = math.tanh %619 : vector<8x32xf32>
    %621 = arith.mulf %616, %620 : vector<8x32xf32>
    %622 = arith.index_cast %564 : i32 to index
    %c0_124 = arith.constant 0 : index
    %623 = vector.load %arg10[%622, %c0_124] : memref<128x32xf32, #tpu.memory_space<vmem>>, vector<8x32xf32>
    tpu.vector_store %arg10[%622, %c0_124], %621 {strides = array<i32>} : memref<128x32xf32, #tpu.memory_space<vmem>>, vector<8x32xf32>,
    %c10_i32 = arith.constant 10 : i32
    %c8_i32_125 = arith.constant 8 : i32
    %624 = arith.muli %c10_i32, %c8_i32_125 : i32
    %625 = tpu.assume_multiple %624, 8 : i32
    %626 = arith.index_cast %625 : i32 to index
    %c0_126 = arith.constant 0 : index
    %627 = vector.load %arg9[%626, %c0_126] : memref<128x128xf32, #tpu.memory_space<vmem>>, vector<8x128xf32>
    %cst_127 = arith.constant dense<0.000000e+00> : vector<8x128xf32>
    %628 = tpu.matmul %593, %8, %cst_127 {dimension_numbers = #tpu.dot_dimension_numbers<[1], [0], [0], [1], [0, 0, 1, 1], [], []>} : vector<8x32xf32>, vector<32x128xf32>, vector<8x128xf32> -> vector<8x128xf32>
    %629 = arith.addf %627, %628 : vector<8x128xf32>
    %630 = vector.extract_strided_slice %629 {offsets = [0, 0], sizes = [8, 32], strides = [1, 1]} : vector<8x128xf32> to vector<8x32xf32>
    %631 = arith.negf %630 : vector<8x32xf32>
    %632 = math.exp %631 : vector<8x32xf32>
    %cst_128 = arith.constant 1.000000e+00 : f32
    %633 = vector.broadcast %cst_128 : f32 to vector<8x32xf32>
    %634 = arith.addf %633, %632 : vector<8x32xf32>
    %635 = arith.divf %633, %634 : vector<8x32xf32>
    %636 = vector.extract_strided_slice %629 {offsets = [0, 32], sizes = [8, 32], strides = [1, 1]} : vector<8x128xf32> to vector<8x32xf32>
    %637 = arith.negf %636 : vector<8x32xf32>
    %638 = math.exp %637 : vector<8x32xf32>
    %cst_129 = arith.constant 1.000000e+00 : f32
    %639 = vector.broadcast %cst_129 : f32 to vector<8x32xf32>
    %640 = arith.addf %639, %638 : vector<8x32xf32>
    %641 = arith.divf %639, %640 : vector<8x32xf32>
    %642 = vector.extract_strided_slice %629 {offsets = [0, 64], sizes = [8, 32], strides = [1, 1]} : vector<8x128xf32> to vector<8x32xf32>
    %643 = math.tanh %642 : vector<8x32xf32>
    %644 = vector.extract_strided_slice %629 {offsets = [0, 96], sizes = [8, 32], strides = [1, 1]} : vector<8x128xf32> to vector<8x32xf32>
    %645 = arith.negf %644 : vector<8x32xf32>
    %646 = math.exp %645 : vector<8x32xf32>
    %cst_130 = arith.constant 1.000000e+00 : f32
    %647 = vector.broadcast %cst_130 : f32 to vector<8x32xf32>
    %648 = arith.addf %647, %646 : vector<8x32xf32>
    %649 = arith.divf %647, %648 : vector<8x32xf32>
    %650 = arith.mulf %641, %591 : vector<8x32xf32>
    %651 = arith.mulf %635, %643 : vector<8x32xf32>
    %652 = arith.addf %650, %651 : vector<8x32xf32>
    %653 = math.tanh %652 : vector<8x32xf32>
    %654 = arith.mulf %649, %653 : vector<8x32xf32>
    %655 = tpu.concatenate %654, %621 in 1 : vector<8x32xf32>, vector<8x32xf32> -> vector<8x64xf32>
    %cst_131 = arith.constant dense<0.000000e+00> : vector<8x128xf32>
    %656 = tpu.matmul %655, %9, %cst_131 {dimension_numbers = #tpu.dot_dimension_numbers<[1], [0], [0], [1], [0, 0, 1, 1], [], []>} : vector<8x64xf32>, vector<64x128xf32>, vector<8x128xf32> -> vector<8x128xf32>
    %657 = arith.addf %656, %12 : vector<8x128xf32>
    %658 = vector.extract_strided_slice %657 {offsets = [0, 0], sizes = [8, 32], strides = [1, 1]} : vector<8x128xf32> to vector<8x32xf32>
    %659 = arith.negf %658 : vector<8x32xf32>
    %660 = math.exp %659 : vector<8x32xf32>
    %cst_132 = arith.constant 1.000000e+00 : f32
    %661 = vector.broadcast %cst_132 : f32 to vector<8x32xf32>
    %662 = arith.addf %661, %660 : vector<8x32xf32>
    %663 = arith.divf %661, %662 : vector<8x32xf32>
    %664 = vector.extract_strided_slice %657 {offsets = [0, 32], sizes = [8, 32], strides = [1, 1]} : vector<8x128xf32> to vector<8x32xf32>
    %665 = arith.negf %664 : vector<8x32xf32>
    %666 = math.exp %665 : vector<8x32xf32>
    %cst_133 = arith.constant 1.000000e+00 : f32
    %667 = vector.broadcast %cst_133 : f32 to vector<8x32xf32>
    %668 = arith.addf %667, %666 : vector<8x32xf32>
    %669 = arith.divf %667, %668 : vector<8x32xf32>
    %670 = vector.extract_strided_slice %657 {offsets = [0, 64], sizes = [8, 32], strides = [1, 1]} : vector<8x128xf32> to vector<8x32xf32>
    %671 = math.tanh %670 : vector<8x32xf32>
    %672 = vector.extract_strided_slice %657 {offsets = [0, 96], sizes = [8, 32], strides = [1, 1]} : vector<8x128xf32> to vector<8x32xf32>
    %673 = arith.negf %672 : vector<8x32xf32>
    %674 = math.exp %673 : vector<8x32xf32>
    %cst_134 = arith.constant 1.000000e+00 : f32
    %675 = vector.broadcast %cst_134 : f32 to vector<8x32xf32>
    %676 = arith.addf %675, %674 : vector<8x32xf32>
    %677 = arith.divf %675, %676 : vector<8x32xf32>
    %678 = arith.mulf %669, %619 : vector<8x32xf32>
    %679 = arith.mulf %663, %671 : vector<8x32xf32>
    %680 = arith.addf %678, %679 : vector<8x32xf32>
    %681 = math.tanh %680 : vector<8x32xf32>
    %682 = arith.mulf %677, %681 : vector<8x32xf32>
    %683 = arith.index_cast %625 : i32 to index
    %c0_135 = arith.constant 0 : index
    %684 = vector.load %arg10[%683, %c0_135] : memref<128x32xf32, #tpu.memory_space<vmem>>, vector<8x32xf32>
    tpu.vector_store %arg10[%683, %c0_135], %682 {strides = array<i32>} : memref<128x32xf32, #tpu.memory_space<vmem>>, vector<8x32xf32>,
    %c11_i32 = arith.constant 11 : i32
    %c8_i32_136 = arith.constant 8 : i32
    %685 = arith.muli %c11_i32, %c8_i32_136 : i32
    %686 = tpu.assume_multiple %685, 8 : i32
    %687 = arith.index_cast %686 : i32 to index
    %c0_137 = arith.constant 0 : index
    %688 = vector.load %arg9[%687, %c0_137] : memref<128x128xf32, #tpu.memory_space<vmem>>, vector<8x128xf32>
    %cst_138 = arith.constant dense<0.000000e+00> : vector<8x128xf32>
    %689 = tpu.matmul %654, %8, %cst_138 {dimension_numbers = #tpu.dot_dimension_numbers<[1], [0], [0], [1], [0, 0, 1, 1], [], []>} : vector<8x32xf32>, vector<32x128xf32>, vector<8x128xf32> -> vector<8x128xf32>
    %690 = arith.addf %688, %689 : vector<8x128xf32>
    %691 = vector.extract_strided_slice %690 {offsets = [0, 0], sizes = [8, 32], strides = [1, 1]} : vector<8x128xf32> to vector<8x32xf32>
    %692 = arith.negf %691 : vector<8x32xf32>
    %693 = math.exp %692 : vector<8x32xf32>
    %cst_139 = arith.constant 1.000000e+00 : f32
    %694 = vector.broadcast %cst_139 : f32 to vector<8x32xf32>
    %695 = arith.addf %694, %693 : vector<8x32xf32>
    %696 = arith.divf %694, %695 : vector<8x32xf32>
    %697 = vector.extract_strided_slice %690 {offsets = [0, 32], sizes = [8, 32], strides = [1, 1]} : vector<8x128xf32> to vector<8x32xf32>
    %698 = arith.negf %697 : vector<8x32xf32>
    %699 = math.exp %698 : vector<8x32xf32>
    %cst_140 = arith.constant 1.000000e+00 : f32
    %700 = vector.broadcast %cst_140 : f32 to vector<8x32xf32>
    %701 = arith.addf %700, %699 : vector<8x32xf32>
    %702 = arith.divf %700, %701 : vector<8x32xf32>
    %703 = vector.extract_strided_slice %690 {offsets = [0, 64], sizes = [8, 32], strides = [1, 1]} : vector<8x128xf32> to vector<8x32xf32>
    %704 = math.tanh %703 : vector<8x32xf32>
    %705 = vector.extract_strided_slice %690 {offsets = [0, 96], sizes = [8, 32], strides = [1, 1]} : vector<8x128xf32> to vector<8x32xf32>
    %706 = arith.negf %705 : vector<8x32xf32>
    %707 = math.exp %706 : vector<8x32xf32>
    %cst_141 = arith.constant 1.000000e+00 : f32
    %708 = vector.broadcast %cst_141 : f32 to vector<8x32xf32>
    %709 = arith.addf %708, %707 : vector<8x32xf32>
    %710 = arith.divf %708, %709 : vector<8x32xf32>
    %711 = arith.mulf %702, %652 : vector<8x32xf32>
    %712 = arith.mulf %696, %704 : vector<8x32xf32>
    %713 = arith.addf %711, %712 : vector<8x32xf32>
    %714 = math.tanh %713 : vector<8x32xf32>
    %715 = arith.mulf %710, %714 : vector<8x32xf32>
    %716 = tpu.concatenate %715, %682 in 1 : vector<8x32xf32>, vector<8x32xf32> -> vector<8x64xf32>
    %cst_142 = arith.constant dense<0.000000e+00> : vector<8x128xf32>
    %717 = tpu.matmul %716, %9, %cst_142 {dimension_numbers = #tpu.dot_dimension_numbers<[1], [0], [0], [1], [0, 0, 1, 1], [], []>} : vector<8x64xf32>, vector<64x128xf32>, vector<8x128xf32> -> vector<8x128xf32>
    %718 = arith.addf %717, %12 : vector<8x128xf32>
    %719 = vector.extract_strided_slice %718 {offsets = [0, 0], sizes = [8, 32], strides = [1, 1]} : vector<8x128xf32> to vector<8x32xf32>
    %720 = arith.negf %719 : vector<8x32xf32>
    %721 = math.exp %720 : vector<8x32xf32>
    %cst_143 = arith.constant 1.000000e+00 : f32
    %722 = vector.broadcast %cst_143 : f32 to vector<8x32xf32>
    %723 = arith.addf %722, %721 : vector<8x32xf32>
    %724 = arith.divf %722, %723 : vector<8x32xf32>
    %725 = vector.extract_strided_slice %718 {offsets = [0, 32], sizes = [8, 32], strides = [1, 1]} : vector<8x128xf32> to vector<8x32xf32>
    %726 = arith.negf %725 : vector<8x32xf32>
    %727 = math.exp %726 : vector<8x32xf32>
    %cst_144 = arith.constant 1.000000e+00 : f32
    %728 = vector.broadcast %cst_144 : f32 to vector<8x32xf32>
    %729 = arith.addf %728, %727 : vector<8x32xf32>
    %730 = arith.divf %728, %729 : vector<8x32xf32>
    %731 = vector.extract_strided_slice %718 {offsets = [0, 64], sizes = [8, 32], strides = [1, 1]} : vector<8x128xf32> to vector<8x32xf32>
    %732 = math.tanh %731 : vector<8x32xf32>
    %733 = vector.extract_strided_slice %718 {offsets = [0, 96], sizes = [8, 32], strides = [1, 1]} : vector<8x128xf32> to vector<8x32xf32>
    %734 = arith.negf %733 : vector<8x32xf32>
    %735 = math.exp %734 : vector<8x32xf32>
    %cst_145 = arith.constant 1.000000e+00 : f32
    %736 = vector.broadcast %cst_145 : f32 to vector<8x32xf32>
    %737 = arith.addf %736, %735 : vector<8x32xf32>
    %738 = arith.divf %736, %737 : vector<8x32xf32>
    %739 = arith.mulf %730, %680 : vector<8x32xf32>
    %740 = arith.mulf %724, %732 : vector<8x32xf32>
    %741 = arith.addf %739, %740 : vector<8x32xf32>
    %742 = math.tanh %741 : vector<8x32xf32>
    %743 = arith.mulf %738, %742 : vector<8x32xf32>
    %744 = arith.index_cast %686 : i32 to index
    %c0_146 = arith.constant 0 : index
    %745 = vector.load %arg10[%744, %c0_146] : memref<128x32xf32, #tpu.memory_space<vmem>>, vector<8x32xf32>
    tpu.vector_store %arg10[%744, %c0_146], %743 {strides = array<i32>} : memref<128x32xf32, #tpu.memory_space<vmem>>, vector<8x32xf32>,
    %c12_i32 = arith.constant 12 : i32
    %c8_i32_147 = arith.constant 8 : i32
    %746 = arith.muli %c12_i32, %c8_i32_147 : i32
    %747 = tpu.assume_multiple %746, 8 : i32
    %748 = arith.index_cast %747 : i32 to index
    %c0_148 = arith.constant 0 : index
    %749 = vector.load %arg9[%748, %c0_148] : memref<128x128xf32, #tpu.memory_space<vmem>>, vector<8x128xf32>
    %cst_149 = arith.constant dense<0.000000e+00> : vector<8x128xf32>
    %750 = tpu.matmul %715, %8, %cst_149 {dimension_numbers = #tpu.dot_dimension_numbers<[1], [0], [0], [1], [0, 0, 1, 1], [], []>} : vector<8x32xf32>, vector<32x128xf32>, vector<8x128xf32> -> vector<8x128xf32>
    %751 = arith.addf %749, %750 : vector<8x128xf32>
    %752 = vector.extract_strided_slice %751 {offsets = [0, 0], sizes = [8, 32], strides = [1, 1]} : vector<8x128xf32> to vector<8x32xf32>
    %753 = arith.negf %752 : vector<8x32xf32>
    %754 = math.exp %753 : vector<8x32xf32>
    %cst_150 = arith.constant 1.000000e+00 : f32
    %755 = vector.broadcast %cst_150 : f32 to vector<8x32xf32>
    %756 = arith.addf %755, %754 : vector<8x32xf32>
    %757 = arith.divf %755, %756 : vector<8x32xf32>
    %758 = vector.extract_strided_slice %751 {offsets = [0, 32], sizes = [8, 32], strides = [1, 1]} : vector<8x128xf32> to vector<8x32xf32>
    %759 = arith.negf %758 : vector<8x32xf32>
    %760 = math.exp %759 : vector<8x32xf32>
    %cst_151 = arith.constant 1.000000e+00 : f32
    %761 = vector.broadcast %cst_151 : f32 to vector<8x32xf32>
    %762 = arith.addf %761, %760 : vector<8x32xf32>
    %763 = arith.divf %761, %762 : vector<8x32xf32>
    %764 = vector.extract_strided_slice %751 {offsets = [0, 64], sizes = [8, 32], strides = [1, 1]} : vector<8x128xf32> to vector<8x32xf32>
    %765 = math.tanh %764 : vector<8x32xf32>
    %766 = vector.extract_strided_slice %751 {offsets = [0, 96], sizes = [8, 32], strides = [1, 1]} : vector<8x128xf32> to vector<8x32xf32>
    %767 = arith.negf %766 : vector<8x32xf32>
    %768 = math.exp %767 : vector<8x32xf32>
    %cst_152 = arith.constant 1.000000e+00 : f32
    %769 = vector.broadcast %cst_152 : f32 to vector<8x32xf32>
    %770 = arith.addf %769, %768 : vector<8x32xf32>
    %771 = arith.divf %769, %770 : vector<8x32xf32>
    %772 = arith.mulf %763, %713 : vector<8x32xf32>
    %773 = arith.mulf %757, %765 : vector<8x32xf32>
    %774 = arith.addf %772, %773 : vector<8x32xf32>
    %775 = math.tanh %774 : vector<8x32xf32>
    %776 = arith.mulf %771, %775 : vector<8x32xf32>
    %777 = tpu.concatenate %776, %743 in 1 : vector<8x32xf32>, vector<8x32xf32> -> vector<8x64xf32>
    %cst_153 = arith.constant dense<0.000000e+00> : vector<8x128xf32>
    %778 = tpu.matmul %777, %9, %cst_153 {dimension_numbers = #tpu.dot_dimension_numbers<[1], [0], [0], [1], [0, 0, 1, 1], [], []>} : vector<8x64xf32>, vector<64x128xf32>, vector<8x128xf32> -> vector<8x128xf32>
    %779 = arith.addf %778, %12 : vector<8x128xf32>
    %780 = vector.extract_strided_slice %779 {offsets = [0, 0], sizes = [8, 32], strides = [1, 1]} : vector<8x128xf32> to vector<8x32xf32>
    %781 = arith.negf %780 : vector<8x32xf32>
    %782 = math.exp %781 : vector<8x32xf32>
    %cst_154 = arith.constant 1.000000e+00 : f32
    %783 = vector.broadcast %cst_154 : f32 to vector<8x32xf32>
    %784 = arith.addf %783, %782 : vector<8x32xf32>
    %785 = arith.divf %783, %784 : vector<8x32xf32>
    %786 = vector.extract_strided_slice %779 {offsets = [0, 32], sizes = [8, 32], strides = [1, 1]} : vector<8x128xf32> to vector<8x32xf32>
    %787 = arith.negf %786 : vector<8x32xf32>
    %788 = math.exp %787 : vector<8x32xf32>
    %cst_155 = arith.constant 1.000000e+00 : f32
    %789 = vector.broadcast %cst_155 : f32 to vector<8x32xf32>
    %790 = arith.addf %789, %788 : vector<8x32xf32>
    %791 = arith.divf %789, %790 : vector<8x32xf32>
    %792 = vector.extract_strided_slice %779 {offsets = [0, 64], sizes = [8, 32], strides = [1, 1]} : vector<8x128xf32> to vector<8x32xf32>
    %793 = math.tanh %792 : vector<8x32xf32>
    %794 = vector.extract_strided_slice %779 {offsets = [0, 96], sizes = [8, 32], strides = [1, 1]} : vector<8x128xf32> to vector<8x32xf32>
    %795 = arith.negf %794 : vector<8x32xf32>
    %796 = math.exp %795 : vector<8x32xf32>
    %cst_156 = arith.constant 1.000000e+00 : f32
    %797 = vector.broadcast %cst_156 : f32 to vector<8x32xf32>
    %798 = arith.addf %797, %796 : vector<8x32xf32>
    %799 = arith.divf %797, %798 : vector<8x32xf32>
    %800 = arith.mulf %791, %741 : vector<8x32xf32>
    %801 = arith.mulf %785, %793 : vector<8x32xf32>
    %802 = arith.addf %800, %801 : vector<8x32xf32>
    %803 = math.tanh %802 : vector<8x32xf32>
    %804 = arith.mulf %799, %803 : vector<8x32xf32>
    %805 = arith.index_cast %747 : i32 to index
    %c0_157 = arith.constant 0 : index
    %806 = vector.load %arg10[%805, %c0_157] : memref<128x32xf32, #tpu.memory_space<vmem>>, vector<8x32xf32>
    tpu.vector_store %arg10[%805, %c0_157], %804 {strides = array<i32>} : memref<128x32xf32, #tpu.memory_space<vmem>>, vector<8x32xf32>,
    %c13_i32 = arith.constant 13 : i32
    %c8_i32_158 = arith.constant 8 : i32
    %807 = arith.muli %c13_i32, %c8_i32_158 : i32
    %808 = tpu.assume_multiple %807, 8 : i32
    %809 = arith.index_cast %808 : i32 to index
    %c0_159 = arith.constant 0 : index
    %810 = vector.load %arg9[%809, %c0_159] : memref<128x128xf32, #tpu.memory_space<vmem>>, vector<8x128xf32>
    %cst_160 = arith.constant dense<0.000000e+00> : vector<8x128xf32>
    %811 = tpu.matmul %776, %8, %cst_160 {dimension_numbers = #tpu.dot_dimension_numbers<[1], [0], [0], [1], [0, 0, 1, 1], [], []>} : vector<8x32xf32>, vector<32x128xf32>, vector<8x128xf32> -> vector<8x128xf32>
    %812 = arith.addf %810, %811 : vector<8x128xf32>
    %813 = vector.extract_strided_slice %812 {offsets = [0, 0], sizes = [8, 32], strides = [1, 1]} : vector<8x128xf32> to vector<8x32xf32>
    %814 = arith.negf %813 : vector<8x32xf32>
    %815 = math.exp %814 : vector<8x32xf32>
    %cst_161 = arith.constant 1.000000e+00 : f32
    %816 = vector.broadcast %cst_161 : f32 to vector<8x32xf32>
    %817 = arith.addf %816, %815 : vector<8x32xf32>
    %818 = arith.divf %816, %817 : vector<8x32xf32>
    %819 = vector.extract_strided_slice %812 {offsets = [0, 32], sizes = [8, 32], strides = [1, 1]} : vector<8x128xf32> to vector<8x32xf32>
    %820 = arith.negf %819 : vector<8x32xf32>
    %821 = math.exp %820 : vector<8x32xf32>
    %cst_162 = arith.constant 1.000000e+00 : f32
    %822 = vector.broadcast %cst_162 : f32 to vector<8x32xf32>
    %823 = arith.addf %822, %821 : vector<8x32xf32>
    %824 = arith.divf %822, %823 : vector<8x32xf32>
    %825 = vector.extract_strided_slice %812 {offsets = [0, 64], sizes = [8, 32], strides = [1, 1]} : vector<8x128xf32> to vector<8x32xf32>
    %826 = math.tanh %825 : vector<8x32xf32>
    %827 = vector.extract_strided_slice %812 {offsets = [0, 96], sizes = [8, 32], strides = [1, 1]} : vector<8x128xf32> to vector<8x32xf32>
    %828 = arith.negf %827 : vector<8x32xf32>
    %829 = math.exp %828 : vector<8x32xf32>
    %cst_163 = arith.constant 1.000000e+00 : f32
    %830 = vector.broadcast %cst_163 : f32 to vector<8x32xf32>
    %831 = arith.addf %830, %829 : vector<8x32xf32>
    %832 = arith.divf %830, %831 : vector<8x32xf32>
    %833 = arith.mulf %824, %774 : vector<8x32xf32>
    %834 = arith.mulf %818, %826 : vector<8x32xf32>
    %835 = arith.addf %833, %834 : vector<8x32xf32>
    %836 = math.tanh %835 : vector<8x32xf32>
    %837 = arith.mulf %832, %836 : vector<8x32xf32>
    %838 = tpu.concatenate %837, %804 in 1 : vector<8x32xf32>, vector<8x32xf32> -> vector<8x64xf32>
    %cst_164 = arith.constant dense<0.000000e+00> : vector<8x128xf32>
    %839 = tpu.matmul %838, %9, %cst_164 {dimension_numbers = #tpu.dot_dimension_numbers<[1], [0], [0], [1], [0, 0, 1, 1], [], []>} : vector<8x64xf32>, vector<64x128xf32>, vector<8x128xf32> -> vector<8x128xf32>
    %840 = arith.addf %839, %12 : vector<8x128xf32>
    %841 = vector.extract_strided_slice %840 {offsets = [0, 0], sizes = [8, 32], strides = [1, 1]} : vector<8x128xf32> to vector<8x32xf32>
    %842 = arith.negf %841 : vector<8x32xf32>
    %843 = math.exp %842 : vector<8x32xf32>
    %cst_165 = arith.constant 1.000000e+00 : f32
    %844 = vector.broadcast %cst_165 : f32 to vector<8x32xf32>
    %845 = arith.addf %844, %843 : vector<8x32xf32>
    %846 = arith.divf %844, %845 : vector<8x32xf32>
    %847 = vector.extract_strided_slice %840 {offsets = [0, 32], sizes = [8, 32], strides = [1, 1]} : vector<8x128xf32> to vector<8x32xf32>
    %848 = arith.negf %847 : vector<8x32xf32>
    %849 = math.exp %848 : vector<8x32xf32>
    %cst_166 = arith.constant 1.000000e+00 : f32
    %850 = vector.broadcast %cst_166 : f32 to vector<8x32xf32>
    %851 = arith.addf %850, %849 : vector<8x32xf32>
    %852 = arith.divf %850, %851 : vector<8x32xf32>
    %853 = vector.extract_strided_slice %840 {offsets = [0, 64], sizes = [8, 32], strides = [1, 1]} : vector<8x128xf32> to vector<8x32xf32>
    %854 = math.tanh %853 : vector<8x32xf32>
    %855 = vector.extract_strided_slice %840 {offsets = [0, 96], sizes = [8, 32], strides = [1, 1]} : vector<8x128xf32> to vector<8x32xf32>
    %856 = arith.negf %855 : vector<8x32xf32>
    %857 = math.exp %856 : vector<8x32xf32>
    %cst_167 = arith.constant 1.000000e+00 : f32
    %858 = vector.broadcast %cst_167 : f32 to vector<8x32xf32>
    %859 = arith.addf %858, %857 : vector<8x32xf32>
    %860 = arith.divf %858, %859 : vector<8x32xf32>
    %861 = arith.mulf %852, %802 : vector<8x32xf32>
    %862 = arith.mulf %846, %854 : vector<8x32xf32>
    %863 = arith.addf %861, %862 : vector<8x32xf32>
    %864 = math.tanh %863 : vector<8x32xf32>
    %865 = arith.mulf %860, %864 : vector<8x32xf32>
    %866 = arith.index_cast %808 : i32 to index
    %c0_168 = arith.constant 0 : index
    %867 = vector.load %arg10[%866, %c0_168] : memref<128x32xf32, #tpu.memory_space<vmem>>, vector<8x32xf32>
    tpu.vector_store %arg10[%866, %c0_168], %865 {strides = array<i32>} : memref<128x32xf32, #tpu.memory_space<vmem>>, vector<8x32xf32>,
    %c14_i32 = arith.constant 14 : i32
    %c8_i32_169 = arith.constant 8 : i32
    %868 = arith.muli %c14_i32, %c8_i32_169 : i32
    %869 = tpu.assume_multiple %868, 8 : i32
    %870 = arith.index_cast %869 : i32 to index
    %c0_170 = arith.constant 0 : index
    %871 = vector.load %arg9[%870, %c0_170] : memref<128x128xf32, #tpu.memory_space<vmem>>, vector<8x128xf32>
    %cst_171 = arith.constant dense<0.000000e+00> : vector<8x128xf32>
    %872 = tpu.matmul %837, %8, %cst_171 {dimension_numbers = #tpu.dot_dimension_numbers<[1], [0], [0], [1], [0, 0, 1, 1], [], []>} : vector<8x32xf32>, vector<32x128xf32>, vector<8x128xf32> -> vector<8x128xf32>
    %873 = arith.addf %871, %872 : vector<8x128xf32>
    %874 = vector.extract_strided_slice %873 {offsets = [0, 0], sizes = [8, 32], strides = [1, 1]} : vector<8x128xf32> to vector<8x32xf32>
    %875 = arith.negf %874 : vector<8x32xf32>
    %876 = math.exp %875 : vector<8x32xf32>
    %cst_172 = arith.constant 1.000000e+00 : f32
    %877 = vector.broadcast %cst_172 : f32 to vector<8x32xf32>
    %878 = arith.addf %877, %876 : vector<8x32xf32>
    %879 = arith.divf %877, %878 : vector<8x32xf32>
    %880 = vector.extract_strided_slice %873 {offsets = [0, 32], sizes = [8, 32], strides = [1, 1]} : vector<8x128xf32> to vector<8x32xf32>
    %881 = arith.negf %880 : vector<8x32xf32>
    %882 = math.exp %881 : vector<8x32xf32>
    %cst_173 = arith.constant 1.000000e+00 : f32
    %883 = vector.broadcast %cst_173 : f32 to vector<8x32xf32>
    %884 = arith.addf %883, %882 : vector<8x32xf32>
    %885 = arith.divf %883, %884 : vector<8x32xf32>
    %886 = vector.extract_strided_slice %873 {offsets = [0, 64], sizes = [8, 32], strides = [1, 1]} : vector<8x128xf32> to vector<8x32xf32>
    %887 = math.tanh %886 : vector<8x32xf32>
    %888 = vector.extract_strided_slice %873 {offsets = [0, 96], sizes = [8, 32], strides = [1, 1]} : vector<8x128xf32> to vector<8x32xf32>
    %889 = arith.negf %888 : vector<8x32xf32>
    %890 = math.exp %889 : vector<8x32xf32>
    %cst_174 = arith.constant 1.000000e+00 : f32
    %891 = vector.broadcast %cst_174 : f32 to vector<8x32xf32>
    %892 = arith.addf %891, %890 : vector<8x32xf32>
    %893 = arith.divf %891, %892 : vector<8x32xf32>
    %894 = arith.mulf %885, %835 : vector<8x32xf32>
    %895 = arith.mulf %879, %887 : vector<8x32xf32>
    %896 = arith.addf %894, %895 : vector<8x32xf32>
    %897 = math.tanh %896 : vector<8x32xf32>
    %898 = arith.mulf %893, %897 : vector<8x32xf32>
    %899 = tpu.concatenate %898, %865 in 1 : vector<8x32xf32>, vector<8x32xf32> -> vector<8x64xf32>
    %cst_175 = arith.constant dense<0.000000e+00> : vector<8x128xf32>
    %900 = tpu.matmul %899, %9, %cst_175 {dimension_numbers = #tpu.dot_dimension_numbers<[1], [0], [0], [1], [0, 0, 1, 1], [], []>} : vector<8x64xf32>, vector<64x128xf32>, vector<8x128xf32> -> vector<8x128xf32>
    %901 = arith.addf %900, %12 : vector<8x128xf32>
    %902 = vector.extract_strided_slice %901 {offsets = [0, 0], sizes = [8, 32], strides = [1, 1]} : vector<8x128xf32> to vector<8x32xf32>
    %903 = arith.negf %902 : vector<8x32xf32>
    %904 = math.exp %903 : vector<8x32xf32>
    %cst_176 = arith.constant 1.000000e+00 : f32
    %905 = vector.broadcast %cst_176 : f32 to vector<8x32xf32>
    %906 = arith.addf %905, %904 : vector<8x32xf32>
    %907 = arith.divf %905, %906 : vector<8x32xf32>
    %908 = vector.extract_strided_slice %901 {offsets = [0, 32], sizes = [8, 32], strides = [1, 1]} : vector<8x128xf32> to vector<8x32xf32>
    %909 = arith.negf %908 : vector<8x32xf32>
    %910 = math.exp %909 : vector<8x32xf32>
    %cst_177 = arith.constant 1.000000e+00 : f32
    %911 = vector.broadcast %cst_177 : f32 to vector<8x32xf32>
    %912 = arith.addf %911, %910 : vector<8x32xf32>
    %913 = arith.divf %911, %912 : vector<8x32xf32>
    %914 = vector.extract_strided_slice %901 {offsets = [0, 64], sizes = [8, 32], strides = [1, 1]} : vector<8x128xf32> to vector<8x32xf32>
    %915 = math.tanh %914 : vector<8x32xf32>
    %916 = vector.extract_strided_slice %901 {offsets = [0, 96], sizes = [8, 32], strides = [1, 1]} : vector<8x128xf32> to vector<8x32xf32>
    %917 = arith.negf %916 : vector<8x32xf32>
    %918 = math.exp %917 : vector<8x32xf32>
    %cst_178 = arith.constant 1.000000e+00 : f32
    %919 = vector.broadcast %cst_178 : f32 to vector<8x32xf32>
    %920 = arith.addf %919, %918 : vector<8x32xf32>
    %921 = arith.divf %919, %920 : vector<8x32xf32>
    %922 = arith.mulf %913, %863 : vector<8x32xf32>
    %923 = arith.mulf %907, %915 : vector<8x32xf32>
    %924 = arith.addf %922, %923 : vector<8x32xf32>
    %925 = math.tanh %924 : vector<8x32xf32>
    %926 = arith.mulf %921, %925 : vector<8x32xf32>
    %927 = arith.index_cast %869 : i32 to index
    %c0_179 = arith.constant 0 : index
    %928 = vector.load %arg10[%927, %c0_179] : memref<128x32xf32, #tpu.memory_space<vmem>>, vector<8x32xf32>
    tpu.vector_store %arg10[%927, %c0_179], %926 {strides = array<i32>} : memref<128x32xf32, #tpu.memory_space<vmem>>, vector<8x32xf32>,
    %c15_i32 = arith.constant 15 : i32
    %c8_i32_180 = arith.constant 8 : i32
    %929 = arith.muli %c15_i32, %c8_i32_180 : i32
    %930 = tpu.assume_multiple %929, 8 : i32
    %931 = arith.index_cast %930 : i32 to index
    %c0_181 = arith.constant 0 : index
    %932 = vector.load %arg9[%931, %c0_181] : memref<128x128xf32, #tpu.memory_space<vmem>>, vector<8x128xf32>
    %cst_182 = arith.constant dense<0.000000e+00> : vector<8x128xf32>
    %933 = tpu.matmul %898, %8, %cst_182 {dimension_numbers = #tpu.dot_dimension_numbers<[1], [0], [0], [1], [0, 0, 1, 1], [], []>} : vector<8x32xf32>, vector<32x128xf32>, vector<8x128xf32> -> vector<8x128xf32>
    %934 = arith.addf %932, %933 : vector<8x128xf32>
    %935 = vector.extract_strided_slice %934 {offsets = [0, 0], sizes = [8, 32], strides = [1, 1]} : vector<8x128xf32> to vector<8x32xf32>
    %936 = arith.negf %935 : vector<8x32xf32>
    %937 = math.exp %936 : vector<8x32xf32>
    %cst_183 = arith.constant 1.000000e+00 : f32
    %938 = vector.broadcast %cst_183 : f32 to vector<8x32xf32>
    %939 = arith.addf %938, %937 : vector<8x32xf32>
    %940 = arith.divf %938, %939 : vector<8x32xf32>
    %941 = vector.extract_strided_slice %934 {offsets = [0, 32], sizes = [8, 32], strides = [1, 1]} : vector<8x128xf32> to vector<8x32xf32>
    %942 = arith.negf %941 : vector<8x32xf32>
    %943 = math.exp %942 : vector<8x32xf32>
    %cst_184 = arith.constant 1.000000e+00 : f32
    %944 = vector.broadcast %cst_184 : f32 to vector<8x32xf32>
    %945 = arith.addf %944, %943 : vector<8x32xf32>
    %946 = arith.divf %944, %945 : vector<8x32xf32>
    %947 = vector.extract_strided_slice %934 {offsets = [0, 64], sizes = [8, 32], strides = [1, 1]} : vector<8x128xf32> to vector<8x32xf32>
    %948 = math.tanh %947 : vector<8x32xf32>
    %949 = vector.extract_strided_slice %934 {offsets = [0, 96], sizes = [8, 32], strides = [1, 1]} : vector<8x128xf32> to vector<8x32xf32>
    %950 = arith.negf %949 : vector<8x32xf32>
    %951 = math.exp %950 : vector<8x32xf32>
    %cst_185 = arith.constant 1.000000e+00 : f32
    %952 = vector.broadcast %cst_185 : f32 to vector<8x32xf32>
    %953 = arith.addf %952, %951 : vector<8x32xf32>
    %954 = arith.divf %952, %953 : vector<8x32xf32>
    %955 = arith.mulf %946, %896 : vector<8x32xf32>
    %956 = arith.mulf %940, %948 : vector<8x32xf32>
    %957 = arith.addf %955, %956 : vector<8x32xf32>
    %958 = math.tanh %957 : vector<8x32xf32>
    %959 = arith.mulf %954, %958 : vector<8x32xf32>
    %960 = tpu.concatenate %959, %926 in 1 : vector<8x32xf32>, vector<8x32xf32> -> vector<8x64xf32>
    %cst_186 = arith.constant dense<0.000000e+00> : vector<8x128xf32>
    %961 = tpu.matmul %960, %9, %cst_186 {dimension_numbers = #tpu.dot_dimension_numbers<[1], [0], [0], [1], [0, 0, 1, 1], [], []>} : vector<8x64xf32>, vector<64x128xf32>, vector<8x128xf32> -> vector<8x128xf32>
    %962 = arith.addf %961, %12 : vector<8x128xf32>
    %963 = vector.extract_strided_slice %962 {offsets = [0, 0], sizes = [8, 32], strides = [1, 1]} : vector<8x128xf32> to vector<8x32xf32>
    %964 = arith.negf %963 : vector<8x32xf32>
    %965 = math.exp %964 : vector<8x32xf32>
    %cst_187 = arith.constant 1.000000e+00 : f32
    %966 = vector.broadcast %cst_187 : f32 to vector<8x32xf32>
    %967 = arith.addf %966, %965 : vector<8x32xf32>
    %968 = arith.divf %966, %967 : vector<8x32xf32>
    %969 = vector.extract_strided_slice %962 {offsets = [0, 32], sizes = [8, 32], strides = [1, 1]} : vector<8x128xf32> to vector<8x32xf32>
    %970 = arith.negf %969 : vector<8x32xf32>
    %971 = math.exp %970 : vector<8x32xf32>
    %cst_188 = arith.constant 1.000000e+00 : f32
    %972 = vector.broadcast %cst_188 : f32 to vector<8x32xf32>
    %973 = arith.addf %972, %971 : vector<8x32xf32>
    %974 = arith.divf %972, %973 : vector<8x32xf32>
    %975 = vector.extract_strided_slice %962 {offsets = [0, 64], sizes = [8, 32], strides = [1, 1]} : vector<8x128xf32> to vector<8x32xf32>
    %976 = math.tanh %975 : vector<8x32xf32>
    %977 = vector.extract_strided_slice %962 {offsets = [0, 96], sizes = [8, 32], strides = [1, 1]} : vector<8x128xf32> to vector<8x32xf32>
    %978 = arith.negf %977 : vector<8x32xf32>
    %979 = math.exp %978 : vector<8x32xf32>
    %cst_189 = arith.constant 1.000000e+00 : f32
    %980 = vector.broadcast %cst_189 : f32 to vector<8x32xf32>
    %981 = arith.addf %980, %979 : vector<8x32xf32>
    %982 = arith.divf %980, %981 : vector<8x32xf32>
    %983 = arith.mulf %974, %924 : vector<8x32xf32>
    %984 = arith.mulf %968, %976 : vector<8x32xf32>
    %985 = arith.addf %983, %984 : vector<8x32xf32>
    %986 = math.tanh %985 : vector<8x32xf32>
    %987 = arith.mulf %982, %986 : vector<8x32xf32>
    %988 = arith.index_cast %930 : i32 to index
    %c0_190 = arith.constant 0 : index
    %989 = vector.load %arg10[%988, %c0_190] : memref<128x32xf32, #tpu.memory_space<vmem>>, vector<8x32xf32>
    tpu.vector_store %arg10[%988, %c0_190], %987 {strides = array<i32>} : memref<128x32xf32, #tpu.memory_space<vmem>>, vector<8x32xf32>,
    %c16_i32 = arith.constant 16 : i32
    %c0_191 = arith.constant 0 : index
    %c0_192 = arith.constant 0 : index
    %990 = vector.load %arg10[%c0_191, %c0_192] : memref<128x32xf32, #tpu.memory_space<vmem>>, vector<128x32xf32>
    %cst_193 = arith.constant dense<0xFF800000> : vector<128xf32>
    %991 = vector.multi_reduction <maximumf>, %990, %cst_193 [1] : vector<128x32xf32> to vector<128xf32>
    %992 = vector.shape_cast %991 : vector<128xf32> to vector<128x1xf32>
    %993 = vector.broadcast %992 : vector<128x1xf32> to vector<128x32xf32>
    %994 = arith.subf %990, %993 : vector<128x32xf32>
    %995 = math.exp %994 : vector<128x32xf32>
    %cst_194 = arith.constant dense<0.000000e+00> : vector<128xf32>
    %996 = vector.multi_reduction <add>, %995, %cst_194 [1] : vector<128x32xf32> to vector<128xf32>
    %997 = vector.shape_cast %996 : vector<128xf32> to vector<128x1xf32>
    %998 = vector.broadcast %997 : vector<128x1xf32> to vector<128x32xf32>
    %999 = arith.divf %995, %998 : vector<128x32xf32>
    %c0_195 = arith.constant 0 : index
    %c0_196 = arith.constant 0 : index
    %1000 = vector.load %arg10[%c0_195, %c0_196] : memref<128x32xf32, #tpu.memory_space<vmem>>, vector<128x32xf32>
    tpu.vector_store %arg10[%c0_195, %c0_196], %999 {strides = array<i32>} : memref<128x32xf32, #tpu.memory_space<vmem>>, vector<128x32xf32>,
    %c0_197 = arith.constant 0 : index
    %c0_198 = arith.constant 0 : index
    %1001 = tpu.strided_load %arg10[%c0_197, %c0_198] {strides = array<i32: 8, 1>} : memref<128x32xf32, #tpu.memory_space<vmem>>, vector<16x32xf32>
    %c0_199 = arith.constant 0 : index
    %c0_200 = arith.constant 0 : index
    %c0_201 = arith.constant 0 : index
    %1002 = vector.load %arg2[%c0_199, %c0_200, %c0_201] : memref<8x8x16xf32, #tpu.memory_space<vmem>>, vector<1x8x16xf32>
    %1003 = vector.shape_cast %1002 : vector<1x8x16xf32> to vector<8x16xf32>
    %cst_202 = arith.constant dense<0.000000e+00> : vector<8x32xf32>
    %1004 = tpu.matmul %1003, %1001, %cst_202 {dimension_numbers = #tpu.dot_dimension_numbers<[1], [0], [0], [1], [0, 0, 1, 1], [], []>} : vector<8x16xf32>, vector<16x32xf32>, vector<8x32xf32> -> vector<8x32xf32>
    %c0_203 = arith.constant 0 : index
    %c0_204 = arith.constant 0 : index
    %c0_205 = arith.constant 0 : index
    %1005 = vector.load %arg8[%c0_203, %c0_204, %c0_205] : memref<8x8x32xf32, #tpu.memory_space<vmem>>, vector<1x8x32xf32>
    %1006 = vector.shape_cast %1005 : vector<1x8x32xf32> to vector<8x32xf32>
    %1007 = vector.shape_cast %1004 : vector<8x32xf32> to vector<1x8x32xf32>
    tpu.vector_store %arg8[%c0_203, %c0_204, %c0_205], %1007 {strides = array<i32>} : memref<8x8x32xf32, #tpu.memory_space<vmem>>, vector<1x8x32xf32>,
    %c1 = arith.constant 1 : index
    %c0_206 = arith.constant 0 : index
    %1008 = tpu.strided_load %arg10[%c1, %c0_206] {strides = array<i32: 8, 1>} : memref<128x32xf32, #tpu.memory_space<vmem>>, vector<16x32xf32>
    %c1_207 = arith.constant 1 : index
    %c0_208 = arith.constant 0 : index
    %c0_209 = arith.constant 0 : index
    %1009 = vector.load %arg2[%c1_207, %c0_208, %c0_209] : memref<8x8x16xf32, #tpu.memory_space<vmem>>, vector<1x8x16xf32>
    %1010 = vector.shape_cast %1009 : vector<1x8x16xf32> to vector<8x16xf32>
    %cst_210 = arith.constant dense<0.000000e+00> : vector<8x32xf32>
    %1011 = tpu.matmul %1010, %1008, %cst_210 {dimension_numbers = #tpu.dot_dimension_numbers<[1], [0], [0], [1], [0, 0, 1, 1], [], []>} : vector<8x16xf32>, vector<16x32xf32>, vector<8x32xf32> -> vector<8x32xf32>
    %c1_211 = arith.constant 1 : index
    %c0_212 = arith.constant 0 : index
    %c0_213 = arith.constant 0 : index
    %1012 = vector.load %arg8[%c1_211, %c0_212, %c0_213] : memref<8x8x32xf32, #tpu.memory_space<vmem>>, vector<1x8x32xf32>
    %1013 = vector.shape_cast %1012 : vector<1x8x32xf32> to vector<8x32xf32>
    %1014 = vector.shape_cast %1011 : vector<8x32xf32> to vector<1x8x32xf32>
    tpu.vector_store %arg8[%c1_211, %c0_212, %c0_213], %1014 {strides = array<i32>} : memref<8x8x32xf32, #tpu.memory_space<vmem>>, vector<1x8x32xf32>,
    %c2 = arith.constant 2 : index
    %c0_214 = arith.constant 0 : index
    %1015 = tpu.strided_load %arg10[%c2, %c0_214] {strides = array<i32: 8, 1>} : memref<128x32xf32, #tpu.memory_space<vmem>>, vector<16x32xf32>
    %c2_215 = arith.constant 2 : index
    %c0_216 = arith.constant 0 : index
    %c0_217 = arith.constant 0 : index
    %1016 = vector.load %arg2[%c2_215, %c0_216, %c0_217] : memref<8x8x16xf32, #tpu.memory_space<vmem>>, vector<1x8x16xf32>
    %1017 = vector.shape_cast %1016 : vector<1x8x16xf32> to vector<8x16xf32>
    %cst_218 = arith.constant dense<0.000000e+00> : vector<8x32xf32>
    %1018 = tpu.matmul %1017, %1015, %cst_218 {dimension_numbers = #tpu.dot_dimension_numbers<[1], [0], [0], [1], [0, 0, 1, 1], [], []>} : vector<8x16xf32>, vector<16x32xf32>, vector<8x32xf32> -> vector<8x32xf32>
    %c2_219 = arith.constant 2 : index
    %c0_220 = arith.constant 0 : index
    %c0_221 = arith.constant 0 : index
    %1019 = vector.load %arg8[%c2_219, %c0_220, %c0_221] : memref<8x8x32xf32, #tpu.memory_space<vmem>>, vector<1x8x32xf32>
    %1020 = vector.shape_cast %1019 : vector<1x8x32xf32> to vector<8x32xf32>
    %1021 = vector.shape_cast %1018 : vector<8x32xf32> to vector<1x8x32xf32>
    tpu.vector_store %arg8[%c2_219, %c0_220, %c0_221], %1021 {strides = array<i32>} : memref<8x8x32xf32, #tpu.memory_space<vmem>>, vector<1x8x32xf32>,
    %c3 = arith.constant 3 : index
    %c0_222 = arith.constant 0 : index
    %1022 = tpu.strided_load %arg10[%c3, %c0_222] {strides = array<i32: 8, 1>} : memref<128x32xf32, #tpu.memory_space<vmem>>, vector<16x32xf32>
    %c3_223 = arith.constant 3 : index
    %c0_224 = arith.constant 0 : index
    %c0_225 = arith.constant 0 : index
    %1023 = vector.load %arg2[%c3_223, %c0_224, %c0_225] : memref<8x8x16xf32, #tpu.memory_space<vmem>>, vector<1x8x16xf32>
    %1024 = vector.shape_cast %1023 : vector<1x8x16xf32> to vector<8x16xf32>
    %cst_226 = arith.constant dense<0.000000e+00> : vector<8x32xf32>
    %1025 = tpu.matmul %1024, %1022, %cst_226 {dimension_numbers = #tpu.dot_dimension_numbers<[1], [0], [0], [1], [0, 0, 1, 1], [], []>} : vector<8x16xf32>, vector<16x32xf32>, vector<8x32xf32> -> vector<8x32xf32>
    %c3_227 = arith.constant 3 : index
    %c0_228 = arith.constant 0 : index
    %c0_229 = arith.constant 0 : index
    %1026 = vector.load %arg8[%c3_227, %c0_228, %c0_229] : memref<8x8x32xf32, #tpu.memory_space<vmem>>, vector<1x8x32xf32>
    %1027 = vector.shape_cast %1026 : vector<1x8x32xf32> to vector<8x32xf32>
    %1028 = vector.shape_cast %1025 : vector<8x32xf32> to vector<1x8x32xf32>
    tpu.vector_store %arg8[%c3_227, %c0_228, %c0_229], %1028 {strides = array<i32>} : memref<8x8x32xf32, #tpu.memory_space<vmem>>, vector<1x8x32xf32>,
    %c4 = arith.constant 4 : index
    %c0_230 = arith.constant 0 : index
    %1029 = tpu.strided_load %arg10[%c4, %c0_230] {strides = array<i32: 8, 1>} : memref<128x32xf32, #tpu.memory_space<vmem>>, vector<16x32xf32>
    %c4_231 = arith.constant 4 : index
    %c0_232 = arith.constant 0 : index
    %c0_233 = arith.constant 0 : index
    %1030 = vector.load %arg2[%c4_231, %c0_232, %c0_233] : memref<8x8x16xf32, #tpu.memory_space<vmem>>, vector<1x8x16xf32>
    %1031 = vector.shape_cast %1030 : vector<1x8x16xf32> to vector<8x16xf32>
    %cst_234 = arith.constant dense<0.000000e+00> : vector<8x32xf32>
    %1032 = tpu.matmul %1031, %1029, %cst_234 {dimension_numbers = #tpu.dot_dimension_numbers<[1], [0], [0], [1], [0, 0, 1, 1], [], []>} : vector<8x16xf32>, vector<16x32xf32>, vector<8x32xf32> -> vector<8x32xf32>
    %c4_235 = arith.constant 4 : index
    %c0_236 = arith.constant 0 : index
    %c0_237 = arith.constant 0 : index
    %1033 = vector.load %arg8[%c4_235, %c0_236, %c0_237] : memref<8x8x32xf32, #tpu.memory_space<vmem>>, vector<1x8x32xf32>
    %1034 = vector.shape_cast %1033 : vector<1x8x32xf32> to vector<8x32xf32>
    %1035 = vector.shape_cast %1032 : vector<8x32xf32> to vector<1x8x32xf32>
    tpu.vector_store %arg8[%c4_235, %c0_236, %c0_237], %1035 {strides = array<i32>} : memref<8x8x32xf32, #tpu.memory_space<vmem>>, vector<1x8x32xf32>,
    %c5 = arith.constant 5 : index
    %c0_238 = arith.constant 0 : index
    %1036 = tpu.strided_load %arg10[%c5, %c0_238] {strides = array<i32: 8, 1>} : memref<128x32xf32, #tpu.memory_space<vmem>>, vector<16x32xf32>
    %c5_239 = arith.constant 5 : index
    %c0_240 = arith.constant 0 : index
    %c0_241 = arith.constant 0 : index
    %1037 = vector.load %arg2[%c5_239, %c0_240, %c0_241] : memref<8x8x16xf32, #tpu.memory_space<vmem>>, vector<1x8x16xf32>
    %1038 = vector.shape_cast %1037 : vector<1x8x16xf32> to vector<8x16xf32>
    %cst_242 = arith.constant dense<0.000000e+00> : vector<8x32xf32>
    %1039 = tpu.matmul %1038, %1036, %cst_242 {dimension_numbers = #tpu.dot_dimension_numbers<[1], [0], [0], [1], [0, 0, 1, 1], [], []>} : vector<8x16xf32>, vector<16x32xf32>, vector<8x32xf32> -> vector<8x32xf32>
    %c5_243 = arith.constant 5 : index
    %c0_244 = arith.constant 0 : index
    %c0_245 = arith.constant 0 : index
    %1040 = vector.load %arg8[%c5_243, %c0_244, %c0_245] : memref<8x8x32xf32, #tpu.memory_space<vmem>>, vector<1x8x32xf32>
    %1041 = vector.shape_cast %1040 : vector<1x8x32xf32> to vector<8x32xf32>
    %1042 = vector.shape_cast %1039 : vector<8x32xf32> to vector<1x8x32xf32>
    tpu.vector_store %arg8[%c5_243, %c0_244, %c0_245], %1042 {strides = array<i32>} : memref<8x8x32xf32, #tpu.memory_space<vmem>>, vector<1x8x32xf32>,
    %c6 = arith.constant 6 : index
    %c0_246 = arith.constant 0 : index
    %1043 = tpu.strided_load %arg10[%c6, %c0_246] {strides = array<i32: 8, 1>} : memref<128x32xf32, #tpu.memory_space<vmem>>, vector<16x32xf32>
    %c6_247 = arith.constant 6 : index
    %c0_248 = arith.constant 0 : index
    %c0_249 = arith.constant 0 : index
    %1044 = vector.load %arg2[%c6_247, %c0_248, %c0_249] : memref<8x8x16xf32, #tpu.memory_space<vmem>>, vector<1x8x16xf32>
    %1045 = vector.shape_cast %1044 : vector<1x8x16xf32> to vector<8x16xf32>
    %cst_250 = arith.constant dense<0.000000e+00> : vector<8x32xf32>
    %1046 = tpu.matmul %1045, %1043, %cst_250 {dimension_numbers = #tpu.dot_dimension_numbers<[1], [0], [0], [1], [0, 0, 1, 1], [], []>} : vector<8x16xf32>, vector<16x32xf32>, vector<8x32xf32> -> vector<8x32xf32>
    %c6_251 = arith.constant 6 : index
    %c0_252 = arith.constant 0 : index
    %c0_253 = arith.constant 0 : index
    %1047 = vector.load %arg8[%c6_251, %c0_252, %c0_253] : memref<8x8x32xf32, #tpu.memory_space<vmem>>, vector<1x8x32xf32>
    %1048 = vector.shape_cast %1047 : vector<1x8x32xf32> to vector<8x32xf32>
    %1049 = vector.shape_cast %1046 : vector<8x32xf32> to vector<1x8x32xf32>
    tpu.vector_store %arg8[%c6_251, %c0_252, %c0_253], %1049 {strides = array<i32>} : memref<8x8x32xf32, #tpu.memory_space<vmem>>, vector<1x8x32xf32>,
    %c7 = arith.constant 7 : index
    %c0_254 = arith.constant 0 : index
    %1050 = tpu.strided_load %arg10[%c7, %c0_254] {strides = array<i32: 8, 1>} : memref<128x32xf32, #tpu.memory_space<vmem>>, vector<16x32xf32>
    %c7_255 = arith.constant 7 : index
    %c0_256 = arith.constant 0 : index
    %c0_257 = arith.constant 0 : index
    %1051 = vector.load %arg2[%c7_255, %c0_256, %c0_257] : memref<8x8x16xf32, #tpu.memory_space<vmem>>, vector<1x8x16xf32>
    %1052 = vector.shape_cast %1051 : vector<1x8x16xf32> to vector<8x16xf32>
    %cst_258 = arith.constant dense<0.000000e+00> : vector<8x32xf32>
    %1053 = tpu.matmul %1052, %1050, %cst_258 {dimension_numbers = #tpu.dot_dimension_numbers<[1], [0], [0], [1], [0, 0, 1, 1], [], []>} : vector<8x16xf32>, vector<16x32xf32>, vector<8x32xf32> -> vector<8x32xf32>
    %c7_259 = arith.constant 7 : index
    %c0_260 = arith.constant 0 : index
    %c0_261 = arith.constant 0 : index
    %1054 = vector.load %arg8[%c7_259, %c0_260, %c0_261] : memref<8x8x32xf32, #tpu.memory_space<vmem>>, vector<1x8x32xf32>
    %1055 = vector.shape_cast %1054 : vector<1x8x32xf32> to vector<8x32xf32>
    %1056 = vector.shape_cast %1053 : vector<8x32xf32> to vector<1x8x32xf32>
    tpu.vector_store %arg8[%c7_259, %c0_260, %c0_261], %1056 {strides = array<i32>} : memref<8x8x32xf32, #tpu.memory_space<vmem>>, vector<1x8x32xf32>,
    return
  }
  func.func @transform_0(%arg0: i32) -> (i32, i32, i32) {
    %c0_i32 = arith.constant 0 : i32
    %c0_i32_0 = arith.constant 0 : i32
    %c0_i32_1 = arith.constant 0 : i32
    return %c0_i32, %arg0, %c0_i32_0 : i32, i32, i32
  }
  func.func @transform_1(%arg0: i32) -> (i32, i32, i32) {
    %c0_i32 = arith.constant 0 : i32
    %c0_i32_0 = arith.constant 0 : i32
    %c0_i32_1 = arith.constant 0 : i32
    return %arg0, %c0_i32, %c0_i32_0 : i32, i32, i32
  }
  func.func @transform_2(%arg0: i32) -> (i32, i32) {
    %c0_i32 = arith.constant 0 : i32
    %c0_i32_0 = arith.constant 0 : i32
    %c0_i32_1 = arith.constant 0 : i32
    return %c0_i32, %c0_i32_0 : i32, i32
  }
  func.func @transform_3(%arg0: i32) -> (i32, i32) {
    %c0_i32 = arith.constant 0 : i32
    %c0_i32_0 = arith.constant 0 : i32
    %c0_i32_1 = arith.constant 0 : i32
    return %c0_i32, %c0_i32_0 : i32, i32
  }
  func.func @transform_4(%arg0: i32) -> (i32, i32) {
    %c0_i32 = arith.constant 0 : i32
    %c0_i32_0 = arith.constant 0 : i32
    %c0_i32_1 = arith.constant 0 : i32
    return %c0_i32, %c0_i32_0 : i32, i32
  }
  func.func @transform_5(%arg0: i32) -> (i32, i32) {
    %c0_i32 = arith.constant 0 : i32
    %c0_i32_0 = arith.constant 0 : i32
    %c0_i32_1 = arith.constant 0 : i32
    return %c0_i32, %c0_i32_0 : i32, i32
  }
  func.func @transform_6(%arg0: i32) -> (i32, i32) {
    %c0_i32 = arith.constant 0 : i32
    %c0_i32_0 = arith.constant 0 : i32
    %c0_i32_1 = arith.constant 0 : i32
    return %c0_i32, %c0_i32_0 : i32, i32
  }
  func.func @transform_7(%arg0: i32) -> (i32, i32, i32) {
    %c0_i32 = arith.constant 0 : i32
    %c0_i32_0 = arith.constant 0 : i32
    %c0_i32_1 = arith.constant 0 : i32
    return %arg0, %c0_i32, %c0_i32_0 : i32, i32, i32
  }
}

</mosaic_0001>

<llo_original>
// kernel: tpu_custom_call.1
$region0: #{tpu_custom_call.1}
  #allocation0 [shape = 'u32[]', space=smem, size = 0x4, offset = 0x4, fixed_abs, tag = 'smem constant byte address 0x4 - core index']
  #allocation1 [shape = 'u32[144,128]{1,0:T(1,128)}', space=vmem, size = 0x12000, scoped, tag = 'internal scratch']
  #allocation2 [shape = 'f32[128,128]{1,0:T(8,128)}', space=vmem, size = 0x10000, scoped, tag = 'scratch operand']
  #allocation3 [shape = 'f32[128,32]{1,0:T(8,128)}', space=vmem, size = 0x10000, scoped, tag = 'scratch operand']
  %s0 = inlined_call_operand.vmem [shape: f32[16,8,8], index: 0, kind: input, shape index: {}]
  %s1 = inlined_call_operand.vmem [shape: f32[8,8,16], index: 1, kind: input, shape index: {}]
  %s2 = inlined_call_operand.vmem [shape: f32[8,128], index: 2, kind: input, shape index: {}]
  %s3 = inlined_call_operand.vmem [shape: f32[32,128], index: 3, kind: input, shape index: {}]
  %s4 = inlined_call_operand.vmem [shape: f32[1,128], index: 4, kind: input, shape index: {}]
  %s5 = inlined_call_operand.vmem [shape: f32[64,128], index: 5, kind: input, shape index: {}]
  %s6 = inlined_call_operand.vmem [shape: f32[1,128], index: 6, kind: input, shape index: {}]
  %s7 = inlined_call_operand.hbm [shape: f32[8,8,32], index: 7, kind: output, shape index: {}]
  %s8 = sld [smem:[#allocation0]]
  $region38: #{tpu_custom_call.1} parent=0
    _
  %s10 = ssub.s32 1, %s8
  %s11 = scalar_select 0, %s10, %s8
  $region1: #{tpu_custom_call.1} parent=0
    #allocation4 [shape = 'u8[32768]{0}', space=vmem, size = 0x8000, scoped, tag = 'output window, operand 0, single buffered']
    #allocation5 [shape = 's32[1]{0}', space=sflag, size = 0x4, scoped, tag = 'scoped memory for tpu_custom_call.1']
    %12 = vsyncpa [#allocation5], 0
    // Predicated region
    $region2: #{tpu_custom_call.1} parent=1 // pred_check
      _
    $region3: #{tpu_custom_call.1} parent=1 // pred_check_branch
      %14 = sbr.rel (0) target = $region5
    $region4: #{tpu_custom_call.1} parent=1 // pred_region
      _
    $region5: #{tpu_custom_call.1} parent=1 // pred_fallthru
      _
    // Predicated region
    $region6: #{tpu_custom_call.1} parent=1 // pred_check
      _
    $region7: #{tpu_custom_call.1} parent=1 // pred_check_branch
      %16 = sbr.rel (0) target = $region9
    $region8: #{tpu_custom_call.1} parent=1 // pred_region
      _
    $region9: #{tpu_custom_call.1} parent=1 // pred_fallthru
      _
    // Predicated region
    $region10: #{tpu_custom_call.1} parent=1 // pred_check
      _
    $region11: #{tpu_custom_call.1} parent=1 // pred_check_branch
      %18 = sbr.rel (0) target = $region13
    $region12: #{tpu_custom_call.1} parent=1 // pred_region
      _
    $region13: #{tpu_custom_call.1} parent=1 // pred_fallthru
      _
    // Predicated region
    $region14: #{tpu_custom_call.1} parent=1 // pred_check
      _
    $region15: #{tpu_custom_call.1} parent=1 // pred_check_branch
      %20 = sbr.rel (0) target = $region17
    $region16: #{tpu_custom_call.1} parent=1 // pred_region
      _
    $region17: #{tpu_custom_call.1} parent=1 // pred_fallthru
      _
    // Predicated region
    $region18: #{tpu_custom_call.1} parent=1 // pred_check
      _
    $region19: #{tpu_custom_call.1} parent=1 // pred_check_branch
      %22 = sbr.rel (0) target = $region21
    $region20: #{tpu_custom_call.1} parent=1 // pred_region
      _
    $region21: #{tpu_custom_call.1} parent=1 // pred_fallthru
      _
    // Predicated region
    $region22: #{tpu_custom_call.1} parent=1 // pred_check
      _
    $region23: #{tpu_custom_call.1} parent=1 // pred_check_branch
      %24 = sbr.rel (0) target = $region25
    $region24: #{tpu_custom_call.1} parent=1 // pred_region
      _
    $region25: #{tpu_custom_call.1} parent=1 // pred_fallthru
      _
    // Predicated region
    $region26: #{tpu_custom_call.1} parent=1 // pred_check
      _
    $region27: #{tpu_custom_call.1} parent=1 // pred_check_branch
      %26 = sbr.rel (0) target = $region29
    $region28: #{tpu_custom_call.1} parent=1 // pred_region
      _
    $region29: #{tpu_custom_call.1} parent=1 // pred_fallthru
      _
    %v27 = vld [vmem:[%s0] sm:$0xff]
    %v28 = vld [vmem:[%s0 + $0x8] sm:$0xff]
    %v29 = vld [vmem:[%s0 + $0x10] sm:$0xff]
    %v30 = vld [vmem:[%s0 + $0x18] sm:$0xff]
    %v31 = vld [vmem:[%s0 + $0x20] sm:$0xff]
    %v32 = vld [vmem:[%s0 + $0x28] sm:$0xff]
    %v33 = vld [vmem:[%s0 + $0x30] sm:$0xff]
    %v34 = vld [vmem:[%s0 + $0x38] sm:$0xff]
    %v35 = vld [vmem:[%s0 + $0x40] sm:$0xff]
    %v36 = vld [vmem:[%s0 + $0x48] sm:$0xff]
    %v37 = vld [vmem:[%s0 + $0x50] sm:$0xff]
    %v38 = vld [vmem:[%s0 + $0x58] sm:$0xff]
    %v39 = vld [vmem:[%s0 + $0x60] sm:$0xff]
    %v40 = vld [vmem:[%s0 + $0x68] sm:$0xff]
    %v41 = vld [vmem:[%s0 + $0x70] sm:$0xff]
    %v42 = vld [vmem:[%s0 + $0x78] sm:$0xff]
    %v43 = vld [vmem:[%s2] sm:$0xff]
    %v44 = vld [vmem:[%s4] sm:$0x1]
    %v46 = vlaneseq
    %v47 = vshrl.u32 %v46, 7
    %v48 = vsub.s32 0, %v47
    %v49 = vrot.slane %v44, %v48
    %vm51 = vcmask 64512
    %v53 = vsel %vm51, %v27, 0
    %v56 = vsel %vm51, %v28, 0
    %v59 = vsel %vm51, %v29, 0
    %v62 = vsel %vm51, %v30, 0
    %v65 = vsel %vm51, %v31, 0
    %v68 = vsel %vm51, %v32, 0
    %v71 = vsel %vm51, %v33, 0
    %v74 = vsel %vm51, %v34, 0
    %v77 = vsel %vm51, %v35, 0
    %v80 = vsel %vm51, %v36, 0
    %v83 = vsel %vm51, %v37, 0
    %v86 = vsel %vm51, %v38, 0
    %v89 = vsel %vm51, %v39, 0
    %v92 = vsel %vm51, %v40, 0
    %v95 = vsel %vm51, %v41, 0
    %v98 = vsel %vm51, %v42, 0
    %100 = vmatprep.subr.mxu0 0.0
    %101 = vmatpush1.msra.mxu0 %v43
    %102 = vmatprep.subr.mxu0 0.0
    %103 = vmatpush1.msra.mxu0 0.0
    %104 = vmatprep.subr.mxu0 0.0
    %105 = vmatpush1.msra.mxu0 0.0
    %106 = vmatprep.subr.mxu0 0.0
    %107 = vmatpush1.msra.mxu0 0.0
    %108 = vmatprep.subr.mxu0 0.0
    %109 = vmatpush1.msra.mxu0 0.0
    %110 = vmatprep.subr.mxu0 0.0
    %111 = vmatpush1.msra.mxu0 0.0
    %112 = vmatprep.subr.mxu0 0.0
    %113 = vmatpush1.msra.mxu0 0.0
    %114 = vmatprep.subr.mxu0 0.0
    %115 = vmatpush1.msra.mxu0 0.0
    %116 = vmatprep.subr.mxu0 0.0
    %117 = vmatpush1.msra.mxu0 0.0
    %118 = vmatprep.subr.mxu0 0.0
    %119 = vmatpush1.msra.mxu0 0.0
    %120 = vmatprep.subr.mxu0 0.0
    %121 = vmatpush1.msra.mxu0 0.0
    %122 = vmatprep.subr.mxu0 0.0
    %123 = vmatpush1.msra.mxu0 0.0
    %124 = vmatprep.subr.mxu0 0.0
    %125 = vmatpush1.msra.mxu0 0.0
    %126 = vmatprep.subr.mxu0 0.0
    %127 = vmatpush1.msra.mxu0 0.0
    %128 = vmatprep.subr.mxu0 0.0
    %129 = vmatpush1.msra.mxu0 0.0
    %130 = vmatprep.subr.mxu0 0.0
    %131 = vmatpush1.msra.mxu0 0.0
    %132 = vmatprep.subr.mxu0 0.0
    %133 = vmatpush1.msra.mxu0 0.0
    %134 = vmatprep.subr.mxu0 0.0
    %135 = vmatpush1.msra.mxu0 0.0
    %136 = vmatprep.subr.mxu0 0.0
    %137 = vmatpush1.msra.mxu0 0.0
    %138 = vmatprep.subr.mxu0 0.0
    %139 = vmatpush1.msra.mxu0 0.0
    %140 = vmatprep.subr.mxu0 0.0
    %141 = vmatpush1.msra.mxu0 0.0
    %142 = vmatprep.subr.mxu0 0.0
    %143 = vmatpush1.msra.mxu0 0.0
    %144 = vmatprep.subr.mxu0 0.0
    %145 = vmatpush1.msra.mxu0 0.0
    %146 = vmatprep.subr.mxu0 0.0
    %147 = vmatpush1.msra.mxu0 0.0
    %148 = vmatprep.subr.mxu0 0.0
    %149 = vmatpush1.msra.mxu0 0.0
    %150 = vmatprep.subr.mxu0 0.0
    %151 = vmatpush1.msra.mxu0 0.0
    %152 = vmatprep.subr.mxu0 0.0
    %153 = vmatpush1.msra.mxu0 0.0
    %154 = vmatprep.subr.mxu0 0.0
    %155 = vmatpush1.msra.mxu0 0.0
    %156 = vmatprep.subr.mxu0 0.0
    %157 = vmatpush1.msra.mxu0 0.0
    %158 = vmatprep.subr.mxu0 0.0
    %159 = vmatpush1.msra.mxu0 0.0
    %160 = vmatprep.subr.mxu0 0.0
    %161 = vmatpush1.msra.mxu0 0.0
    %162 = vmatprep.subr.mxu0 0.0
    %163 = vmatpush1.msra.mxu0 0.0
    %164 = vmatprep.mubr.f32.mxu0 0.0
    %165 = vmatmul.mubr.f32.gmra.mrb[0].mxu0 %v53
    %v166 = vpop.f32.mrb[0].mxu0
    %v167 = vadd.f32 %v49, %v166
    %v168 = vpop.f32.mrb[0].mxu0
    %169 = vmatprep.mubr.f32.mxu0 0.0
    %170 = vmatmul.mubr.f32.gmra.mrb[0].mxu0 %v56
    %v171 = vpop.f32.mrb[0].mxu0
    %v172 = vadd.f32 %v49, %v171
    %v173 = vpop.f32.mrb[0].mxu0
    %174 = vmatprep.mubr.f32.mxu0 0.0
    %175 = vmatmul.mubr.f32.gmra.mrb[0].mxu0 %v59
    %v176 = vpop.f32.mrb[0].mxu0
    %v177 = vadd.f32 %v49, %v176
    %v178 = vpop.f32.mrb[0].mxu0
    %179 = vmatprep.mubr.f32.mxu0 0.0
    %180 = vmatmul.mubr.f32.gmra.mrb[0].mxu0 %v62
    %v181 = vpop.f32.mrb[0].mxu0
    %v182 = vadd.f32 %v49, %v181
    %v183 = vpop.f32.mrb[0].mxu0
    %184 = vmatprep.mubr.f32.mxu0 0.0
    %185 = vmatmul.mubr.f32.gmra.mrb[0].mxu0 %v65
    %v186 = vpop.f32.mrb[0].mxu0
    %v187 = vadd.f32 %v49, %v186
    %v188 = vpop.f32.mrb[0].mxu0
    %189 = vmatprep.mubr.f32.mxu0 0.0
    %190 = vmatmul.mubr.f32.gmra.mrb[0].mxu0 %v68
    %v191 = vpop.f32.mrb[0].mxu0
    %v192 = vadd.f32 %v49, %v191
    %v193 = vpop.f32.mrb[0].mxu0
    %194 = vmatprep.mubr.f32.mxu0 0.0
    %195 = vmatmul.mubr.f32.gmra.mrb[0].mxu0 %v71
    %v196 = vpop.f32.mrb[0].mxu0
    %v197 = vadd.f32 %v49, %v196
    %v198 = vpop.f32.mrb[0].mxu0
    %199 = vmatprep.mubr.f32.mxu0 0.0
    %200 = vmatmul.mubr.f32.gmra.mrb[0].mxu0 %v74
    %v201 = vpop.f32.mrb[0].mxu0
    %v202 = vadd.f32 %v49, %v201
    %v203 = vpop.f32.mrb[0].mxu0
    %204 = vmatprep.mubr.f32.mxu0 0.0
    %205 = vmatmul.mubr.f32.gmra.mrb[0].mxu0 %v77
    %v206 = vpop.f32.mrb[0].mxu0
    %v207 = vadd.f32 %v49, %v206
    %v208 = vpop.f32.mrb[0].mxu0
    %209 = vmatprep.mubr.f32.mxu0 0.0
    %210 = vmatmul.mubr.f32.gmra.mrb[0].mxu0 %v80
    %v211 = vpop.f32.mrb[0].mxu0
    %v212 = vadd.f32 %v49, %v211
    %v213 = vpop.f32.mrb[0].mxu0
    %214 = vmatprep.mubr.f32.mxu0 0.0
    %215 = vmatmul.mubr.f32.gmra.mrb[0].mxu0 %v83
    %v216 = vpop.f32.mrb[0].mxu0
    %v217 = vadd.f32 %v49, %v216
    %v218 = vpop.f32.mrb[0].mxu0
    %219 = vmatprep.mubr.f32.mxu0 0.0
    %220 = vmatmul.mubr.f32.gmra.mrb[0].mxu0 %v86
    %v221 = vpop.f32.mrb[0].mxu0
    %v222 = vadd.f32 %v49, %v221
    %v223 = vpop.f32.mrb[0].mxu0
    %224 = vmatprep.mubr.f32.mxu0 0.0
    %225 = vmatmul.mubr.f32.gmra.mrb[0].mxu0 %v89
    %v226 = vpop.f32.mrb[0].mxu0
    %v227 = vadd.f32 %v49, %v226
    %v228 = vpop.f32.mrb[0].mxu0
    %229 = vmatprep.mubr.f32.mxu0 0.0
    %230 = vmatmul.mubr.f32.gmra.mrb[0].mxu0 %v92
    %v231 = vpop.f32.mrb[0].mxu0
    %v232 = vadd.f32 %v49, %v231
    %v233 = vpop.f32.mrb[0].mxu0
    %234 = vmatprep.mubr.f32.mxu0 0.0
    %235 = vmatmul.mubr.f32.gmra.mrb[0].mxu0 %v95
    %v236 = vpop.f32.mrb[0].mxu0
    %v237 = vadd.f32 %v49, %v236
    %v238 = vpop.f32.mrb[0].mxu0
    %239 = vmatprep.mubr.f32.mxu0 0.0
    %240 = vmatmul.mubr.f32.gmra.mrb[0].mxu0 %v98
    %v241 = vpop.f32.mrb[0].mxu0
    %v242 = vadd.f32 %v49, %v241
    %v243 = vpop.f32.mrb[0].mxu0
    %244 = vdwg.mxu0
    %245 = vst [vmem:[#allocation2] sm:$0xff] %v167
    %246 = vst [vmem:[#allocation2 + $0x8] sm:$0xff] %v172
    %247 = vst [vmem:[#allocation2 + $0x10] sm:$0xff] %v177
    %248 = vst [vmem:[#allocation2 + $0x18] sm:$0xff] %v182
    %249 = vst [vmem:[#allocation2 + $0x20] sm:$0xff] %v187
    %250 = vst [vmem:[#allocation2 + $0x28] sm:$0xff] %v192
    %251 = vst [vmem:[#allocation2 + $0x30] sm:$0xff] %v197
    %252 = vst [vmem:[#allocation2 + $0x38] sm:$0xff] %v202
    %253 = vst [vmem:[#allocation2 + $0x40] sm:$0xff] %v207
    %254 = vst [vmem:[#allocation2 + $0x48] sm:$0xff] %v212
    %255 = vst [vmem:[#allocation2 + $0x50] sm:$0xff] %v217
    %256 = vst [vmem:[#allocation2 + $0x58] sm:$0xff] %v222
    %257 = vst [vmem:[#allocation2 + $0x60] sm:$0xff] %v227
    %258 = vst [vmem:[#allocation2 + $0x68] sm:$0xff] %v232
    %259 = vst [vmem:[#allocation2 + $0x70] sm:$0xff] %v237
    %260 = vst [vmem:[#allocation2 + $0x78] sm:$0xff] %v242
    %v261 = vld [vmem:[%s3] sm:$0xff]
    %v262 = vld [vmem:[%s3 + $0x8] sm:$0xff]
    %v263 = vld [vmem:[%s3 + $0x10] sm:$0xff]
    %v264 = vld [vmem:[%s3 + $0x18] sm:$0xff]
    %v265 = vld [vmem:[%s5] sm:$0xff]
    %v266 = vld [vmem:[%s5 + $0x8] sm:$0xff]
    %v267 = vld [vmem:[%s5 + $0x10] sm:$0xff]
    %v268 = vld [vmem:[%s5 + $0x18] sm:$0xff]
    %v269 = vld [vmem:[%s5 + $0x20] sm:$0xff]
    %v270 = vld [vmem:[%s5 + $0x28] sm:$0xff]
    %v271 = vld [vmem:[%s5 + $0x30] sm:$0xff]
    %v272 = vld [vmem:[%s5 + $0x38] sm:$0xff]
    %v273 = vld [vmem:[%s6] sm:$0x1]
    %v275 = vlaneseq
    %v276 = vshrl.u32 %v275, 7
    %v277 = vsub.s32 0, %v276
    %v278 = vrot.slane %v273, %v277
    %v280 = vld [vmem:[#allocation2] sm:$0xff]
    %vm281 = vcmask 261120
    %v283 = vsel %vm281, 0.0, 0
    %285 = vmatprep.subr.mxu0 0.0
    %286 = vmatpush1.msra.mxu0 %v261
    %287 = vmatprep.subr.mxu0 0.0
    %288 = vmatpush1.msra.mxu0 %v262
    %289 = vmatprep.subr.mxu0 0.0
    %290 = vmatpush1.msra.mxu0 %v263
    %291 = vmatprep.subr.mxu0 0.0
    %292 = vmatpush1.msra.mxu0 %v264
    %293 = vmatprep.subr.mxu0 0.0
    %294 = vmatpush1.msra.mxu0 0.0
    %295 = vmatprep.subr.mxu0 0.0
    %296 = vmatpush1.msra.mxu0 0.0
    %297 = vmatprep.subr.mxu0 0.0
    %298 = vmatpush1.msra.mxu0 0.0
    %299 = vmatprep.subr.mxu0 0.0
    %300 = vmatpush1.msra.mxu0 0.0
    %301 = vmatprep.subr.mxu0 0.0
    %302 = vmatpush1.msra.mxu0 0.0
    %303 = vmatprep.subr.mxu0 0.0
    %304 = vmatpush1.msra.mxu0 0.0
    %305 = vmatprep.subr.mxu0 0.0
    %306 = vmatpush1.msra.mxu0 0.0
    %307 = vmatprep.subr.mxu0 0.0
    %308 = vmatpush1.msra.mxu0 0.0
    %309 = vmatprep.subr.mxu0 0.0
    %310 = vmatpush1.msra.mxu0 0.0
    %311 = vmatprep.subr.mxu0 0.0
    %312 = vmatpush1.msra.mxu0 0.0
    %313 = vmatprep.subr.mxu0 0.0
    %314 = vmatpush1.msra.mxu0 0.0
    %315 = vmatprep.subr.mxu0 0.0
    %316 = vmatpush1.msra.mxu0 0.0
    %317 = vmatprep.subr.mxu0 0.0
    %318 = vmatpush1.msra.mxu0 0.0
    %319 = vmatprep.subr.mxu0 0.0
    %320 = vmatpush1.msra.mxu0 0.0
    %321 = vmatprep.subr.mxu0 0.0
    %322 = vmatpush1.msra.mxu0 0.0
    %323 = vmatprep.subr.mxu0 0.0
    %324 = vmatpush1.msra.mxu0 0.0
    %325 = vmatprep.subr.mxu0 0.0
    %326 = vmatpush1.msra.mxu0 0.0
    %327 = vmatprep.subr.mxu0 0.0
    %328 = vmatpush1.msra.mxu0 0.0
    %329 = vmatprep.subr.mxu0 0.0
    %330 = vmatpush1.msra.mxu0 0.0
    %331 = vmatprep.subr.mxu0 0.0
    %332 = vmatpush1.msra.mxu0 0.0
    %333 = vmatprep.subr.mxu0 0.0
    %334 = vmatpush1.msra.mxu0 0.0
    %335 = vmatprep.subr.mxu0 0.0
    %336 = vmatpush1.msra.mxu0 0.0
    %337 = vmatprep.subr.mxu0 0.0
    %338 = vmatpush1.msra.mxu0 0.0
    %339 = vmatprep.subr.mxu0 0.0
    %340 = vmatpush1.msra.mxu0 0.0
    %341 = vmatprep.subr.mxu0 0.0
    %342 = vmatpush1.msra.mxu0 0.0
    %343 = vmatprep.subr.mxu0 0.0
    %344 = vmatpush1.msra.mxu0 0.0
    %345 = vmatprep.subr.mxu0 0.0
    %346 = vmatpush1.msra.mxu0 0.0
    %347 = vmatprep.subr.mxu0 0.0
    %348 = vmatpush1.msra.mxu0 0.0
    %349 = vmatprep.mubr.f32.mxu0 0.0
    %350 = vmatmul.mubr.f32.gmra.mrb[0].mxu0 %v283
    %v351 = vpop.f32.mrb[0].mxu0
    %v352 = vadd.f32 0.0, %v351
    %v353 = vpop.f32.mrb[0].mxu0
    %354 = vdwg.mxu0
    %v355 = vadd.f32 %v280, %v352
    %v356 = vxor.u32 %v355, 2147483648
    %v357 = vmul.f32 %v356, 1.442695
    %v358 = vpow.pop %v357
    %v359 = vadd.f32 %v358, 1.0
    %v360 = vrcp.pop %v359
    %v361 = vmul.f32 1.0, %v360
    %v362 = vtanh.pop %v355
    %v363 = vmul.f32 %v361, 0.0
    %365 = vrot.lane.b32.xlu0 %v362, 64
    %v366 = vpop.permute.xlu0 %365
    %v368 = vmul.f32 %v361, %v366
    %370 = vrot.lane.b32.xlu0 %v368, 32
    %v371 = vpop.permute.xlu0 %370
    %v373 = vadd.f32 %v363, %v371
    %v374 = vtanh.pop %v373
    %376 = vrot.lane.b32.xlu0 %v374, 64
    %v377 = vpop.permute.xlu0 %376
    %v379 = vmul.f32 %v361, %v377
    %381 = vrot.lane.b32.xlu0 %v379, 32
    %v382 = vpop.permute.xlu0 %381
    %v384 = vsel %vm281, %v382, 0.0
    %vm385 = vcmask 523264
    %v387 = vsel %vm385, %v384, 0
    %389 = vmatprep.subr.mxu0 0.0
    %390 = vmatpush1.msra.mxu0 %v265
    %391 = vmatprep.subr.mxu0 0.0
    %392 = vmatpush1.msra.mxu0 %v266
    %393 = vmatprep.subr.mxu0 0.0
    %394 = vmatpush1.msra.mxu0 %v267
    %395 = vmatprep.subr.mxu0 0.0
    %396 = vmatpush1.msra.mxu0 %v268
    %397 = vmatprep.subr.mxu0 0.0
    %398 = vmatpush1.msra.mxu0 %v269
    %399 = vmatprep.subr.mxu0 0.0
    %400 = vmatpush1.msra.mxu0 %v270
    %401 = vmatprep.subr.mxu0 0.0
    %402 = vmatpush1.msra.mxu0 %v271
    %403 = vmatprep.subr.mxu0 0.0
    %404 = vmatpush1.msra.mxu0 %v272
    %405 = vmatprep.subr.mxu0 0.0
    %406 = vmatpush1.msra.mxu0 0.0
    %407 = vmatprep.subr.mxu0 0.0
    %408 = vmatpush1.msra.mxu0 0.0
    %409 = vmatprep.subr.mxu0 0.0
    %410 = vmatpush1.msra.mxu0 0.0
    %411 = vmatprep.subr.mxu0 0.0
    %412 = vmatpush1.msra.mxu0 0.0
    %413 = vmatprep.subr.mxu0 0.0
    %414 = vmatpush1.msra.mxu0 0.0
    %415 = vmatprep.subr.mxu0 0.0
    %416 = vmatpush1.msra.mxu0 0.0
    %417 = vmatprep.subr.mxu0 0.0
    %418 = vmatpush1.msra.mxu0 0.0
    %419 = vmatprep.subr.mxu0 0.0
    %420 = vmatpush1.msra.mxu0 0.0
    %421 = vmatprep.subr.mxu0 0.0
    %422 = vmatpush1.msra.mxu0 0.0
    %423 = vmatprep.subr.mxu0 0.0
    %424 = vmatpush1.msra.mxu0 0.0
    %425 = vmatprep.subr.mxu0 0.0
    %426 = vmatpush1.msra.mxu0 0.0
    %427 = vmatprep.subr.mxu0 0.0
    %428 = vmatpush1.msra.mxu0 0.0
    %429 = vmatprep.subr.mxu0 0.0
    %430 = vmatpush1.msra.mxu0 0.0
    %431 = vmatprep.subr.mxu0 0.0
    %432 = vmatpush1.msra.mxu0 0.0
    %433 = vmatprep.subr.mxu0 0.0
    %434 = vmatpush1.msra.mxu0 0.0
    %435 = vmatprep.subr.mxu0 0.0
    %436 = vmatpush1.msra.mxu0 0.0
    %437 = vmatprep.subr.mxu0 0.0
    %438 = vmatpush1.msra.mxu0 0.0
    %439 = vmatprep.subr.mxu0 0.0
    %440 = vmatpush1.msra.mxu0 0.0
    %441 = vmatprep.subr.mxu0 0.0
    %442 = vmatpush1.msra.mxu0 0.0
    %443 = vmatprep.subr.mxu0 0.0
    %444 = vmatpush1.msra.mxu0 0.0
    %445 = vmatprep.subr.mxu0 0.0
    %446 = vmatpush1.msra.mxu0 0.0
    %447 = vmatprep.subr.mxu0 0.0
    %448 = vmatpush1.msra.mxu0 0.0
    %449 = vmatprep.subr.mxu0 0.0
    %450 = vmatpush1.msra.mxu0 0.0
    %451 = vmatprep.subr.mxu0 0.0
    %452 = vmatpush1.msra.mxu0 0.0
    %453 = vmatprep.mubr.f32.mxu0 0.0
    %454 = vmatmul.mubr.f32.gmra.mrb[0].mxu0 %v387
    %v455 = vpop.f32.mrb[0].mxu0
    %v456 = vadd.f32 %v278, %v455
    %v457 = vpop.f32.mrb[0].mxu0
    %458 = vdwg.mxu0
    %v459 = vxor.u32 %v456, 2147483648
    %v460 = vmul.f32 %v459, 1.442695
    %v461 = vpow.pop %v460
    %v462 = vadd.f32 %v461, 1.0
    %v463 = vrcp.pop %v462
    %v464 = vmul.f32 1.0, %v463
    %v465 = vtanh.pop %v456
    %v466 = vmul.f32 %v464, 0.0
    %468 = vrot.lane.b32.xlu0 %v465, 64
    %v469 = vpop.permute.xlu0 %468
    %v471 = vmul.f32 %v464, %v469
    %473 = vrot.lane.b32.xlu0 %v471, 32
    %v474 = vpop.permute.xlu0 %473
    %v476 = vadd.f32 %v466, %v474
    %v477 = vtanh.pop %v476
    %479 = vrot.lane.b32.xlu0 %v477, 64
    %v480 = vpop.permute.xlu0 %479
    %v482 = vmul.f32 %v464, %v480
    %484 = vrot.lane.b32.xlu0 %v482, 32
    %v485 = vpop.permute.xlu0 %484
    %487 = vst.msk [vmem:[#allocation3] sm:$0xff] %vm281, %v485
    %s488 = scalar_lea.vmem [#allocation2], 8
    %v489 = vld [vmem:[%s488] sm:$0xff]
    %v490 = vsel %vm281, %v382, 0
    %492 = vmatprep.subr.mxu0 0.0
    %493 = vmatpush1.msra.mxu0 %v261
    %494 = vmatprep.subr.mxu0 0.0
    %495 = vmatpush1.msra.mxu0 %v262
    %496 = vmatprep.subr.mxu0 0.0
    %497 = vmatpush1.msra.mxu0 %v263
    %498 = vmatprep.subr.mxu0 0.0
    %499 = vmatpush1.msra.mxu0 %v264
    %500 = vmatprep.subr.mxu0 0.0
    %501 = vmatpush1.msra.mxu0 0.0
    %502 = vmatprep.subr.mxu0 0.0
    %503 = vmatpush1.msra.mxu0 0.0
    %504 = vmatprep.subr.mxu0 0.0
    %505 = vmatpush1.msra.mxu0 0.0
    %506 = vmatprep.subr.mxu0 0.0
    %507 = vmatpush1.msra.mxu0 0.0
    %508 = vmatprep.subr.mxu0 0.0
    %509 = vmatpush1.msra.mxu0 0.0
    %510 = vmatprep.subr.mxu0 0.0
    %511 = vmatpush1.msra.mxu0 0.0
    %512 = vmatprep.subr.mxu0 0.0
    %513 = vmatpush1.msra.mxu0 0.0
    %514 = vmatprep.subr.mxu0 0.0
    %515 = vmatpush1.msra.mxu0 0.0
    %516 = vmatprep.subr.mxu0 0.0
    %517 = vmatpush1.msra.mxu0 0.0
    %518 = vmatprep.subr.mxu0 0.0
    %519 = vmatpush1.msra.mxu0 0.0
    %520 = vmatprep.subr.mxu0 0.0
    %521 = vmatpush1.msra.mxu0 0.0
    %522 = vmatprep.subr.mxu0 0.0
    %523 = vmatpush1.msra.mxu0 0.0
    %524 = vmatprep.subr.mxu0 0.0
    %525 = vmatpush1.msra.mxu0 0.0
    %526 = vmatprep.subr.mxu0 0.0
    %527 = vmatpush1.msra.mxu0 0.0
    %528 = vmatprep.subr.mxu0 0.0
    %529 = vmatpush1.msra.mxu0 0.0
    %530 = vmatprep.subr.mxu0 0.0
    %531 = vmatpush1.msra.mxu0 0.0
    %532 = vmatprep.subr.mxu0 0.0
    %533 = vmatpush1.msra.mxu0 0.0
    %534 = vmatprep.subr.mxu0 0.0
    %535 = vmatpush1.msra.mxu0 0.0
    %536 = vmatprep.subr.mxu0 0.0
    %537 = vmatpush1.msra.mxu0 0.0
    %538 = vmatprep.subr.mxu0 0.0
    %539 = vmatpush1.msra.mxu0 0.0
    %540 = vmatprep.subr.mxu0 0.0
    %541 = vmatpush1.msra.mxu0 0.0
    %542 = vmatprep.subr.mxu0 0.0
    %543 = vmatpush1.msra.mxu0 0.0
    %544 = vmatprep.subr.mxu0 0.0
    %545 = vmatpush1.msra.mxu0 0.0
    %546 = vmatprep.subr.mxu0 0.0
    %547 = vmatpush1.msra.mxu0 0.0
    %548 = vmatprep.subr.mxu0 0.0
    %549 = vmatpush1.msra.mxu0 0.0
    %550 = vmatprep.subr.mxu0 0.0
    %551 = vmatpush1.msra.mxu0 0.0
    %552 = vmatprep.subr.mxu0 0.0
    %553 = vmatpush1.msra.mxu0 0.0
    %554 = vmatprep.subr.mxu0 0.0
    %555 = vmatpush1.msra.mxu0 0.0
    %556 = vmatprep.mubr.f32.mxu0 0.0
    %557 = vmatmul.mubr.f32.gmra.mrb[0].mxu0 %v490
    %v558 = vpop.f32.mrb[0].mxu0
    %v559 = vadd.f32 0.0, %v558
    %v560 = vpop.f32.mrb[0].mxu0
    %561 = vdwg.mxu0
    %v562 = vadd.f32 %v489, %v559
    %v563 = vxor.u32 %v562, 2147483648
    %v564 = vmul.f32 %v563, 1.442695
    %v565 = vpow.pop %v564
    %v566 = vadd.f32 %v565, 1.0
    %v567 = vrcp.pop %v566
    %v568 = vmul.f32 1.0, %v567
    %v569 = vtanh.pop %v562
    %v570 = vmul.f32 %v568, %v373
    %572 = vrot.lane.b32.xlu0 %v569, 64
    %v573 = vpop.permute.xlu0 %572
    %v575 = vmul.f32 %v568, %v573
    %577 = vrot.lane.b32.xlu0 %v575, 32
    %v578 = vpop.permute.xlu0 %577
    %v580 = vadd.f32 %v570, %v578
    %v581 = vtanh.pop %v580
    %583 = vrot.lane.b32.xlu0 %v581, 64
    %v584 = vpop.permute.xlu0 %583
    %v586 = vmul.f32 %v568, %v584
    %588 = vrot.lane.b32.xlu0 %v586, 32
    %v589 = vpop.permute.xlu0 %588
    %591 = vrot.lane.b32.xlu0 %v482, 64
    %v592 = vpop.permute.xlu0 %591
    %v594 = vsel %vm281, %v589, %v592
    %v596 = vsel %vm385, %v594, 0
    %598 = vmatprep.subr.mxu0 0.0
    %599 = vmatpush1.msra.mxu0 %v265
    %600 = vmatprep.subr.mxu0 0.0
    %601 = vmatpush1.msra.mxu0 %v266
    %602 = vmatprep.subr.mxu0 0.0
    %603 = vmatpush1.msra.mxu0 %v267
    %604 = vmatprep.subr.mxu0 0.0
    %605 = vmatpush1.msra.mxu0 %v268
    %606 = vmatprep.subr.mxu0 0.0
    %607 = vmatpush1.msra.mxu0 %v269
    %608 = vmatprep.subr.mxu0 0.0
    %609 = vmatpush1.msra.mxu0 %v270
    %610 = vmatprep.subr.mxu0 0.0
    %611 = vmatpush1.msra.mxu0 %v271
    %612 = vmatprep.subr.mxu0 0.0
    %613 = vmatpush1.msra.mxu0 %v272
    %614 = vmatprep.subr.mxu0 0.0
    %615 = vmatpush1.msra.mxu0 0.0
    %616 = vmatprep.subr.mxu0 0.0
    %617 = vmatpush1.msra.mxu0 0.0
    %618 = vmatprep.subr.mxu0 0.0
    %619 = vmatpush1.msra.mxu0 0.0
    %620 = vmatprep.subr.mxu0 0.0
    %621 = vmatpush1.msra.mxu0 0.0
    %622 = vmatprep.subr.mxu0 0.0
    %623 = vmatpush1.msra.mxu0 0.0
    %624 = vmatprep.subr.mxu0 0.0
    %625 = vmatpush1.msra.mxu0 0.0
    %626 = vmatprep.subr.mxu0 0.0
    %627 = vmatpush1.msra.mxu0 0.0
    %628 = vmatprep.subr.mxu0 0.0
    %629 = vmatpush1.msra.mxu0 0.0
    %630 = vmatprep.subr.mxu0 0.0
    %631 = vmatpush1.msra.mxu0 0.0
    %632 = vmatprep.subr.mxu0 0.0
    %633 = vmatpush1.msra.mxu0 0.0
    %634 = vmatprep.subr.mxu0 0.0
    %635 = vmatpush1.msra.mxu0 0.0
    %636 = vmatprep.subr.mxu0 0.0
    %637 = vmatpush1.msra.mxu0 0.0
    %638 = vmatprep.subr.mxu0 0.0
    %639 = vmatpush1.msra.mxu0 0.0
    %640 = vmatprep.subr.mxu0 0.0
    %641 = vmatpush1.msra.mxu0 0.0
    %642 = vmatprep.subr.mxu0 0.0
    %643 = vmatpush1.msra.mxu0 0.0
    %644 = vmatprep.subr.mxu0 0.0
    %645 = vmatpush1.msra.mxu0 0.0
    %646 = vmatprep.subr.mxu0 0.0
    %647 = vmatpush1.msra.mxu0 0.0
    %648 = vmatprep.subr.mxu0 0.0
    %649 = vmatpush1.msra.mxu0 0.0
    %650 = vmatprep.subr.mxu0 0.0
    %651 = vmatpush1.msra.mxu0 0.0
    %652 = vmatprep.subr.mxu0 0.0
    %653 = vmatpush1.msra.mxu0 0.0
    %654 = vmatprep.subr.mxu0 0.0
    %655 = vmatpush1.msra.mxu0 0.0
    %656 = vmatprep.subr.mxu0 0.0
    %657 = vmatpush1.msra.mxu0 0.0
    %658 = vmatprep.subr.mxu0 0.0
    %659 = vmatpush1.msra.mxu0 0.0
    %660 = vmatprep.subr.mxu0 0.0
    %661 = vmatpush1.msra.mxu0 0.0
    %662 = vmatprep.mubr.f32.mxu0 0.0
    %663 = vmatmul.mubr.f32.gmra.mrb[0].mxu0 %v596
    %v664 = vpop.f32.mrb[0].mxu0
    %v665 = vadd.f32 %v278, %v664
    %v666 = vpop.f32.mrb[0].mxu0
    %667 = vdwg.mxu0
    %v668 = vxor.u32 %v665, 2147483648
    %v669 = vmul.f32 %v668, 1.442695
    %v670 = vpow.pop %v669
    %v671 = vadd.f32 %v670, 1.0
    %v672 = vrcp.pop %v671
    %v673 = vmul.f32 1.0, %v672
    %v674 = vtanh.pop %v665
    %v675 = vmul.f32 %v673, %v476
    %677 = vrot.lane.b32.xlu0 %v674, 64
    %v678 = vpop.permute.xlu0 %677
    %v680 = vmul.f32 %v673, %v678
    %682 = vrot.lane.b32.xlu0 %v680, 32
    %v683 = vpop.permute.xlu0 %682
    %v685 = vadd.f32 %v675, %v683
    %v686 = vtanh.pop %v685
    %688 = vrot.lane.b32.xlu0 %v686, 64
    %v689 = vpop.permute.xlu0 %688
    %v691 = vmul.f32 %v673, %v689
    %693 = vrot.lane.b32.xlu0 %v691, 32
    %v694 = vpop.permute.xlu0 %693
    %s696 = scalar_lea.vmem [#allocation3], 8
    %697 = vst.msk [vmem:[%s696] sm:$0xff] %vm281, %v694
    %s698 = scalar_lea.vmem [#allocation2], 16
    %v699 = vld [vmem:[%s698] sm:$0xff]
    %v700 = vsel %vm281, %v589, 0
    %702 = vmatprep.subr.mxu0 0.0
    %703 = vmatpush1.msra.mxu0 %v261
    %704 = vmatprep.subr.mxu0 0.0
    %705 = vmatpush1.msra.mxu0 %v262
    %706 = vmatprep.subr.mxu0 0.0
    %707 = vmatpush1.msra.mxu0 %v263
    %708 = vmatprep.subr.mxu0 0.0
    %709 = vmatpush1.msra.mxu0 %v264
    %710 = vmatprep.subr.mxu0 0.0
    %711 = vmatpush1.msra.mxu0 0.0
    %712 = vmatprep.subr.mxu0 0.0
    %713 = vmatpush1.msra.mxu0 0.0
    %714 = vmatprep.subr.mxu0 0.0
    %715 = vmatpush1.msra.mxu0 0.0
    %716 = vmatprep.subr.mxu0 0.0
    %717 = vmatpush1.msra.mxu0 0.0
    %718 = vmatprep.subr.mxu0 0.0
    %719 = vmatpush1.msra.mxu0 0.0
    %720 = vmatprep.subr.mxu0 0.0
    %721 = vmatpush1.msra.mxu0 0.0
    %722 = vmatprep.subr.mxu0 0.0
    %723 = vmatpush1.msra.mxu0 0.0
    %724 = vmatprep.subr.mxu0 0.0
    %725 = vmatpush1.msra.mxu0 0.0
    %726 = vmatprep.subr.mxu0 0.0
    %727 = vmatpush1.msra.mxu0 0.0
    %728 = vmatprep.subr.mxu0 0.0
    %729 = vmatpush1.msra.mxu0 0.0
    %730 = vmatprep.subr.mxu0 0.0
    %731 = vmatpush1.msra.mxu0 0.0
    %732 = vmatprep.subr.mxu0 0.0
    %733 = vmatpush1.msra.mxu0 0.0
    %734 = vmatprep.subr.mxu0 0.0
    %735 = vmatpush1.msra.mxu0 0.0
    %736 = vmatprep.subr.mxu0 0.0
    %737 = vmatpush1.msra.mxu0 0.0
    %738 = vmatprep.subr.mxu0 0.0
    %739 = vmatpush1.msra.mxu0 0.0
    %740 = vmatprep.subr.mxu0 0.0
    %741 = vmatpush1.msra.mxu0 0.0
    %742 = vmatprep.subr.mxu0 0.0
    %743 = vmatpush1.msra.mxu0 0.0
    %744 = vmatprep.subr.mxu0 0.0
    %745 = vmatpush1.msra.mxu0 0.0
    %746 = vmatprep.subr.mxu0 0.0
    %747 = vmatpush1.msra.mxu0 0.0
    %748 = vmatprep.subr.mxu0 0.0
    %749 = vmatpush1.msra.mxu0 0.0
    %750 = vmatprep.subr.mxu0 0.0
    %751 = vmatpush1.msra.mxu0 0.0
    %752 = vmatprep.subr.mxu0 0.0
    %753 = vmatpush1.msra.mxu0 0.0
    %754 = vmatprep.subr.mxu0 0.0
    %755 = vmatpush1.msra.mxu0 0.0
    %756 = vmatprep.subr.mxu0 0.0
    %757 = vmatpush1.msra.mxu0 0.0
    %758 = vmatprep.subr.mxu0 0.0
    %759 = vmatpush1.msra.mxu0 0.0
    %760 = vmatprep.subr.mxu0 0.0
    %761 = vmatpush1.msra.mxu0 0.0
    %762 = vmatprep.subr.mxu0 0.0
    %763 = vmatpush1.msra.mxu0 0.0
    %764 = vmatprep.subr.mxu0 0.0
    %765 = vmatpush1.msra.mxu0 0.0
    %766 = vmatprep.mubr.f32.mxu0 0.0
    %767 = vmatmul.mubr.f32.gmra.mrb[0].mxu0 %v700
    %v768 = vpop.f32.mrb[0].mxu0
    %v769 = vadd.f32 0.0, %v768
    %v770 = vpop.f32.mrb[0].mxu0
    %771 = vdwg.mxu0
    %v772 = vadd.f32 %v699, %v769
    %v773 = vxor.u32 %v772, 2147483648
    %v774 = vmul.f32 %v773, 1.442695
    %v775 = vpow.pop %v774
    %v776 = vadd.f32 %v775, 1.0
    %v777 = vrcp.pop %v776
    %v778 = vmul.f32 1.0, %v777
    %v779 = vtanh.pop %v772
    %v780 = vmul.f32 %v778, %v580
    %782 = vrot.lane.b32.xlu0 %v779, 64
    %v783 = vpop.permute.xlu0 %782
    %v785 = vmul.f32 %v778, %v783
    %787 = vrot.lane.b32.xlu0 %v785, 32
    %v788 = vpop.permute.xlu0 %787
    %v790 = vadd.f32 %v780, %v788
    %v791 = vtanh.pop %v790
    %793 = vrot.lane.b32.xlu0 %v791, 64
    %v794 = vpop.permute.xlu0 %793
    %v796 = vmul.f32 %v778, %v794
    %798 = vrot.lane.b32.xlu0 %v796, 32
    %v799 = vpop.permute.xlu0 %798
    %801 = vrot.lane.b32.xlu0 %v691, 64
    %v802 = vpop.permute.xlu0 %801
    %v804 = vsel %vm281, %v799, %v802
    %v806 = vsel %vm385, %v804, 0
    %808 = vmatprep.subr.mxu0 0.0
    %809 = vmatpush1.msra.mxu0 %v265
    %810 = vmatprep.subr.mxu0 0.0
    %811 = vmatpush1.msra.mxu0 %v266
    %812 = vmatprep.subr.mxu0 0.0
    %813 = vmatpush1.msra.mxu0 %v267
    %814 = vmatprep.subr.mxu0 0.0
    %815 = vmatpush1.msra.mxu0 %v268
    %816 = vmatprep.subr.mxu0 0.0
    %817 = vmatpush1.msra.mxu0 %v269
    %818 = vmatprep.subr.mxu0 0.0
    %819 = vmatpush1.msra.mxu0 %v270
    %820 = vmatprep.subr.mxu0 0.0
    %821 = vmatpush1.msra.mxu0 %v271
    %822 = vmatprep.subr.mxu0 0.0
    %823 = vmatpush1.msra.mxu0 %v272
    %824 = vmatprep.subr.mxu0 0.0
    %825 = vmatpush1.msra.mxu0 0.0
    %826 = vmatprep.subr.mxu0 0.0
    %827 = vmatpush1.msra.mxu0 0.0
    %828 = vmatprep.subr.mxu0 0.0
    %829 = vmatpush1.msra.mxu0 0.0
    %830 = vmatprep.subr.mxu0 0.0
    %831 = vmatpush1.msra.mxu0 0.0
    %832 = vmatprep.subr.mxu0 0.0
    %833 = vmatpush1.msra.mxu0 0.0
    %834 = vmatprep.subr.mxu0 0.0
    %835 = vmatpush1.msra.mxu0 0.0
    %836 = vmatprep.subr.mxu0 0.0
    %837 = vmatpush1.msra.mxu0 0.0
    %838 = vmatprep.subr.mxu0 0.0
    %839 = vmatpush1.msra.mxu0 0.0
    %840 = vmatprep.subr.mxu0 0.0
    %841 = vmatpush1.msra.mxu0 0.0
    %842 = vmatprep.subr.mxu0 0.0
    %843 = vmatpush1.msra.mxu0 0.0
    %844 = vmatprep.subr.mxu0 0.0
    %845 = vmatpush1.msra.mxu0 0.0
    %846 = vmatprep.subr.mxu0 0.0
    %847 = vmatpush1.msra.mxu0 0.0
    %848 = vmatprep.subr.mxu0 0.0
    %849 = vmatpush1.msra.mxu0 0.0
    %850 = vmatprep.subr.mxu0 0.0
    %851 = vmatpush1.msra.mxu0 0.0
    %852 = vmatprep.subr.mxu0 0.0
    %853 = vmatpush1.msra.mxu0 0.0
    %854 = vmatprep.subr.mxu0 0.0
    %855 = vmatpush1.msra.mxu0 0.0
    %856 = vmatprep.subr.mxu0 0.0
    %857 = vmatpush1.msra.mxu0 0.0
    %858 = vmatprep.subr.mxu0 0.0
    %859 = vmatpush1.msra.mxu0 0.0
    %860 = vmatprep.subr.mxu0 0.0
    %861 = vmatpush1.msra.mxu0 0.0
    %862 = vmatprep.subr.mxu0 0.0
    %863 = vmatpush1.msra.mxu0 0.0
    %864 = vmatprep.subr.mxu0 0.0
    %865 = vmatpush1.msra.mxu0 0.0
    %866 = vmatprep.subr.mxu0 0.0
    %867 = vmatpush1.msra.mxu0 0.0
    %868 = vmatprep.subr.mxu0 0.0
    %869 = vmatpush1.msra.mxu0 0.0
    %870 = vmatprep.subr.mxu0 0.0
    %871 = vmatpush1.msra.mxu0 0.0
    %872 = vmatprep.mubr.f32.mxu0 0.0
    %873 = vmatmul.mubr.f32.gmra.mrb[0].mxu0 %v806
    %v874 = vpop.f32.mrb[0].mxu0
    %v875 = vadd.f32 %v278, %v874
    %v876 = vpop.f32.mrb[0].mxu0
    %877 = vdwg.mxu0
    %v878 = vxor.u32 %v875, 2147483648
    %v879 = vmul.f32 %v878, 1.442695
    %v880 = vpow.pop %v879
    %v881 = vadd.f32 %v880, 1.0
    %v882 = vrcp.pop %v881
    %v883 = vmul.f32 1.0, %v882
    %v884 = vtanh.pop %v875
    %v885 = vmul.f32 %v883, %v685
    %887 = vrot.lane.b32.xlu0 %v884, 64
    %v888 = vpop.permute.xlu0 %887
    %v890 = vmul.f32 %v883, %v888
    %892 = vrot.lane.b32.xlu0 %v890, 32
    %v893 = vpop.permute.xlu0 %892
    %v895 = vadd.f32 %v885, %v893
    %v896 = vtanh.pop %v895
    %898 = vrot.lane.b32.xlu0 %v896, 64
    %v899 = vpop.permute.xlu0 %898
    %v901 = vmul.f32 %v883, %v899
    %903 = vrot.lane.b32.xlu0 %v901, 32
    %v904 = vpop.permute.xlu0 %903
    %s906 = scalar_lea.vmem [#allocation3], 16
    %907 = vst.msk [vmem:[%s906] sm:$0xff] %vm281, %v904
    %s908 = scalar_lea.vmem [#allocation2], 24
    %v909 = vld [vmem:[%s908] sm:$0xff]
    %v910 = vsel %vm281, %v799, 0
    %912 = vmatprep.subr.mxu0 0.0
    %913 = vmatpush1.msra.mxu0 %v261
    %914 = vmatprep.subr.mxu0 0.0
    %915 = vmatpush1.msra.mxu0 %v262
    %916 = vmatprep.subr.mxu0 0.0
    %917 = vmatpush1.msra.mxu0 %v263
    %918 = vmatprep.subr.mxu0 0.0
    %919 = vmatpush1.msra.mxu0 %v264
    %920 = vmatprep.subr.mxu0 0.0
    %921 = vmatpush1.msra.mxu0 0.0
    %922 = vmatprep.subr.mxu0 0.0
    %923 = vmatpush1.msra.mxu0 0.0
    %924 = vmatprep.subr.mxu0 0.0
    %925 = vmatpush1.msra.mxu0 0.0
    %926 = vmatprep.subr.mxu0 0.0
    %927 = vmatpush1.msra.mxu0 0.0
    %928 = vmatprep.subr.mxu0 0.0
    %929 = vmatpush1.msra.mxu0 0.0
    %930 = vmatprep.subr.mxu0 0.0
    %931 = vmatpush1.msra.mxu0 0.0
    %932 = vmatprep.subr.mxu0 0.0
    %933 = vmatpush1.msra.mxu0 0.0
    %934 = vmatprep.subr.mxu0 0.0
    %935 = vmatpush1.msra.mxu0 0.0
    %936 = vmatprep.subr.mxu0 0.0
    %937 = vmatpush1.msra.mxu0 0.0
    %938 = vmatprep.subr.mxu0 0.0
    %939 = vmatpush1.msra.mxu0 0.0
    %940 = vmatprep.subr.mxu0 0.0
    %941 = vmatpush1.msra.mxu0 0.0
    %942 = vmatprep.subr.mxu0 0.0
    %943 = vmatpush1.msra.mxu0 0.0
    %944 = vmatprep.subr.mxu0 0.0
    %945 = vmatpush1.msra.mxu0 0.0
    %946 = vmatprep.subr.mxu0 0.0
    %947 = vmatpush1.msra.mxu0 0.0
    %948 = vmatprep.subr.mxu0 0.0
    %949 = vmatpush1.msra.mxu0 0.0
    %950 = vmatprep.subr.mxu0 0.0
    %951 = vmatpush1.msra.mxu0 0.0
    %952 = vmatprep.subr.mxu0 0.0
    %953 = vmatpush1.msra.mxu0 0.0
    %954 = vmatprep.subr.mxu0 0.0
    %955 = vmatpush1.msra.mxu0 0.0
    %956 = vmatprep.subr.mxu0 0.0
    %957 = vmatpush1.msra.mxu0 0.0
    %958 = vmatprep.subr.mxu0 0.0
    %959 = vmatpush1.msra.mxu0 0.0
    %960 = vmatprep.subr.mxu0 0.0
    %961 = vmatpush1.msra.mxu0 0.0
    %962 = vmatprep.subr.mxu0 0.0
    %963 = vmatpush1.msra.mxu0 0.0
    %964 = vmatprep.subr.mxu0 0.0
    %965 = vmatpush1.msra.mxu0 0.0
    %966 = vmatprep.subr.mxu0 0.0
    %967 = vmatpush1.msra.mxu0 0.0
    %968 = vmatprep.subr.mxu0 0.0
    %969 = vmatpush1.msra.mxu0 0.0
    %970 = vmatprep.subr.mxu0 0.0
    %971 = vmatpush1.msra.mxu0 0.0
    %972 = vmatprep.subr.mxu0 0.0
    %973 = vmatpush1.msra.mxu0 0.0
    %974 = vmatprep.subr.mxu0 0.0
    %975 = vmatpush1.msra.mxu0 0.0
    %976 = vmatprep.mubr.f32.mxu0 0.0
    %977 = vmatmul.mubr.f32.gmra.mrb[0].mxu0 %v910
    %v978 = vpop.f32.mrb[0].mxu0
    %v979 = vadd.f32 0.0, %v978
    %v980 = vpop.f32.mrb[0].mxu0
    %981 = vdwg.mxu0
    %v982 = vadd.f32 %v909, %v979
    %v983 = vxor.u32 %v982, 2147483648
    %v984 = vmul.f32 %v983, 1.442695
    %v985 = vpow.pop %v984
    %v986 = vadd.f32 %v985, 1.0
    %v987 = vrcp.pop %v986
    %v988 = vmul.f32 1.0, %v987
    %v989 = vtanh.pop %v982
    %v990 = vmul.f32 %v988, %v790
    %992 = vrot.lane.b32.xlu0 %v989, 64
    %v993 = vpop.permute.xlu0 %992
    %v995 = vmul.f32 %v988, %v993
    %997 = vrot.lane.b32.xlu0 %v995, 32
    %v998 = vpop.permute.xlu0 %997
    %v1000 = vadd.f32 %v990, %v998
    %v1001 = vtanh.pop %v1000
    %1003 = vrot.lane.b32.xlu0 %v1001, 64
    %v1004 = vpop.permute.xlu0 %1003
    %v1006 = vmul.f32 %v988, %v1004
    %1008 = vrot.lane.b32.xlu0 %v1006, 32
    %v1009 = vpop.permute.xlu0 %1008
    %1011 = vrot.lane.b32.xlu0 %v901, 64
    %v1012 = vpop.permute.xlu0 %1011
    %v1014 = vsel %vm281, %v1009, %v1012
    %v1016 = vsel %vm385, %v1014, 0
    %1018 = vmatprep.subr.mxu0 0.0
    %1019 = vmatpush1.msra.mxu0 %v265
    %1020 = vmatprep.subr.mxu0 0.0
    %1021 = vmatpush1.msra.mxu0 %v266
    %1022 = vmatprep.subr.mxu0 0.0
    %1023 = vmatpush1.msra.mxu0 %v267
    %1024 = vmatprep.subr.mxu0 0.0
    %1025 = vmatpush1.msra.mxu0 %v268
    %1026 = vmatprep.subr.mxu0 0.0
    %1027 = vmatpush1.msra.mxu0 %v269
    %1028 = vmatprep.subr.mxu0 0.0
    %1029 = vmatpush1.msra.mxu0 %v270
    %1030 = vmatprep.subr.mxu0 0.0
    %1031 = vmatpush1.msra.mxu0 %v271
    %1032 = vmatprep.subr.mxu0 0.0
    %1033 = vmatpush1.msra.mxu0 %v272
    %1034 = vmatprep.subr.mxu0 0.0
    %1035 = vmatpush1.msra.mxu0 0.0
    %1036 = vmatprep.subr.mxu0 0.0
    %1037 = vmatpush1.msra.mxu0 0.0
    %1038 = vmatprep.subr.mxu0 0.0
    %1039 = vmatpush1.msra.mxu0 0.0
    %1040 = vmatprep.subr.mxu0 0.0
    %1041 = vmatpush1.msra.mxu0 0.0
    %1042 = vmatprep.subr.mxu0 0.0
    %1043 = vmatpush1.msra.mxu0 0.0
    %1044 = vmatprep.subr.mxu0 0.0
    %1045 = vmatpush1.msra.mxu0 0.0
    %1046 = vmatprep.subr.mxu0 0.0
    %1047 = vmatpush1.msra.mxu0 0.0
    %1048 = vmatprep.subr.mxu0 0.0
    %1049 = vmatpush1.msra.mxu0 0.0
    %1050 = vmatprep.subr.mxu0 0.0
    %1051 = vmatpush1.msra.mxu0 0.0
    %1052 = vmatprep.subr.mxu0 0.0
    %1053 = vmatpush1.msra.mxu0 0.0
    %1054 = vmatprep.subr.mxu0 0.0
    %1055 = vmatpush1.msra.mxu0 0.0
    %1056 = vmatprep.subr.mxu0 0.0
    %1057 = vmatpush1.msra.mxu0 0.0
    %1058 = vmatprep.subr.mxu0 0.0
    %1059 = vmatpush1.msra.mxu0 0.0
    %1060 = vmatprep.subr.mxu0 0.0
    %1061 = vmatpush1.msra.mxu0 0.0
    %1062 = vmatprep.subr.mxu0 0.0
    %1063 = vmatpush1.msra.mxu0 0.0
    %1064 = vmatprep.subr.mxu0 0.0
    %1065 = vmatpush1.msra.mxu0 0.0
    %1066 = vmatprep.subr.mxu0 0.0
    %1067 = vmatpush1.msra.mxu0 0.0
    %1068 = vmatprep.subr.mxu0 0.0
    %1069 = vmatpush1.msra.mxu0 0.0
    %1070 = vmatprep.subr.mxu0 0.0
    %1071 = vmatpush1.msra.mxu0 0.0
    %1072 = vmatprep.subr.mxu0 0.0
    %1073 = vmatpush1.msra.mxu0 0.0
    %1074 = vmatprep.subr.mxu0 0.0
    %1075 = vmatpush1.msra.mxu0 0.0
    %1076 = vmatprep.subr.mxu0 0.0
    %1077 = vmatpush1.msra.mxu0 0.0
    %1078 = vmatprep.subr.mxu0 0.0
    %1079 = vmatpush1.msra.mxu0 0.0
    %1080 = vmatprep.subr.mxu0 0.0
    %1081 = vmatpush1.msra.mxu0 0.0
    %1082 = vmatprep.mubr.f32.mxu0 0.0
    %1083 = vmatmul.mubr.f32.gmra.mrb[0].mxu0 %v1016
    %v1084 = vpop.f32.mrb[0].mxu0
    %v1085 = vadd.f32 %v278, %v1084
    %v1086 = vpop.f32.mrb[0].mxu0
    %1087 = vdwg.mxu0
    %v1088 = vxor.u32 %v1085, 2147483648
    %v1089 = vmul.f32 %v1088, 1.442695
    %v1090 = vpow.pop %v1089
    %v1091 = vadd.f32 %v1090, 1.0
    %v1092 = vrcp.pop %v1091
    %v1093 = vmul.f32 1.0, %v1092
    %v1094 = vtanh.pop %v1085
    %v1095 = vmul.f32 %v1093, %v895
    %1097 = vrot.lane.b32.xlu0 %v1094, 64
    %v1098 = vpop.permute.xlu0 %1097
    %v1100 = vmul.f32 %v1093, %v1098
    %1102 = vrot.lane.b32.xlu0 %v1100, 32
    %v1103 = vpop.permute.xlu0 %1102
    %v1105 = vadd.f32 %v1095, %v1103
    %v1106 = vtanh.pop %v1105
    %1108 = vrot.lane.b32.xlu0 %v1106, 64
    %v1109 = vpop.permute.xlu0 %1108
    %v1111 = vmul.f32 %v1093, %v1109
    %1113 = vrot.lane.b32.xlu0 %v1111, 32
    %v1114 = vpop.permute.xlu0 %1113
    %s1116 = scalar_lea.vmem [#allocation3], 24
    %1117 = vst.msk [vmem:[%s1116] sm:$0xff] %vm281, %v1114
    %s1118 = scalar_lea.vmem [#allocation2], 32
    %v1119 = vld [vmem:[%s1118] sm:$0xff]
    %v1120 = vsel %vm281, %v1009, 0
    %1122 = vmatprep.subr.mxu0 0.0
    %1123 = vmatpush1.msra.mxu0 %v261
    %1124 = vmatprep.subr.mxu0 0.0
    %1125 = vmatpush1.msra.mxu0 %v262
    %1126 = vmatprep.subr.mxu0 0.0
    %1127 = vmatpush1.msra.mxu0 %v263
    %1128 = vmatprep.subr.mxu0 0.0
    %1129 = vmatpush1.msra.mxu0 %v264
    %1130 = vmatprep.subr.mxu0 0.0
    %1131 = vmatpush1.msra.mxu0 0.0
    %1132 = vmatprep.subr.mxu0 0.0
    %1133 = vmatpush1.msra.mxu0 0.0
    %1134 = vmatprep.subr.mxu0 0.0
    %1135 = vmatpush1.msra.mxu0 0.0
    %1136 = vmatprep.subr.mxu0 0.0
    %1137 = vmatpush1.msra.mxu0 0.0
    %1138 = vmatprep.subr.mxu0 0.0
    %1139 = vmatpush1.msra.mxu0 0.0
    %1140 = vmatprep.subr.mxu0 0.0
    %1141 = vmatpush1.msra.mxu0 0.0
    %1142 = vmatprep.subr.mxu0 0.0
    %1143 = vmatpush1.msra.mxu0 0.0
    %1144 = vmatprep.subr.mxu0 0.0
    %1145 = vmatpush1.msra.mxu0 0.0
    %1146 = vmatprep.subr.mxu0 0.0
    %1147 = vmatpush1.msra.mxu0 0.0
    %1148 = vmatprep.subr.mxu0 0.0
    %1149 = vmatpush1.msra.mxu0 0.0
    %1150 = vmatprep.subr.mxu0 0.0
    %1151 = vmatpush1.msra.mxu0 0.0
    %1152 = vmatprep.subr.mxu0 0.0
    %1153 = vmatpush1.msra.mxu0 0.0
    %1154 = vmatprep.subr.mxu0 0.0
    %1155 = vmatpush1.msra.mxu0 0.0
    %1156 = vmatprep.subr.mxu0 0.0
    %1157 = vmatpush1.msra.mxu0 0.0
    %1158 = vmatprep.subr.mxu0 0.0
    %1159 = vmatpush1.msra.mxu0 0.0
    %1160 = vmatprep.subr.mxu0 0.0
    %1161 = vmatpush1.msra.mxu0 0.0
    %1162 = vmatprep.subr.mxu0 0.0
    %1163 = vmatpush1.msra.mxu0 0.0
    %1164 = vmatprep.subr.mxu0 0.0
    %1165 = vmatpush1.msra.mxu0 0.0
    %1166 = vmatprep.subr.mxu0 0.0
    %1167 = vmatpush1.msra.mxu0 0.0
    %1168 = vmatprep.subr.mxu0 0.0
    %1169 = vmatpush1.msra.mxu0 0.0
    %1170 = vmatprep.subr.mxu0 0.0
    %1171 = vmatpush1.msra.mxu0 0.0
    %1172 = vmatprep.subr.mxu0 0.0
    %1173 = vmatpush1.msra.mxu0 0.0
    %1174 = vmatprep.subr.mxu0 0.0
    %1175 = vmatpush1.msra.mxu0 0.0
    %1176 = vmatprep.subr.mxu0 0.0
    %1177 = vmatpush1.msra.mxu0 0.0
    %1178 = vmatprep.subr.mxu0 0.0
    %1179 = vmatpush1.msra.mxu0 0.0
    %1180 = vmatprep.subr.mxu0 0.0
    %1181 = vmatpush1.msra.mxu0 0.0
    %1182 = vmatprep.subr.mxu0 0.0
    %1183 = vmatpush1.msra.mxu0 0.0
    %1184 = vmatprep.subr.mxu0 0.0
    %1185 = vmatpush1.msra.mxu0 0.0
    %1186 = vmatprep.mubr.f32.mxu0 0.0
    %1187 = vmatmul.mubr.f32.gmra.mrb[0].mxu0 %v1120
    %v1188 = vpop.f32.mrb[0].mxu0
    %v1189 = vadd.f32 0.0, %v1188
    %v1190 = vpop.f32.mrb[0].mxu0
    %1191 = vdwg.mxu0
    %v1192 = vadd.f32 %v1119, %v1189
    %v1193 = vxor.u32 %v1192, 2147483648
    %v1194 = vmul.f32 %v1193, 1.442695
    %v1195 = vpow.pop %v1194
    %v1196 = vadd.f32 %v1195, 1.0
    %v1197 = vrcp.pop %v1196
    %v1198 = vmul.f32 1.0, %v1197
    %v1199 = vtanh.pop %v1192
    %v1200 = vmul.f32 %v1198, %v1000
    %1202 = vrot.lane.b32.xlu0 %v1199, 64
    %v1203 = vpop.permute.xlu0 %1202
    %v1205 = vmul.f32 %v1198, %v1203
    %1207 = vrot.lane.b32.xlu0 %v1205, 32
    %v1208 = vpop.permute.xlu0 %1207
    %v1210 = vadd.f32 %v1200, %v1208
    %v1211 = vtanh.pop %v1210
    %1213 = vrot.lane.b32.xlu0 %v1211, 64
    %v1214 = vpop.permute.xlu0 %1213
    %v1216 = vmul.f32 %v1198, %v1214
    %1218 = vrot.lane.b32.xlu0 %v1216, 32
    %v1219 = vpop.permute.xlu0 %1218
    %1221 = vrot.lane.b32.xlu0 %v1111, 64
    %v1222 = vpop.permute.xlu0 %1221
    %v1224 = vsel %vm281, %v1219, %v1222
    %v1226 = vsel %vm385, %v1224, 0
    %1228 = vmatprep.subr.mxu0 0.0
    %1229 = vmatpush1.msra.mxu0 %v265
    %1230 = vmatprep.subr.mxu0 0.0
    %1231 = vmatpush1.msra.mxu0 %v266
    %1232 = vmatprep.subr.mxu0 0.0
    %1233 = vmatpush1.msra.mxu0 %v267
    %1234 = vmatprep.subr.mxu0 0.0
    %1235 = vmatpush1.msra.mxu0 %v268
    %1236 = vmatprep.subr.mxu0 0.0
    %1237 = vmatpush1.msra.mxu0 %v269
    %1238 = vmatprep.subr.mxu0 0.0
    %1239 = vmatpush1.msra.mxu0 %v270
    %1240 = vmatprep.subr.mxu0 0.0
    %1241 = vmatpush1.msra.mxu0 %v271
    %1242 = vmatprep.subr.mxu0 0.0
    %1243 = vmatpush1.msra.mxu0 %v272
    %1244 = vmatprep.subr.mxu0 0.0
    %1245 = vmatpush1.msra.mxu0 0.0
    %1246 = vmatprep.subr.mxu0 0.0
    %1247 = vmatpush1.msra.mxu0 0.0
    %1248 = vmatprep.subr.mxu0 0.0
    %1249 = vmatpush1.msra.mxu0 0.0
    %1250 = vmatprep.subr.mxu0 0.0
    %1251 = vmatpush1.msra.mxu0 0.0
    %1252 = vmatprep.subr.mxu0 0.0
    %1253 = vmatpush1.msra.mxu0 0.0
    %1254 = vmatprep.subr.mxu0 0.0
    %1255 = vmatpush1.msra.mxu0 0.0
    %1256 = vmatprep.subr.mxu0 0.0
    %1257 = vmatpush1.msra.mxu0 0.0
    %1258 = vmatprep.subr.mxu0 0.0
    %1259 = vmatpush1.msra.mxu0 0.0
    %1260 = vmatprep.subr.mxu0 0.0
    %1261 = vmatpush1.msra.mxu0 0.0
    %1262 = vmatprep.subr.mxu0 0.0
    %1263 = vmatpush1.msra.mxu0 0.0
    %1264 = vmatprep.subr.mxu0 0.0
    %1265 = vmatpush1.msra.mxu0 0.0
    %1266 = vmatprep.subr.mxu0 0.0
    %1267 = vmatpush1.msra.mxu0 0.0
    %1268 = vmatprep.subr.mxu0 0.0
    %1269 = vmatpush1.msra.mxu0 0.0
    %1270 = vmatprep.subr.mxu0 0.0
    %1271 = vmatpush1.msra.mxu0 0.0
    %1272 = vmatprep.subr.mxu0 0.0
    %1273 = vmatpush1.msra.mxu0 0.0
    %1274 = vmatprep.subr.mxu0 0.0
    %1275 = vmatpush1.msra.mxu0 0.0
    %1276 = vmatprep.subr.mxu0 0.0
    %1277 = vmatpush1.msra.mxu0 0.0
    %1278 = vmatprep.subr.mxu0 0.0
    %1279 = vmatpush1.msra.mxu0 0.0
    %1280 = vmatprep.subr.mxu0 0.0
    %1281 = vmatpush1.msra.mxu0 0.0
    %1282 = vmatprep.subr.mxu0 0.0
    %1283 = vmatpush1.msra.mxu0 0.0
    %1284 = vmatprep.subr.mxu0 0.0
    %1285 = vmatpush1.msra.mxu0 0.0
    %1286 = vmatprep.subr.mxu0 0.0
    %1287 = vmatpush1.msra.mxu0 0.0
    %1288 = vmatprep.subr.mxu0 0.0
    %1289 = vmatpush1.msra.mxu0 0.0
    %1290 = vmatprep.subr.mxu0 0.0
    %1291 = vmatpush1.msra.mxu0 0.0
    %1292 = vmatprep.mubr.f32.mxu0 0.0
    %1293 = vmatmul.mubr.f32.gmra.mrb[0].mxu0 %v1226
    %v1294 = vpop.f32.mrb[0].mxu0
    %v1295 = vadd.f32 %v278, %v1294
    %v1296 = vpop.f32.mrb[0].mxu0
    %1297 = vdwg.mxu0
    %v1298 = vxor.u32 %v1295, 2147483648
    %v1299 = vmul.f32 %v1298, 1.442695
    %v1300 = vpow.pop %v1299
    %v1301 = vadd.f32 %v1300, 1.0
    %v1302 = vrcp.pop %v1301
    %v1303 = vmul.f32 1.0, %v1302
    %v1304 = vtanh.pop %v1295
    %v1305 = vmul.f32 %v1303, %v1105
    %1307 = vrot.lane.b32.xlu0 %v1304, 64
    %v1308 = vpop.permute.xlu0 %1307
    %v1310 = vmul.f32 %v1303, %v1308
    %1312 = vrot.lane.b32.xlu0 %v1310, 32
    %v1313 = vpop.permute.xlu0 %1312
    %v1315 = vadd.f32 %v1305, %v1313
    %v1316 = vtanh.pop %v1315
    %1318 = vrot.lane.b32.xlu0 %v1316, 64
    %v1319 = vpop.permute.xlu0 %1318
    %v1321 = vmul.f32 %v1303, %v1319
    %1323 = vrot.lane.b32.xlu0 %v1321, 32
    %v1324 = vpop.permute.xlu0 %1323
    %s1326 = scalar_lea.vmem [#allocation3], 32
    %1327 = vst.msk [vmem:[%s1326] sm:$0xff] %vm281, %v1324
    %s1328 = scalar_lea.vmem [#allocation2], 40
    %v1329 = vld [vmem:[%s1328] sm:$0xff]
    %v1330 = vsel %vm281, %v1219, 0
    %1332 = vmatprep.subr.mxu0 0.0
    %1333 = vmatpush1.msra.mxu0 %v261
    %1334 = vmatprep.subr.mxu0 0.0
    %1335 = vmatpush1.msra.mxu0 %v262
    %1336 = vmatprep.subr.mxu0 0.0
    %1337 = vmatpush1.msra.mxu0 %v263
    %1338 = vmatprep.subr.mxu0 0.0
    %1339 = vmatpush1.msra.mxu0 %v264
    %1340 = vmatprep.subr.mxu0 0.0
    %1341 = vmatpush1.msra.mxu0 0.0
    %1342 = vmatprep.subr.mxu0 0.0
    %1343 = vmatpush1.msra.mxu0 0.0
    %1344 = vmatprep.subr.mxu0 0.0
    %1345 = vmatpush1.msra.mxu0 0.0
    %1346 = vmatprep.subr.mxu0 0.0
    %1347 = vmatpush1.msra.mxu0 0.0
    %1348 = vmatprep.subr.mxu0 0.0
    %1349 = vmatpush1.msra.mxu0 0.0
    %1350 = vmatprep.subr.mxu0 0.0
    %1351 = vmatpush1.msra.mxu0 0.0
    %1352 = vmatprep.subr.mxu0 0.0
    %1353 = vmatpush1.msra.mxu0 0.0
    %1354 = vmatprep.subr.mxu0 0.0
    %1355 = vmatpush1.msra.mxu0 0.0
    %1356 = vmatprep.subr.mxu0 0.0
    %1357 = vmatpush1.msra.mxu0 0.0
    %1358 = vmatprep.subr.mxu0 0.0
    %1359 = vmatpush1.msra.mxu0 0.0
    %1360 = vmatprep.subr.mxu0 0.0
    %1361 = vmatpush1.msra.mxu0 0.0
    %1362 = vmatprep.subr.mxu0 0.0
    %1363 = vmatpush1.msra.mxu0 0.0
    %1364 = vmatprep.subr.mxu0 0.0
    %1365 = vmatpush1.msra.mxu0 0.0
    %1366 = vmatprep.subr.mxu0 0.0
    %1367 = vmatpush1.msra.mxu0 0.0
    %1368 = vmatprep.subr.mxu0 0.0
    %1369 = vmatpush1.msra.mxu0 0.0
    %1370 = vmatprep.subr.mxu0 0.0
    %1371 = vmatpush1.msra.mxu0 0.0
    %1372 = vmatprep.subr.mxu0 0.0
    %1373 = vmatpush1.msra.mxu0 0.0
    %1374 = vmatprep.subr.mxu0 0.0
    %1375 = vmatpush1.msra.mxu0 0.0
    %1376 = vmatprep.subr.mxu0 0.0
    %1377 = vmatpush1.msra.mxu0 0.0
    %1378 = vmatprep.subr.mxu0 0.0
    %1379 = vmatpush1.msra.mxu0 0.0
    %1380 = vmatprep.subr.mxu0 0.0
    %1381 = vmatpush1.msra.mxu0 0.0
    %1382 = vmatprep.subr.mxu0 0.0
    %1383 = vmatpush1.msra.mxu0 0.0
    %1384 = vmatprep.subr.mxu0 0.0
    %1385 = vmatpush1.msra.mxu0 0.0
    %1386 = vmatprep.subr.mxu0 0.0
    %1387 = vmatpush1.msra.mxu0 0.0
    %1388 = vmatprep.subr.mxu0 0.0
    %1389 = vmatpush1.msra.mxu0 0.0
    %1390 = vmatprep.subr.mxu0 0.0
    %1391 = vmatpush1.msra.mxu0 0.0
    %1392 = vmatprep.subr.mxu0 0.0
    %1393 = vmatpush1.msra.mxu0 0.0
    %1394 = vmatprep.subr.mxu0 0.0
    %1395 = vmatpush1.msra.mxu0 0.0
    %1396 = vmatprep.mubr.f32.mxu0 0.0
    %1397 = vmatmul.mubr.f32.gmra.mrb[0].mxu0 %v1330
    %v1398 = vpop.f32.mrb[0].mxu0
    %v1399 = vadd.f32 0.0, %v1398
    %v1400 = vpop.f32.mrb[0].mxu0
    %1401 = vdwg.mxu0
    %v1402 = vadd.f32 %v1329, %v1399
    %v1403 = vxor.u32 %v1402, 2147483648
    %v1404 = vmul.f32 %v1403, 1.442695
    %v1405 = vpow.pop %v1404
    %v1406 = vadd.f32 %v1405, 1.0
    %v1407 = vrcp.pop %v1406
    %v1408 = vmul.f32 1.0, %v1407
    %v1409 = vtanh.pop %v1402
    %v1410 = vmul.f32 %v1408, %v1210
    %1412 = vrot.lane.b32.xlu0 %v1409, 64
    %v1413 = vpop.permute.xlu0 %1412
    %v1415 = vmul.f32 %v1408, %v1413
    %1417 = vrot.lane.b32.xlu0 %v1415, 32
    %v1418 = vpop.permute.xlu0 %1417
    %v1420 = vadd.f32 %v1410, %v1418
    %v1421 = vtanh.pop %v1420
    %1423 = vrot.lane.b32.xlu0 %v1421, 64
    %v1424 = vpop.permute.xlu0 %1423
    %v1426 = vmul.f32 %v1408, %v1424
    %1428 = vrot.lane.b32.xlu0 %v1426, 32
    %v1429 = vpop.permute.xlu0 %1428
    %1431 = vrot.lane.b32.xlu0 %v1321, 64
    %v1432 = vpop.permute.xlu0 %1431
    %v1434 = vsel %vm281, %v1429, %v1432
    %v1436 = vsel %vm385, %v1434, 0
    %1438 = vmatprep.subr.mxu0 0.0
    %1439 = vmatpush1.msra.mxu0 %v265
    %1440 = vmatprep.subr.mxu0 0.0
    %1441 = vmatpush1.msra.mxu0 %v266
    %1442 = vmatprep.subr.mxu0 0.0
    %1443 = vmatpush1.msra.mxu0 %v267
    %1444 = vmatprep.subr.mxu0 0.0
    %1445 = vmatpush1.msra.mxu0 %v268
    %1446 = vmatprep.subr.mxu0 0.0
    %1447 = vmatpush1.msra.mxu0 %v269
    %1448 = vmatprep.subr.mxu0 0.0
    %1449 = vmatpush1.msra.mxu0 %v270
    %1450 = vmatprep.subr.mxu0 0.0
    %1451 = vmatpush1.msra.mxu0 %v271
    %1452 = vmatprep.subr.mxu0 0.0
    %1453 = vmatpush1.msra.mxu0 %v272
    %1454 = vmatprep.subr.mxu0 0.0
    %1455 = vmatpush1.msra.mxu0 0.0
    %1456 = vmatprep.subr.mxu0 0.0
    %1457 = vmatpush1.msra.mxu0 0.0
    %1458 = vmatprep.subr.mxu0 0.0
    %1459 = vmatpush1.msra.mxu0 0.0
    %1460 = vmatprep.subr.mxu0 0.0
    %1461 = vmatpush1.msra.mxu0 0.0
    %1462 = vmatprep.subr.mxu0 0.0
    %1463 = vmatpush1.msra.mxu0 0.0
    %1464 = vmatprep.subr.mxu0 0.0
    %1465 = vmatpush1.msra.mxu0 0.0
    %1466 = vmatprep.subr.mxu0 0.0
    %1467 = vmatpush1.msra.mxu0 0.0
    %1468 = vmatprep.subr.mxu0 0.0
    %1469 = vmatpush1.msra.mxu0 0.0
    %1470 = vmatprep.subr.mxu0 0.0
    %1471 = vmatpush1.msra.mxu0 0.0
    %1472 = vmatprep.subr.mxu0 0.0
    %1473 = vmatpush1.msra.mxu0 0.0
    %1474 = vmatprep.subr.mxu0 0.0
    %1475 = vmatpush1.msra.mxu0 0.0
    %1476 = vmatprep.subr.mxu0 0.0
    %1477 = vmatpush1.msra.mxu0 0.0
    %1478 = vmatprep.subr.mxu0 0.0
    %1479 = vmatpush1.msra.mxu0 0.0
    %1480 = vmatprep.subr.mxu0 0.0
    %1481 = vmatpush1.msra.mxu0 0.0
    %1482 = vmatprep.subr.mxu0 0.0
    %1483 = vmatpush1.msra.mxu0 0.0
    %1484 = vmatprep.subr.mxu0 0.0
    %1485 = vmatpush1.msra.mxu0 0.0
    %1486 = vmatprep.subr.mxu0 0.0
    %1487 = vmatpush1.msra.mxu0 0.0
    %1488 = vmatprep.subr.mxu0 0.0
    %1489 = vmatpush1.msra.mxu0 0.0
    %1490 = vmatprep.subr.mxu0 0.0
    %1491 = vmatpush1.msra.mxu0 0.0
    %1492 = vmatprep.subr.mxu0 0.0
    %1493 = vmatpush1.msra.mxu0 0.0
    %1494 = vmatprep.subr.mxu0 0.0
    %1495 = vmatpush1.msra.mxu0 0.0
    %1496 = vmatprep.subr.mxu0 0.0
    %1497 = vmatpush1.msra.mxu0 0.0
    %1498 = vmatprep.subr.mxu0 0.0
    %1499 = vmatpush1.msra.mxu0 0.0
    %1500 = vmatprep.subr.mxu0 0.0
    %1501 = vmatpush1.msra.mxu0 0.0
    %1502 = vmatprep.mubr.f32.mxu0 0.0
    %1503 = vmatmul.mubr.f32.gmra.mrb[0].mxu0 %v1436
    %v1504 = vpop.f32.mrb[0].mxu0
    %v1505 = vadd.f32 %v278, %v1504
    %v1506 = vpop.f32.mrb[0].mxu0
    %1507 = vdwg.mxu0
    %v1508 = vxor.u32 %v1505, 2147483648
    %v1509 = vmul.f32 %v1508, 1.442695
    %v1510 = vpow.pop %v1509
    %v1511 = vadd.f32 %v1510, 1.0
    %v1512 = vrcp.pop %v1511
    %v1513 = vmul.f32 1.0, %v1512
    %v1514 = vtanh.pop %v1505
    %v1515 = vmul.f32 %v1513, %v1315
    %1517 = vrot.lane.b32.xlu0 %v1514, 64
    %v1518 = vpop.permute.xlu0 %1517
    %v1520 = vmul.f32 %v1513, %v1518
    %1522 = vrot.lane.b32.xlu0 %v1520, 32
    %v1523 = vpop.permute.xlu0 %1522
    %v1525 = vadd.f32 %v1515, %v1523
    %v1526 = vtanh.pop %v1525
    %1528 = vrot.lane.b32.xlu0 %v1526, 64
    %v1529 = vpop.permute.xlu0 %1528
    %v1531 = vmul.f32 %v1513, %v1529
    %1533 = vrot.lane.b32.xlu0 %v1531, 32
    %v1534 = vpop.permute.xlu0 %1533
    %s1536 = scalar_lea.vmem [#allocation3], 40
    %1537 = vst.msk [vmem:[%s1536] sm:$0xff] %vm281, %v1534
    %s1538 = scalar_lea.vmem [#allocation2], 48
    %v1539 = vld [vmem:[%s1538] sm:$0xff]
    %v1540 = vsel %vm281, %v1429, 0
    %1542 = vmatprep.subr.mxu0 0.0
    %1543 = vmatpush1.msra.mxu0 %v261
    %1544 = vmatprep.subr.mxu0 0.0
    %1545 = vmatpush1.msra.mxu0 %v262
    %1546 = vmatprep.subr.mxu0 0.0
    %1547 = vmatpush1.msra.mxu0 %v263
    %1548 = vmatprep.subr.mxu0 0.0
    %1549 = vmatpush1.msra.mxu0 %v264
    %1550 = vmatprep.subr.mxu0 0.0
    %1551 = vmatpush1.msra.mxu0 0.0
    %1552 = vmatprep.subr.mxu0 0.0
    %1553 = vmatpush1.msra.mxu0 0.0
    %1554 = vmatprep.subr.mxu0 0.0
    %1555 = vmatpush1.msra.mxu0 0.0
    %1556 = vmatprep.subr.mxu0 0.0
    %1557 = vmatpush1.msra.mxu0 0.0
    %1558 = vmatprep.subr.mxu0 0.0
    %1559 = vmatpush1.msra.mxu0 0.0
    %1560 = vmatprep.subr.mxu0 0.0
    %1561 = vmatpush1.msra.mxu0 0.0
    %1562 = vmatprep.subr.mxu0 0.0
    %1563 = vmatpush1.msra.mxu0 0.0
    %1564 = vmatprep.subr.mxu0 0.0
    %1565 = vmatpush1.msra.mxu0 0.0
    %1566 = vmatprep.subr.mxu0 0.0
    %1567 = vmatpush1.msra.mxu0 0.0
    %1568 = vmatprep.subr.mxu0 0.0
    %1569 = vmatpush1.msra.mxu0 0.0
    %1570 = vmatprep.subr.mxu0 0.0
    %1571 = vmatpush1.msra.mxu0 0.0
    %1572 = vmatprep.subr.mxu0 0.0
    %1573 = vmatpush1.msra.mxu0 0.0
    %1574 = vmatprep.subr.mxu0 0.0
    %1575 = vmatpush1.msra.mxu0 0.0
    %1576 = vmatprep.subr.mxu0 0.0
    %1577 = vmatpush1.msra.mxu0 0.0
    %1578 = vmatprep.subr.mxu0 0.0
    %1579 = vmatpush1.msra.mxu0 0.0
    %1580 = vmatprep.subr.mxu0 0.0
    %1581 = vmatpush1.msra.mxu0 0.0
    %1582 = vmatprep.subr.mxu0 0.0
    %1583 = vmatpush1.msra.mxu0 0.0
    %1584 = vmatprep.subr.mxu0 0.0
    %1585 = vmatpush1.msra.mxu0 0.0
    %1586 = vmatprep.subr.mxu0 0.0
    %1587 = vmatpush1.msra.mxu0 0.0
    %1588 = vmatprep.subr.mxu0 0.0
    %1589 = vmatpush1.msra.mxu0 0.0
    %1590 = vmatprep.subr.mxu0 0.0
    %1591 = vmatpush1.msra.mxu0 0.0
    %1592 = vmatprep.subr.mxu0 0.0
    %1593 = vmatpush1.msra.mxu0 0.0
    %1594 = vmatprep.subr.mxu0 0.0
    %1595 = vmatpush1.msra.mxu0 0.0
    %1596 = vmatprep.subr.mxu0 0.0
    %1597 = vmatpush1.msra.mxu0 0.0
    %1598 = vmatprep.subr.mxu0 0.0
    %1599 = vmatpush1.msra.mxu0 0.0
    %1600 = vmatprep.subr.mxu0 0.0
    %1601 = vmatpush1.msra.mxu0 0.0
    %1602 = vmatprep.subr.mxu0 0.0
    %1603 = vmatpush1.msra.mxu0 0.0
    %1604 = vmatprep.subr.mxu0 0.0
    %1605 = vmatpush1.msra.mxu0 0.0
    %1606 = vmatprep.mubr.f32.mxu0 0.0
    %1607 = vmatmul.mubr.f32.gmra.mrb[0].mxu0 %v1540
    %v1608 = vpop.f32.mrb[0].mxu0
    %v1609 = vadd.f32 0.0, %v1608
    %v1610 = vpop.f32.mrb[0].mxu0
    %1611 = vdwg.mxu0
    %v1612 = vadd.f32 %v1539, %v1609
    %v1613 = vxor.u32 %v1612, 2147483648
    %v1614 = vmul.f32 %v1613, 1.442695
    %v1615 = vpow.pop %v1614
    %v1616 = vadd.f32 %v1615, 1.0
    %v1617 = vrcp.pop %v1616
    %v1618 = vmul.f32 1.0, %v1617
    %v1619 = vtanh.pop %v1612
    %v1620 = vmul.f32 %v1618, %v1420
    %1622 = vrot.lane.b32.xlu0 %v1619, 64
    %v1623 = vpop.permute.xlu0 %1622
    %v1625 = vmul.f32 %v1618, %v1623
    %1627 = vrot.lane.b32.xlu0 %v1625, 32
    %v1628 = vpop.permute.xlu0 %1627
    %v1630 = vadd.f32 %v1620, %v1628
    %v1631 = vtanh.pop %v1630
    %1633 = vrot.lane.b32.xlu0 %v1631, 64
    %v1634 = vpop.permute.xlu0 %1633
    %v1636 = vmul.f32 %v1618, %v1634
    %1638 = vrot.lane.b32.xlu0 %v1636, 32
    %v1639 = vpop.permute.xlu0 %1638
    %1641 = vrot.lane.b32.xlu0 %v1531, 64
    %v1642 = vpop.permute.xlu0 %1641
    %v1644 = vsel %vm281, %v1639, %v1642
    %v1646 = vsel %vm385, %v1644, 0
    %1648 = vmatprep.subr.mxu0 0.0
    %1649 = vmatpush1.msra.mxu0 %v265
    %1650 = vmatprep.subr.mxu0 0.0
    %1651 = vmatpush1.msra.mxu0 %v266
    %1652 = vmatprep.subr.mxu0 0.0
    %1653 = vmatpush1.msra.mxu0 %v267
    %1654 = vmatprep.subr.mxu0 0.0
    %1655 = vmatpush1.msra.mxu0 %v268
    %1656 = vmatprep.subr.mxu0 0.0
    %1657 = vmatpush1.msra.mxu0 %v269
    %1658 = vmatprep.subr.mxu0 0.0
    %1659 = vmatpush1.msra.mxu0 %v270
    %1660 = vmatprep.subr.mxu0 0.0
    %1661 = vmatpush1.msra.mxu0 %v271
    %1662 = vmatprep.subr.mxu0 0.0
    %1663 = vmatpush1.msra.mxu0 %v272
    %1664 = vmatprep.subr.mxu0 0.0
    %1665 = vmatpush1.msra.mxu0 0.0
    %1666 = vmatprep.subr.mxu0 0.0
    %1667 = vmatpush1.msra.mxu0 0.0
    %1668 = vmatprep.subr.mxu0 0.0
    %1669 = vmatpush1.msra.mxu0 0.0
    %1670 = vmatprep.subr.mxu0 0.0
    %1671 = vmatpush1.msra.mxu0 0.0
    %1672 = vmatprep.subr.mxu0 0.0
    %1673 = vmatpush1.msra.mxu0 0.0
    %1674 = vmatprep.subr.mxu0 0.0
    %1675 = vmatpush1.msra.mxu0 0.0
    %1676 = vmatprep.subr.mxu0 0.0
    %1677 = vmatpush1.msra.mxu0 0.0
    %1678 = vmatprep.subr.mxu0 0.0
    %1679 = vmatpush1.msra.mxu0 0.0
    %1680 = vmatprep.subr.mxu0 0.0
    %1681 = vmatpush1.msra.mxu0 0.0
    %1682 = vmatprep.subr.mxu0 0.0
    %1683 = vmatpush1.msra.mxu0 0.0
    %1684 = vmatprep.subr.mxu0 0.0
    %1685 = vmatpush1.msra.mxu0 0.0
    %1686 = vmatprep.subr.mxu0 0.0
    %1687 = vmatpush1.msra.mxu0 0.0
    %1688 = vmatprep.subr.mxu0 0.0
    %1689 = vmatpush1.msra.mxu0 0.0
    %1690 = vmatprep.subr.mxu0 0.0
    %1691 = vmatpush1.msra.mxu0 0.0
    %1692 = vmatprep.subr.mxu0 0.0
    %1693 = vmatpush1.msra.mxu0 0.0
    %1694 = vmatprep.subr.mxu0 0.0
    %1695 = vmatpush1.msra.mxu0 0.0
    %1696 = vmatprep.subr.mxu0 0.0
    %1697 = vmatpush1.msra.mxu0 0.0
    %1698 = vmatprep.subr.mxu0 0.0
    %1699 = vmatpush1.msra.mxu0 0.0
    %1700 = vmatprep.subr.mxu0 0.0
    %1701 = vmatpush1.msra.mxu0 0.0
    %1702 = vmatprep.subr.mxu0 0.0
    %1703 = vmatpush1.msra.mxu0 0.0
    %1704 = vmatprep.subr.mxu0 0.0
    %1705 = vmatpush1.msra.mxu0 0.0
    %1706 = vmatprep.subr.mxu0 0.0
    %1707 = vmatpush1.msra.mxu0 0.0
    %1708 = vmatprep.subr.mxu0 0.0
    %1709 = vmatpush1.msra.mxu0 0.0
    %1710 = vmatprep.subr.mxu0 0.0
    %1711 = vmatpush1.msra.mxu0 0.0
    %1712 = vmatprep.mubr.f32.mxu0 0.0
    %1713 = vmatmul.mubr.f32.gmra.mrb[0].mxu0 %v1646
    %v1714 = vpop.f32.mrb[0].mxu0
    %v1715 = vadd.f32 %v278, %v1714
    %v1716 = vpop.f32.mrb[0].mxu0
    %1717 = vdwg.mxu0
    %v1718 = vxor.u32 %v1715, 2147483648
    %v1719 = vmul.f32 %v1718, 1.442695
    %v1720 = vpow.pop %v1719
    %v1721 = vadd.f32 %v1720, 1.0
    %v1722 = vrcp.pop %v1721
    %v1723 = vmul.f32 1.0, %v1722
    %v1724 = vtanh.pop %v1715
    %v1725 = vmul.f32 %v1723, %v1525
    %1727 = vrot.lane.b32.xlu0 %v1724, 64
    %v1728 = vpop.permute.xlu0 %1727
    %v1730 = vmul.f32 %v1723, %v1728
    %1732 = vrot.lane.b32.xlu0 %v1730, 32
    %v1733 = vpop.permute.xlu0 %1732
    %v1735 = vadd.f32 %v1725, %v1733
    %v1736 = vtanh.pop %v1735
    %1738 = vrot.lane.b32.xlu0 %v1736, 64
    %v1739 = vpop.permute.xlu0 %1738
    %v1741 = vmul.f32 %v1723, %v1739
    %1743 = vrot.lane.b32.xlu0 %v1741, 32
    %v1744 = vpop.permute.xlu0 %1743
    %s1746 = scalar_lea.vmem [#allocation3], 48
    %1747 = vst.msk [vmem:[%s1746] sm:$0xff] %vm281, %v1744
    %s1748 = scalar_lea.vmem [#allocation2], 56
    %v1749 = vld [vmem:[%s1748] sm:$0xff]
    %v1750 = vsel %vm281, %v1639, 0
    %1752 = vmatprep.subr.mxu0 0.0
    %1753 = vmatpush1.msra.mxu0 %v261
    %1754 = vmatprep.subr.mxu0 0.0
    %1755 = vmatpush1.msra.mxu0 %v262
    %1756 = vmatprep.subr.mxu0 0.0
    %1757 = vmatpush1.msra.mxu0 %v263
    %1758 = vmatprep.subr.mxu0 0.0
    %1759 = vmatpush1.msra.mxu0 %v264
    %1760 = vmatprep.subr.mxu0 0.0
    %1761 = vmatpush1.msra.mxu0 0.0
    %1762 = vmatprep.subr.mxu0 0.0
    %1763 = vmatpush1.msra.mxu0 0.0
    %1764 = vmatprep.subr.mxu0 0.0
    %1765 = vmatpush1.msra.mxu0 0.0
    %1766 = vmatprep.subr.mxu0 0.0
    %1767 = vmatpush1.msra.mxu0 0.0
    %1768 = vmatprep.subr.mxu0 0.0
    %1769 = vmatpush1.msra.mxu0 0.0
    %1770 = vmatprep.subr.mxu0 0.0
    %1771 = vmatpush1.msra.mxu0 0.0
    %1772 = vmatprep.subr.mxu0 0.0
    %1773 = vmatpush1.msra.mxu0 0.0
    %1774 = vmatprep.subr.mxu0 0.0
    %1775 = vmatpush1.msra.mxu0 0.0
    %1776 = vmatprep.subr.mxu0 0.0
    %1777 = vmatpush1.msra.mxu0 0.0
    %1778 = vmatprep.subr.mxu0 0.0
    %1779 = vmatpush1.msra.mxu0 0.0
    %1780 = vmatprep.subr.mxu0 0.0
    %1781 = vmatpush1.msra.mxu0 0.0
    %1782 = vmatprep.subr.mxu0 0.0
    %1783 = vmatpush1.msra.mxu0 0.0
    %1784 = vmatprep.subr.mxu0 0.0
    %1785 = vmatpush1.msra.mxu0 0.0
    %1786 = vmatprep.subr.mxu0 0.0
    %1787 = vmatpush1.msra.mxu0 0.0
    %1788 = vmatprep.subr.mxu0 0.0
    %1789 = vmatpush1.msra.mxu0 0.0
    %1790 = vmatprep.subr.mxu0 0.0
    %1791 = vmatpush1.msra.mxu0 0.0
    %1792 = vmatprep.subr.mxu0 0.0
    %1793 = vmatpush1.msra.mxu0 0.0
    %1794 = vmatprep.subr.mxu0 0.0
    %1795 = vmatpush1.msra.mxu0 0.0
    %1796 = vmatprep.subr.mxu0 0.0
    %1797 = vmatpush1.msra.mxu0 0.0
    %1798 = vmatprep.subr.mxu0 0.0
    %1799 = vmatpush1.msra.mxu0 0.0
    %1800 = vmatprep.subr.mxu0 0.0
    %1801 = vmatpush1.msra.mxu0 0.0
    %1802 = vmatprep.subr.mxu0 0.0
    %1803 = vmatpush1.msra.mxu0 0.0
    %1804 = vmatprep.subr.mxu0 0.0
    %1805 = vmatpush1.msra.mxu0 0.0
    %1806 = vmatprep.subr.mxu0 0.0
    %1807 = vmatpush1.msra.mxu0 0.0
    %1808 = vmatprep.subr.mxu0 0.0
    %1809 = vmatpush1.msra.mxu0 0.0
    %1810 = vmatprep.subr.mxu0 0.0
    %1811 = vmatpush1.msra.mxu0 0.0
    %1812 = vmatprep.subr.mxu0 0.0
    %1813 = vmatpush1.msra.mxu0 0.0
    %1814 = vmatprep.subr.mxu0 0.0
    %1815 = vmatpush1.msra.mxu0 0.0
    %1816 = vmatprep.mubr.f32.mxu0 0.0
    %1817 = vmatmul.mubr.f32.gmra.mrb[0].mxu0 %v1750
    %v1818 = vpop.f32.mrb[0].mxu0
    %v1819 = vadd.f32 0.0, %v1818
    %v1820 = vpop.f32.mrb[0].mxu0
    %1821 = vdwg.mxu0
    %v1822 = vadd.f32 %v1749, %v1819
    %v1823 = vxor.u32 %v1822, 2147483648
    %v1824 = vmul.f32 %v1823, 1.442695
    %v1825 = vpow.pop %v1824
    %v1826 = vadd.f32 %v1825, 1.0
    %v1827 = vrcp.pop %v1826
    %v1828 = vmul.f32 1.0, %v1827
    %v1829 = vtanh.pop %v1822
    %v1830 = vmul.f32 %v1828, %v1630
    %1832 = vrot.lane.b32.xlu0 %v1829, 64
    %v1833 = vpop.permute.xlu0 %1832
    %v1835 = vmul.f32 %v1828, %v1833
    %1837 = vrot.lane.b32.xlu0 %v1835, 32
    %v1838 = vpop.permute.xlu0 %1837
    %v1840 = vadd.f32 %v1830, %v1838
    %v1841 = vtanh.pop %v1840
    %1843 = vrot.lane.b32.xlu0 %v1841, 64
    %v1844 = vpop.permute.xlu0 %1843
    %v1846 = vmul.f32 %v1828, %v1844
    %1848 = vrot.lane.b32.xlu0 %v1846, 32
    %v1849 = vpop.permute.xlu0 %1848
    %1851 = vrot.lane.b32.xlu0 %v1741, 64
    %v1852 = vpop.permute.xlu0 %1851
    %v1854 = vsel %vm281, %v1849, %v1852
    %v1856 = vsel %vm385, %v1854, 0
    %1858 = vmatprep.subr.mxu0 0.0
    %1859 = vmatpush1.msra.mxu0 %v265
    %1860 = vmatprep.subr.mxu0 0.0
    %1861 = vmatpush1.msra.mxu0 %v266
    %1862 = vmatprep.subr.mxu0 0.0
    %1863 = vmatpush1.msra.mxu0 %v267
    %1864 = vmatprep.subr.mxu0 0.0
    %1865 = vmatpush1.msra.mxu0 %v268
    %1866 = vmatprep.subr.mxu0 0.0
    %1867 = vmatpush1.msra.mxu0 %v269
    %1868 = vmatprep.subr.mxu0 0.0
    %1869 = vmatpush1.msra.mxu0 %v270
    %1870 = vmatprep.subr.mxu0 0.0
    %1871 = vmatpush1.msra.mxu0 %v271
    %1872 = vmatprep.subr.mxu0 0.0
    %1873 = vmatpush1.msra.mxu0 %v272
    %1874 = vmatprep.subr.mxu0 0.0
    %1875 = vmatpush1.msra.mxu0 0.0
    %1876 = vmatprep.subr.mxu0 0.0
    %1877 = vmatpush1.msra.mxu0 0.0
    %1878 = vmatprep.subr.mxu0 0.0
    %1879 = vmatpush1.msra.mxu0 0.0
    %1880 = vmatprep.subr.mxu0 0.0
    %1881 = vmatpush1.msra.mxu0 0.0
    %1882 = vmatprep.subr.mxu0 0.0
    %1883 = vmatpush1.msra.mxu0 0.0
    %1884 = vmatprep.subr.mxu0 0.0
    %1885 = vmatpush1.msra.mxu0 0.0
    %1886 = vmatprep.subr.mxu0 0.0
    %1887 = vmatpush1.msra.mxu0 0.0
    %1888 = vmatprep.subr.mxu0 0.0
    %1889 = vmatpush1.msra.mxu0 0.0
    %1890 = vmatprep.subr.mxu0 0.0
    %1891 = vmatpush1.msra.mxu0 0.0
    %1892 = vmatprep.subr.mxu0 0.0
    %1893 = vmatpush1.msra.mxu0 0.0
    %1894 = vmatprep.subr.mxu0 0.0
    %1895 = vmatpush1.msra.mxu0 0.0
    %1896 = vmatprep.subr.mxu0 0.0
    %1897 = vmatpush1.msra.mxu0 0.0
    %1898 = vmatprep.subr.mxu0 0.0
    %1899 = vmatpush1.msra.mxu0 0.0
    %1900 = vmatprep.subr.mxu0 0.0
    %1901 = vmatpush1.msra.mxu0 0.0
    %1902 = vmatprep.subr.mxu0 0.0
    %1903 = vmatpush1.msra.mxu0 0.0
    %1904 = vmatprep.subr.mxu0 0.0
    %1905 = vmatpush1.msra.mxu0 0.0
    %1906 = vmatprep.subr.mxu0 0.0
    %1907 = vmatpush1.msra.mxu0 0.0
    %1908 = vmatprep.subr.mxu0 0.0
    %1909 = vmatpush1.msra.mxu0 0.0
    %1910 = vmatprep.subr.mxu0 0.0
    %1911 = vmatpush1.msra.mxu0 0.0
    %1912 = vmatprep.subr.mxu0 0.0
    %1913 = vmatpush1.msra.mxu0 0.0
    %1914 = vmatprep.subr.mxu0 0.0
    %1915 = vmatpush1.msra.mxu0 0.0
    %1916 = vmatprep.subr.mxu0 0.0
    %1917 = vmatpush1.msra.mxu0 0.0
    %1918 = vmatprep.subr.mxu0 0.0
    %1919 = vmatpush1.msra.mxu0 0.0
    %1920 = vmatprep.subr.mxu0 0.0
    %1921 = vmatpush1.msra.mxu0 0.0
    %1922 = vmatprep.mubr.f32.mxu0 0.0
    %1923 = vmatmul.mubr.f32.gmra.mrb[0].mxu0 %v1856
    %v1924 = vpop.f32.mrb[0].mxu0
    %v1925 = vadd.f32 %v278, %v1924
    %v1926 = vpop.f32.mrb[0].mxu0
    %1927 = vdwg.mxu0
    %v1928 = vxor.u32 %v1925, 2147483648
    %v1929 = vmul.f32 %v1928, 1.442695
    %v1930 = vpow.pop %v1929
    %v1931 = vadd.f32 %v1930, 1.0
    %v1932 = vrcp.pop %v1931
    %v1933 = vmul.f32 1.0, %v1932
    %v1934 = vtanh.pop %v1925
    %v1935 = vmul.f32 %v1933, %v1735
    %1937 = vrot.lane.b32.xlu0 %v1934, 64
    %v1938 = vpop.permute.xlu0 %1937
    %v1940 = vmul.f32 %v1933, %v1938
    %1942 = vrot.lane.b32.xlu0 %v1940, 32
    %v1943 = vpop.permute.xlu0 %1942
    %v1945 = vadd.f32 %v1935, %v1943
    %v1946 = vtanh.pop %v1945
    %1948 = vrot.lane.b32.xlu0 %v1946, 64
    %v1949 = vpop.permute.xlu0 %1948
    %v1951 = vmul.f32 %v1933, %v1949
    %1953 = vrot.lane.b32.xlu0 %v1951, 32
    %v1954 = vpop.permute.xlu0 %1953
    %s1956 = scalar_lea.vmem [#allocation3], 56
    %1957 = vst.msk [vmem:[%s1956] sm:$0xff] %vm281, %v1954
    %s1958 = scalar_lea.vmem [#allocation2], 64
    %v1959 = vld [vmem:[%s1958] sm:$0xff]
    %v1960 = vsel %vm281, %v1849, 0
    %1962 = vmatprep.subr.mxu0 0.0
    %1963 = vmatpush1.msra.mxu0 %v261
    %1964 = vmatprep.subr.mxu0 0.0
    %1965 = vmatpush1.msra.mxu0 %v262
    %1966 = vmatprep.subr.mxu0 0.0
    %1967 = vmatpush1.msra.mxu0 %v263
    %1968 = vmatprep.subr.mxu0 0.0
    %1969 = vmatpush1.msra.mxu0 %v264
    %1970 = vmatprep.subr.mxu0 0.0
    %1971 = vmatpush1.msra.mxu0 0.0
    %1972 = vmatprep.subr.mxu0 0.0
    %1973 = vmatpush1.msra.mxu0 0.0
    %1974 = vmatprep.subr.mxu0 0.0
    %1975 = vmatpush1.msra.mxu0 0.0
    %1976 = vmatprep.subr.mxu0 0.0
    %1977 = vmatpush1.msra.mxu0 0.0
    %1978 = vmatprep.subr.mxu0 0.0
    %1979 = vmatpush1.msra.mxu0 0.0
    %1980 = vmatprep.subr.mxu0 0.0
    %1981 = vmatpush1.msra.mxu0 0.0
    %1982 = vmatprep.subr.mxu0 0.0
    %1983 = vmatpush1.msra.mxu0 0.0
    %1984 = vmatprep.subr.mxu0 0.0
    %1985 = vmatpush1.msra.mxu0 0.0
    %1986 = vmatprep.subr.mxu0 0.0
    %1987 = vmatpush1.msra.mxu0 0.0
    %1988 = vmatprep.subr.mxu0 0.0
    %1989 = vmatpush1.msra.mxu0 0.0
    %1990 = vmatprep.subr.mxu0 0.0
    %1991 = vmatpush1.msra.mxu0 0.0
    %1992 = vmatprep.subr.mxu0 0.0
    %1993 = vmatpush1.msra.mxu0 0.0
    %1994 = vmatprep.subr.mxu0 0.0
    %1995 = vmatpush1.msra.mxu0 0.0
    %1996 = vmatprep.subr.mxu0 0.0
    %1997 = vmatpush1.msra.mxu0 0.0
    %1998 = vmatprep.subr.mxu0 0.0
    %1999 = vmatpush1.msra.mxu0 0.0
    %2000 = vmatprep.subr.mxu0 0.0
    %2001 = vmatpush1.msra.mxu0 0.0
    %2002 = vmatprep.subr.mxu0 0.0
    %2003 = vmatpush1.msra.mxu0 0.0
    %2004 = vmatprep.subr.mxu0 0.0
    %2005 = vmatpush1.msra.mxu0 0.0
    %2006 = vmatprep.subr.mxu0 0.0
    %2007 = vmatpush1.msra.mxu0 0.0
    %2008 = vmatprep.subr.mxu0 0.0
    %2009 = vmatpush1.msra.mxu0 0.0
    %2010 = vmatprep.subr.mxu0 0.0
    %2011 = vmatpush1.msra.mxu0 0.0
    %2012 = vmatprep.subr.mxu0 0.0
    %2013 = vmatpush1.msra.mxu0 0.0
    %2014 = vmatprep.subr.mxu0 0.0
    %2015 = vmatpush1.msra.mxu0 0.0
    %2016 = vmatprep.subr.mxu0 0.0
    %2017 = vmatpush1.msra.mxu0 0.0
    %2018 = vmatprep.subr.mxu0 0.0
    %2019 = vmatpush1.msra.mxu0 0.0
    %2020 = vmatprep.subr.mxu0 0.0
    %2021 = vmatpush1.msra.mxu0 0.0
    %2022 = vmatprep.subr.mxu0 0.0
    %2023 = vmatpush1.msra.mxu0 0.0
    %2024 = vmatprep.subr.mxu0 0.0
    %2025 = vmatpush1.msra.mxu0 0.0
    %2026 = vmatprep.mubr.f32.mxu0 0.0
    %2027 = vmatmul.mubr.f32.gmra.mrb[0].mxu0 %v1960
    %v2028 = vpop.f32.mrb[0].mxu0
    %v2029 = vadd.f32 0.0, %v2028
    %v2030 = vpop.f32.mrb[0].mxu0
    %2031 = vdwg.mxu0
    %v2032 = vadd.f32 %v1959, %v2029
    %v2033 = vxor.u32 %v2032, 2147483648
    %v2034 = vmul.f32 %v2033, 1.442695
    %v2035 = vpow.pop %v2034
    %v2036 = vadd.f32 %v2035, 1.0
    %v2037 = vrcp.pop %v2036
    %v2038 = vmul.f32 1.0, %v2037
    %v2039 = vtanh.pop %v2032
    %v2040 = vmul.f32 %v2038, %v1840
    %2042 = vrot.lane.b32.xlu0 %v2039, 64
    %v2043 = vpop.permute.xlu0 %2042
    %v2045 = vmul.f32 %v2038, %v2043
    %2047 = vrot.lane.b32.xlu0 %v2045, 32
    %v2048 = vpop.permute.xlu0 %2047
    %v2050 = vadd.f32 %v2040, %v2048
    %v2051 = vtanh.pop %v2050
    %2053 = vrot.lane.b32.xlu0 %v2051, 64
    %v2054 = vpop.permute.xlu0 %2053
    %v2056 = vmul.f32 %v2038, %v2054
    %2058 = vrot.lane.b32.xlu0 %v2056, 32
    %v2059 = vpop.permute.xlu0 %2058
    %2061 = vrot.lane.b32.xlu0 %v1951, 64
    %v2062 = vpop.permute.xlu0 %2061
    %v2064 = vsel %vm281, %v2059, %v2062
    %v2066 = vsel %vm385, %v2064, 0
    %2068 = vmatprep.subr.mxu0 0.0
    %2069 = vmatpush1.msra.mxu0 %v265
    %2070 = vmatprep.subr.mxu0 0.0
    %2071 = vmatpush1.msra.mxu0 %v266
    %2072 = vmatprep.subr.mxu0 0.0
    %2073 = vmatpush1.msra.mxu0 %v267
    %2074 = vmatprep.subr.mxu0 0.0
    %2075 = vmatpush1.msra.mxu0 %v268
    %2076 = vmatprep.subr.mxu0 0.0
    %2077 = vmatpush1.msra.mxu0 %v269
    %2078 = vmatprep.subr.mxu0 0.0
    %2079 = vmatpush1.msra.mxu0 %v270
    %2080 = vmatprep.subr.mxu0 0.0
    %2081 = vmatpush1.msra.mxu0 %v271
    %2082 = vmatprep.subr.mxu0 0.0
    %2083 = vmatpush1.msra.mxu0 %v272
    %2084 = vmatprep.subr.mxu0 0.0
    %2085 = vmatpush1.msra.mxu0 0.0
    %2086 = vmatprep.subr.mxu0 0.0
    %2087 = vmatpush1.msra.mxu0 0.0
    %2088 = vmatprep.subr.mxu0 0.0
    %2089 = vmatpush1.msra.mxu0 0.0
    %2090 = vmatprep.subr.mxu0 0.0
    %2091 = vmatpush1.msra.mxu0 0.0
    %2092 = vmatprep.subr.mxu0 0.0
    %2093 = vmatpush1.msra.mxu0 0.0
    %2094 = vmatprep.subr.mxu0 0.0
    %2095 = vmatpush1.msra.mxu0 0.0
    %2096 = vmatprep.subr.mxu0 0.0
    %2097 = vmatpush1.msra.mxu0 0.0
    %2098 = vmatprep.subr.mxu0 0.0
    %2099 = vmatpush1.msra.mxu0 0.0
    %2100 = vmatprep.subr.mxu0 0.0
    %2101 = vmatpush1.msra.mxu0 0.0
    %2102 = vmatprep.subr.mxu0 0.0
    %2103 = vmatpush1.msra.mxu0 0.0
    %2104 = vmatprep.subr.mxu0 0.0
    %2105 = vmatpush1.msra.mxu0 0.0
    %2106 = vmatprep.subr.mxu0 0.0
    %2107 = vmatpush1.msra.mxu0 0.0
    %2108 = vmatprep.subr.mxu0 0.0
    %2109 = vmatpush1.msra.mxu0 0.0
    %2110 = vmatprep.subr.mxu0 0.0
    %2111 = vmatpush1.msra.mxu0 0.0
    %2112 = vmatprep.subr.mxu0 0.0
    %2113 = vmatpush1.msra.mxu0 0.0
    %2114 = vmatprep.subr.mxu0 0.0
    %2115 = vmatpush1.msra.mxu0 0.0
    %2116 = vmatprep.subr.mxu0 0.0
    %2117 = vmatpush1.msra.mxu0 0.0
    %2118 = vmatprep.subr.mxu0 0.0
    %2119 = vmatpush1.msra.mxu0 0.0
    %2120 = vmatprep.subr.mxu0 0.0
    %2121 = vmatpush1.msra.mxu0 0.0
    %2122 = vmatprep.subr.mxu0 0.0
    %2123 = vmatpush1.msra.mxu0 0.0
    %2124 = vmatprep.subr.mxu0 0.0
    %2125 = vmatpush1.msra.mxu0 0.0
    %2126 = vmatprep.subr.mxu0 0.0
    %2127 = vmatpush1.msra.mxu0 0.0
    %2128 = vmatprep.subr.mxu0 0.0
    %2129 = vmatpush1.msra.mxu0 0.0
    %2130 = vmatprep.subr.mxu0 0.0
    %2131 = vmatpush1.msra.mxu0 0.0
    %2132 = vmatprep.mubr.f32.mxu0 0.0
    %2133 = vmatmul.mubr.f32.gmra.mrb[0].mxu0 %v2066
    %v2134 = vpop.f32.mrb[0].mxu0
    %v2135 = vadd.f32 %v278, %v2134
    %v2136 = vpop.f32.mrb[0].mxu0
    %2137 = vdwg.mxu0
    %v2138 = vxor.u32 %v2135, 2147483648
    %v2139 = vmul.f32 %v2138, 1.442695
    %v2140 = vpow.pop %v2139
    %v2141 = vadd.f32 %v2140, 1.0
    %v2142 = vrcp.pop %v2141
    %v2143 = vmul.f32 1.0, %v2142
    %v2144 = vtanh.pop %v2135
    %v2145 = vmul.f32 %v2143, %v1945
    %2147 = vrot.lane.b32.xlu0 %v2144, 64
    %v2148 = vpop.permute.xlu0 %2147
    %v2150 = vmul.f32 %v2143, %v2148
    %2152 = vrot.lane.b32.xlu0 %v2150, 32
    %v2153 = vpop.permute.xlu0 %2152
    %v2155 = vadd.f32 %v2145, %v2153
    %v2156 = vtanh.pop %v2155
    %2158 = vrot.lane.b32.xlu0 %v2156, 64
    %v2159 = vpop.permute.xlu0 %2158
    %v2161 = vmul.f32 %v2143, %v2159
    %2163 = vrot.lane.b32.xlu0 %v2161, 32
    %v2164 = vpop.permute.xlu0 %2163
    %s2166 = scalar_lea.vmem [#allocation3], 64
    %2167 = vst.msk [vmem:[%s2166] sm:$0xff] %vm281, %v2164
    %s2168 = scalar_lea.vmem [#allocation2], 72
    %v2169 = vld [vmem:[%s2168] sm:$0xff]
    %v2170 = vsel %vm281, %v2059, 0
    %2172 = vmatprep.subr.mxu0 0.0
    %2173 = vmatpush1.msra.mxu0 %v261
    %2174 = vmatprep.subr.mxu0 0.0
    %2175 = vmatpush1.msra.mxu0 %v262
    %2176 = vmatprep.subr.mxu0 0.0
    %2177 = vmatpush1.msra.mxu0 %v263
    %2178 = vmatprep.subr.mxu0 0.0
    %2179 = vmatpush1.msra.mxu0 %v264
    %2180 = vmatprep.subr.mxu0 0.0
    %2181 = vmatpush1.msra.mxu0 0.0
    %2182 = vmatprep.subr.mxu0 0.0
    %2183 = vmatpush1.msra.mxu0 0.0
    %2184 = vmatprep.subr.mxu0 0.0
    %2185 = vmatpush1.msra.mxu0 0.0
    %2186 = vmatprep.subr.mxu0 0.0
    %2187 = vmatpush1.msra.mxu0 0.0
    %2188 = vmatprep.subr.mxu0 0.0
    %2189 = vmatpush1.msra.mxu0 0.0
    %2190 = vmatprep.subr.mxu0 0.0
    %2191 = vmatpush1.msra.mxu0 0.0
    %2192 = vmatprep.subr.mxu0 0.0
    %2193 = vmatpush1.msra.mxu0 0.0
    %2194 = vmatprep.subr.mxu0 0.0
    %2195 = vmatpush1.msra.mxu0 0.0
    %2196 = vmatprep.subr.mxu0 0.0
    %2197 = vmatpush1.msra.mxu0 0.0
    %2198 = vmatprep.subr.mxu0 0.0
    %2199 = vmatpush1.msra.mxu0 0.0
    %2200 = vmatprep.subr.mxu0 0.0
    %2201 = vmatpush1.msra.mxu0 0.0
    %2202 = vmatprep.subr.mxu0 0.0
    %2203 = vmatpush1.msra.mxu0 0.0
    %2204 = vmatprep.subr.mxu0 0.0
    %2205 = vmatpush1.msra.mxu0 0.0
    %2206 = vmatprep.subr.mxu0 0.0
    %2207 = vmatpush1.msra.mxu0 0.0
    %2208 = vmatprep.subr.mxu0 0.0
    %2209 = vmatpush1.msra.mxu0 0.0
    %2210 = vmatprep.subr.mxu0 0.0
    %2211 = vmatpush1.msra.mxu0 0.0
    %2212 = vmatprep.subr.mxu0 0.0
    %2213 = vmatpush1.msra.mxu0 0.0
    %2214 = vmatprep.subr.mxu0 0.0
    %2215 = vmatpush1.msra.mxu0 0.0
    %2216 = vmatprep.subr.mxu0 0.0
    %2217 = vmatpush1.msra.mxu0 0.0
    %2218 = vmatprep.subr.mxu0 0.0
    %2219 = vmatpush1.msra.mxu0 0.0
    %2220 = vmatprep.subr.mxu0 0.0
    %2221 = vmatpush1.msra.mxu0 0.0
    %2222 = vmatprep.subr.mxu0 0.0
    %2223 = vmatpush1.msra.mxu0 0.0
    %2224 = vmatprep.subr.mxu0 0.0
    %2225 = vmatpush1.msra.mxu0 0.0
    %2226 = vmatprep.subr.mxu0 0.0
    %2227 = vmatpush1.msra.mxu0 0.0
    %2228 = vmatprep.subr.mxu0 0.0
    %2229 = vmatpush1.msra.mxu0 0.0
    %2230 = vmatprep.subr.mxu0 0.0
    %2231 = vmatpush1.msra.mxu0 0.0
    %2232 = vmatprep.subr.mxu0 0.0
    %2233 = vmatpush1.msra.mxu0 0.0
    %2234 = vmatprep.subr.mxu0 0.0
    %2235 = vmatpush1.msra.mxu0 0.0
    %2236 = vmatprep.mubr.f32.mxu0 0.0
    %2237 = vmatmul.mubr.f32.gmra.mrb[0].mxu0 %v2170
    %v2238 = vpop.f32.mrb[0].mxu0
    %v2239 = vadd.f32 0.0, %v2238
    %v2240 = vpop.f32.mrb[0].mxu0
    %2241 = vdwg.mxu0
    %v2242 = vadd.f32 %v2169, %v2239
    %v2243 = vxor.u32 %v2242, 2147483648
    %v2244 = vmul.f32 %v2243, 1.442695
    %v2245 = vpow.pop %v2244
    %v2246 = vadd.f32 %v2245, 1.0
    %v2247 = vrcp.pop %v2246
    %v2248 = vmul.f32 1.0, %v2247
    %v2249 = vtanh.pop %v2242
    %v2250 = vmul.f32 %v2248, %v2050
    %2252 = vrot.lane.b32.xlu0 %v2249, 64
    %v2253 = vpop.permute.xlu0 %2252
    %v2255 = vmul.f32 %v2248, %v2253
    %2257 = vrot.lane.b32.xlu0 %v2255, 32
    %v2258 = vpop.permute.xlu0 %2257
    %v2260 = vadd.f32 %v2250, %v2258
    %v2261 = vtanh.pop %v2260
    %2263 = vrot.lane.b32.xlu0 %v2261, 64
    %v2264 = vpop.permute.xlu0 %2263
    %v2266 = vmul.f32 %v2248, %v2264
    %2268 = vrot.lane.b32.xlu0 %v2266, 32
    %v2269 = vpop.permute.xlu0 %2268
    %2271 = vrot.lane.b32.xlu0 %v2161, 64
    %v2272 = vpop.permute.xlu0 %2271
    %v2274 = vsel %vm281, %v2269, %v2272
    %v2276 = vsel %vm385, %v2274, 0
    %2278 = vmatprep.subr.mxu0 0.0
    %2279 = vmatpush1.msra.mxu0 %v265
    %2280 = vmatprep.subr.mxu0 0.0
    %2281 = vmatpush1.msra.mxu0 %v266
    %2282 = vmatprep.subr.mxu0 0.0
    %2283 = vmatpush1.msra.mxu0 %v267
    %2284 = vmatprep.subr.mxu0 0.0
    %2285 = vmatpush1.msra.mxu0 %v268
    %2286 = vmatprep.subr.mxu0 0.0
    %2287 = vmatpush1.msra.mxu0 %v269
    %2288 = vmatprep.subr.mxu0 0.0
    %2289 = vmatpush1.msra.mxu0 %v270
    %2290 = vmatprep.subr.mxu0 0.0
    %2291 = vmatpush1.msra.mxu0 %v271
    %2292 = vmatprep.subr.mxu0 0.0
    %2293 = vmatpush1.msra.mxu0 %v272
    %2294 = vmatprep.subr.mxu0 0.0
    %2295 = vmatpush1.msra.mxu0 0.0
    %2296 = vmatprep.subr.mxu0 0.0
    %2297 = vmatpush1.msra.mxu0 0.0
    %2298 = vmatprep.subr.mxu0 0.0
    %2299 = vmatpush1.msra.mxu0 0.0
    %2300 = vmatprep.subr.mxu0 0.0
    %2301 = vmatpush1.msra.mxu0 0.0
    %2302 = vmatprep.subr.mxu0 0.0
    %2303 = vmatpush1.msra.mxu0 0.0
    %2304 = vmatprep.subr.mxu0 0.0
    %2305 = vmatpush1.msra.mxu0 0.0
    %2306 = vmatprep.subr.mxu0 0.0
    %2307 = vmatpush1.msra.mxu0 0.0
    %2308 = vmatprep.subr.mxu0 0.0
    %2309 = vmatpush1.msra.mxu0 0.0
    %2310 = vmatprep.subr.mxu0 0.0
    %2311 = vmatpush1.msra.mxu0 0.0
    %2312 = vmatprep.subr.mxu0 0.0
    %2313 = vmatpush1.msra.mxu0 0.0
    %2314 = vmatprep.subr.mxu0 0.0
    %2315 = vmatpush1.msra.mxu0 0.0
    %2316 = vmatprep.subr.mxu0 0.0
    %2317 = vmatpush1.msra.mxu0 0.0
    %2318 = vmatprep.subr.mxu0 0.0
    %2319 = vmatpush1.msra.mxu0 0.0
    %2320 = vmatprep.subr.mxu0 0.0
    %2321 = vmatpush1.msra.mxu0 0.0
    %2322 = vmatprep.subr.mxu0 0.0
    %2323 = vmatpush1.msra.mxu0 0.0
    %2324 = vmatprep.subr.mxu0 0.0
    %2325 = vmatpush1.msra.mxu0 0.0
    %2326 = vmatprep.subr.mxu0 0.0
    %2327 = vmatpush1.msra.mxu0 0.0
    %2328 = vmatprep.subr.mxu0 0.0
    %2329 = vmatpush1.msra.mxu0 0.0
    %2330 = vmatprep.subr.mxu0 0.0
    %2331 = vmatpush1.msra.mxu0 0.0
    %2332 = vmatprep.subr.mxu0 0.0
    %2333 = vmatpush1.msra.mxu0 0.0
    %2334 = vmatprep.subr.mxu0 0.0
    %2335 = vmatpush1.msra.mxu0 0.0
    %2336 = vmatprep.subr.mxu0 0.0
    %2337 = vmatpush1.msra.mxu0 0.0
    %2338 = vmatprep.subr.mxu0 0.0
    %2339 = vmatpush1.msra.mxu0 0.0
    %2340 = vmatprep.subr.mxu0 0.0
    %2341 = vmatpush1.msra.mxu0 0.0
    %2342 = vmatprep.mubr.f32.mxu0 0.0
    %2343 = vmatmul.mubr.f32.gmra.mrb[0].mxu0 %v2276
    %v2344 = vpop.f32.mrb[0].mxu0
    %v2345 = vadd.f32 %v278, %v2344
    %v2346 = vpop.f32.mrb[0].mxu0
    %2347 = vdwg.mxu0
    %v2348 = vxor.u32 %v2345, 2147483648
    %v2349 = vmul.f32 %v2348, 1.442695
    %v2350 = vpow.pop %v2349
    %v2351 = vadd.f32 %v2350, 1.0
    %v2352 = vrcp.pop %v2351
    %v2353 = vmul.f32 1.0, %v2352
    %v2354 = vtanh.pop %v2345
    %v2355 = vmul.f32 %v2353, %v2155
    %2357 = vrot.lane.b32.xlu0 %v2354, 64
    %v2358 = vpop.permute.xlu0 %2357
    %v2360 = vmul.f32 %v2353, %v2358
    %2362 = vrot.lane.b32.xlu0 %v2360, 32
    %v2363 = vpop.permute.xlu0 %2362
    %v2365 = vadd.f32 %v2355, %v2363
    %v2366 = vtanh.pop %v2365
    %2368 = vrot.lane.b32.xlu0 %v2366, 64
    %v2369 = vpop.permute.xlu0 %2368
    %v2371 = vmul.f32 %v2353, %v2369
    %2373 = vrot.lane.b32.xlu0 %v2371, 32
    %v2374 = vpop.permute.xlu0 %2373
    %s2376 = scalar_lea.vmem [#allocation3], 72
    %2377 = vst.msk [vmem:[%s2376] sm:$0xff] %vm281, %v2374
    %s2378 = scalar_lea.vmem [#allocation2], 80
    %v2379 = vld [vmem:[%s2378] sm:$0xff]
    %v2380 = vsel %vm281, %v2269, 0
    %2382 = vmatprep.subr.mxu0 0.0
    %2383 = vmatpush1.msra.mxu0 %v261
    %2384 = vmatprep.subr.mxu0 0.0
    %2385 = vmatpush1.msra.mxu0 %v262
    %2386 = vmatprep.subr.mxu0 0.0
    %2387 = vmatpush1.msra.mxu0 %v263
    %2388 = vmatprep.subr.mxu0 0.0
    %2389 = vmatpush1.msra.mxu0 %v264
    %2390 = vmatprep.subr.mxu0 0.0
    %2391 = vmatpush1.msra.mxu0 0.0
    %2392 = vmatprep.subr.mxu0 0.0
    %2393 = vmatpush1.msra.mxu0 0.0
    %2394 = vmatprep.subr.mxu0 0.0
    %2395 = vmatpush1.msra.mxu0 0.0
    %2396 = vmatprep.subr.mxu0 0.0
    %2397 = vmatpush1.msra.mxu0 0.0
    %2398 = vmatprep.subr.mxu0 0.0
    %2399 = vmatpush1.msra.mxu0 0.0
    %2400 = vmatprep.subr.mxu0 0.0
    %2401 = vmatpush1.msra.mxu0 0.0
    %2402 = vmatprep.subr.mxu0 0.0
    %2403 = vmatpush1.msra.mxu0 0.0
    %2404 = vmatprep.subr.mxu0 0.0
    %2405 = vmatpush1.msra.mxu0 0.0
    %2406 = vmatprep.subr.mxu0 0.0
    %2407 = vmatpush1.msra.mxu0 0.0
    %2408 = vmatprep.subr.mxu0 0.0
    %2409 = vmatpush1.msra.mxu0 0.0
    %2410 = vmatprep.subr.mxu0 0.0
    %2411 = vmatpush1.msra.mxu0 0.0
    %2412 = vmatprep.subr.mxu0 0.0
    %2413 = vmatpush1.msra.mxu0 0.0
    %2414 = vmatprep.subr.mxu0 0.0
    %2415 = vmatpush1.msra.mxu0 0.0
    %2416 = vmatprep.subr.mxu0 0.0
    %2417 = vmatpush1.msra.mxu0 0.0
    %2418 = vmatprep.subr.mxu0 0.0
    %2419 = vmatpush1.msra.mxu0 0.0
    %2420 = vmatprep.subr.mxu0 0.0
    %2421 = vmatpush1.msra.mxu0 0.0
    %2422 = vmatprep.subr.mxu0 0.0
    %2423 = vmatpush1.msra.mxu0 0.0
    %2424 = vmatprep.subr.mxu0 0.0
    %2425 = vmatpush1.msra.mxu0 0.0
    %2426 = vmatprep.subr.mxu0 0.0
    %2427 = vmatpush1.msra.mxu0 0.0
    %2428 = vmatprep.subr.mxu0 0.0
    %2429 = vmatpush1.msra.mxu0 0.0
    %2430 = vmatprep.subr.mxu0 0.0
    %2431 = vmatpush1.msra.mxu0 0.0
    %2432 = vmatprep.subr.mxu0 0.0
    %2433 = vmatpush1.msra.mxu0 0.0
    %2434 = vmatprep.subr.mxu0 0.0
    %2435 = vmatpush1.msra.mxu0 0.0
    %2436 = vmatprep.subr.mxu0 0.0
    %2437 = vmatpush1.msra.mxu0 0.0
    %2438 = vmatprep.subr.mxu0 0.0
    %2439 = vmatpush1.msra.mxu0 0.0
    %2440 = vmatprep.subr.mxu0 0.0
    %2441 = vmatpush1.msra.mxu0 0.0
    %2442 = vmatprep.subr.mxu0 0.0
    %2443 = vmatpush1.msra.mxu0 0.0
    %2444 = vmatprep.subr.mxu0 0.0
    %2445 = vmatpush1.msra.mxu0 0.0
    %2446 = vmatprep.mubr.f32.mxu0 0.0
    %2447 = vmatmul.mubr.f32.gmra.mrb[0].mxu0 %v2380
    %v2448 = vpop.f32.mrb[0].mxu0
    %v2449 = vadd.f32 0.0, %v2448
    %v2450 = vpop.f32.mrb[0].mxu0
    %2451 = vdwg.mxu0
    %v2452 = vadd.f32 %v2379, %v2449
    %v2453 = vxor.u32 %v2452, 2147483648
    %v2454 = vmul.f32 %v2453, 1.442695
    %v2455 = vpow.pop %v2454
    %v2456 = vadd.f32 %v2455, 1.0
    %v2457 = vrcp.pop %v2456
    %v2458 = vmul.f32 1.0, %v2457
    %v2459 = vtanh.pop %v2452
    %v2460 = vmul.f32 %v2458, %v2260
    %2462 = vrot.lane.b32.xlu0 %v2459, 64
    %v2463 = vpop.permute.xlu0 %2462
    %v2465 = vmul.f32 %v2458, %v2463
    %2467 = vrot.lane.b32.xlu0 %v2465, 32
    %v2468 = vpop.permute.xlu0 %2467
    %v2470 = vadd.f32 %v2460, %v2468
    %v2471 = vtanh.pop %v2470
    %2473 = vrot.lane.b32.xlu0 %v2471, 64
    %v2474 = vpop.permute.xlu0 %2473
    %v2476 = vmul.f32 %v2458, %v2474
    %2478 = vrot.lane.b32.xlu0 %v2476, 32
    %v2479 = vpop.permute.xlu0 %2478
    %2481 = vrot.lane.b32.xlu0 %v2371, 64
    %v2482 = vpop.permute.xlu0 %2481
    %v2484 = vsel %vm281, %v2479, %v2482
    %v2486 = vsel %vm385, %v2484, 0
    %2488 = vmatprep.subr.mxu0 0.0
    %2489 = vmatpush1.msra.mxu0 %v265
    %2490 = vmatprep.subr.mxu0 0.0
    %2491 = vmatpush1.msra.mxu0 %v266
    %2492 = vmatprep.subr.mxu0 0.0
    %2493 = vmatpush1.msra.mxu0 %v267
    %2494 = vmatprep.subr.mxu0 0.0
    %2495 = vmatpush1.msra.mxu0 %v268
    %2496 = vmatprep.subr.mxu0 0.0
    %2497 = vmatpush1.msra.mxu0 %v269
    %2498 = vmatprep.subr.mxu0 0.0
    %2499 = vmatpush1.msra.mxu0 %v270
    %2500 = vmatprep.subr.mxu0 0.0
    %2501 = vmatpush1.msra.mxu0 %v271
    %2502 = vmatprep.subr.mxu0 0.0
    %2503 = vmatpush1.msra.mxu0 %v272
    %2504 = vmatprep.subr.mxu0 0.0
    %2505 = vmatpush1.msra.mxu0 0.0
    %2506 = vmatprep.subr.mxu0 0.0
    %2507 = vmatpush1.msra.mxu0 0.0
    %2508 = vmatprep.subr.mxu0 0.0
    %2509 = vmatpush1.msra.mxu0 0.0
    %2510 = vmatprep.subr.mxu0 0.0
    %2511 = vmatpush1.msra.mxu0 0.0
    %2512 = vmatprep.subr.mxu0 0.0
    %2513 = vmatpush1.msra.mxu0 0.0
    %2514 = vmatprep.subr.mxu0 0.0
    %2515 = vmatpush1.msra.mxu0 0.0
    %2516 = vmatprep.subr.mxu0 0.0
    %2517 = vmatpush1.msra.mxu0 0.0
    %2518 = vmatprep.subr.mxu0 0.0
    %2519 = vmatpush1.msra.mxu0 0.0
    %2520 = vmatprep.subr.mxu0 0.0
    %2521 = vmatpush1.msra.mxu0 0.0
    %2522 = vmatprep.subr.mxu0 0.0
    %2523 = vmatpush1.msra.mxu0 0.0
    %2524 = vmatprep.subr.mxu0 0.0
    %2525 = vmatpush1.msra.mxu0 0.0
    %2526 = vmatprep.subr.mxu0 0.0
    %2527 = vmatpush1.msra.mxu0 0.0
    %2528 = vmatprep.subr.mxu0 0.0
    %2529 = vmatpush1.msra.mxu0 0.0
    %2530 = vmatprep.subr.mxu0 0.0
    %2531 = vmatpush1.msra.mxu0 0.0
    %2532 = vmatprep.subr.mxu0 0.0
    %2533 = vmatpush1.msra.mxu0 0.0
    %2534 = vmatprep.subr.mxu0 0.0
    %2535 = vmatpush1.msra.mxu0 0.0
    %2536 = vmatprep.subr.mxu0 0.0
    %2537 = vmatpush1.msra.mxu0 0.0
    %2538 = vmatprep.subr.mxu0 0.0
    %2539 = vmatpush1.msra.mxu0 0.0
    %2540 = vmatprep.subr.mxu0 0.0
    %2541 = vmatpush1.msra.mxu0 0.0
    %2542 = vmatprep.subr.mxu0 0.0
    %2543 = vmatpush1.msra.mxu0 0.0
    %2544 = vmatprep.subr.mxu0 0.0
    %2545 = vmatpush1.msra.mxu0 0.0
    %2546 = vmatprep.subr.mxu0 0.0
    %2547 = vmatpush1.msra.mxu0 0.0
    %2548 = vmatprep.subr.mxu0 0.0
    %2549 = vmatpush1.msra.mxu0 0.0
    %2550 = vmatprep.subr.mxu0 0.0
    %2551 = vmatpush1.msra.mxu0 0.0
    %2552 = vmatprep.mubr.f32.mxu0 0.0
    %2553 = vmatmul.mubr.f32.gmra.mrb[0].mxu0 %v2486
    %v2554 = vpop.f32.mrb[0].mxu0
    %v2555 = vadd.f32 %v278, %v2554
    %v2556 = vpop.f32.mrb[0].mxu0
    %2557 = vdwg.mxu0
    %v2558 = vxor.u32 %v2555, 2147483648
    %v2559 = vmul.f32 %v2558, 1.442695
    %v2560 = vpow.pop %v2559
    %v2561 = vadd.f32 %v2560, 1.0
    %v2562 = vrcp.pop %v2561
    %v2563 = vmul.f32 1.0, %v2562
    %v2564 = vtanh.pop %v2555
    %v2565 = vmul.f32 %v2563, %v2365
    %2567 = vrot.lane.b32.xlu0 %v2564, 64
    %v2568 = vpop.permute.xlu0 %2567
    %v2570 = vmul.f32 %v2563, %v2568
    %2572 = vrot.lane.b32.xlu0 %v2570, 32
    %v2573 = vpop.permute.xlu0 %2572
    %v2575 = vadd.f32 %v2565, %v2573
    %v2576 = vtanh.pop %v2575
    %2578 = vrot.lane.b32.xlu0 %v2576, 64
    %v2579 = vpop.permute.xlu0 %2578
    %v2581 = vmul.f32 %v2563, %v2579
    %2583 = vrot.lane.b32.xlu0 %v2581, 32
    %v2584 = vpop.permute.xlu0 %2583
    %s2586 = scalar_lea.vmem [#allocation3], 80
    %2587 = vst.msk [vmem:[%s2586] sm:$0xff] %vm281, %v2584
    %s2588 = scalar_lea.vmem [#allocation2], 88
    %v2589 = vld [vmem:[%s2588] sm:$0xff]
    %v2590 = vsel %vm281, %v2479, 0
    %2592 = vmatprep.subr.mxu0 0.0
    %2593 = vmatpush1.msra.mxu0 %v261
    %2594 = vmatprep.subr.mxu0 0.0
    %2595 = vmatpush1.msra.mxu0 %v262
    %2596 = vmatprep.subr.mxu0 0.0
    %2597 = vmatpush1.msra.mxu0 %v263
    %2598 = vmatprep.subr.mxu0 0.0
    %2599 = vmatpush1.msra.mxu0 %v264
    %2600 = vmatprep.subr.mxu0 0.0
    %2601 = vmatpush1.msra.mxu0 0.0
    %2602 = vmatprep.subr.mxu0 0.0
    %2603 = vmatpush1.msra.mxu0 0.0
    %2604 = vmatprep.subr.mxu0 0.0
    %2605 = vmatpush1.msra.mxu0 0.0
    %2606 = vmatprep.subr.mxu0 0.0
    %2607 = vmatpush1.msra.mxu0 0.0
    %2608 = vmatprep.subr.mxu0 0.0
    %2609 = vmatpush1.msra.mxu0 0.0
    %2610 = vmatprep.subr.mxu0 0.0
    %2611 = vmatpush1.msra.mxu0 0.0
    %2612 = vmatprep.subr.mxu0 0.0
    %2613 = vmatpush1.msra.mxu0 0.0
    %2614 = vmatprep.subr.mxu0 0.0
    %2615 = vmatpush1.msra.mxu0 0.0
    %2616 = vmatprep.subr.mxu0 0.0
    %2617 = vmatpush1.msra.mxu0 0.0
    %2618 = vmatprep.subr.mxu0 0.0
    %2619 = vmatpush1.msra.mxu0 0.0
    %2620 = vmatprep.subr.mxu0 0.0
    %2621 = vmatpush1.msra.mxu0 0.0
    %2622 = vmatprep.subr.mxu0 0.0
    %2623 = vmatpush1.msra.mxu0 0.0
    %2624 = vmatprep.subr.mxu0 0.0
    %2625 = vmatpush1.msra.mxu0 0.0
    %2626 = vmatprep.subr.mxu0 0.0
    %2627 = vmatpush1.msra.mxu0 0.0
    %2628 = vmatprep.subr.mxu0 0.0
    %2629 = vmatpush1.msra.mxu0 0.0
    %2630 = vmatprep.subr.mxu0 0.0
    %2631 = vmatpush1.msra.mxu0 0.0
    %2632 = vmatprep.subr.mxu0 0.0
    %2633 = vmatpush1.msra.mxu0 0.0
    %2634 = vmatprep.subr.mxu0 0.0
    %2635 = vmatpush1.msra.mxu0 0.0
    %2636 = vmatprep.subr.mxu0 0.0
    %2637 = vmatpush1.msra.mxu0 0.0
    %2638 = vmatprep.subr.mxu0 0.0
    %2639 = vmatpush1.msra.mxu0 0.0
    %2640 = vmatprep.subr.mxu0 0.0
    %2641 = vmatpush1.msra.mxu0 0.0
    %2642 = vmatprep.subr.mxu0 0.0
    %2643 = vmatpush1.msra.mxu0 0.0
    %2644 = vmatprep.subr.mxu0 0.0
    %2645 = vmatpush1.msra.mxu0 0.0
    %2646 = vmatprep.subr.mxu0 0.0
    %2647 = vmatpush1.msra.mxu0 0.0
    %2648 = vmatprep.subr.mxu0 0.0
    %2649 = vmatpush1.msra.mxu0 0.0
    %2650 = vmatprep.subr.mxu0 0.0
    %2651 = vmatpush1.msra.mxu0 0.0
    %2652 = vmatprep.subr.mxu0 0.0
    %2653 = vmatpush1.msra.mxu0 0.0
    %2654 = vmatprep.subr.mxu0 0.0
    %2655 = vmatpush1.msra.mxu0 0.0
    %2656 = vmatprep.mubr.f32.mxu0 0.0
    %2657 = vmatmul.mubr.f32.gmra.mrb[0].mxu0 %v2590
    %v2658 = vpop.f32.mrb[0].mxu0
    %v2659 = vadd.f32 0.0, %v2658
    %v2660 = vpop.f32.mrb[0].mxu0
    %2661 = vdwg.mxu0
    %v2662 = vadd.f32 %v2589, %v2659
    %v2663 = vxor.u32 %v2662, 2147483648
    %v2664 = vmul.f32 %v2663, 1.442695
    %v2665 = vpow.pop %v2664
    %v2666 = vadd.f32 %v2665, 1.0
    %v2667 = vrcp.pop %v2666
    %v2668 = vmul.f32 1.0, %v2667
    %v2669 = vtanh.pop %v2662
    %v2670 = vmul.f32 %v2668, %v2470
    %2672 = vrot.lane.b32.xlu0 %v2669, 64
    %v2673 = vpop.permute.xlu0 %2672
    %v2675 = vmul.f32 %v2668, %v2673
    %2677 = vrot.lane.b32.xlu0 %v2675, 32
    %v2678 = vpop.permute.xlu0 %2677
    %v2680 = vadd.f32 %v2670, %v2678
    %v2681 = vtanh.pop %v2680
    %2683 = vrot.lane.b32.xlu0 %v2681, 64
    %v2684 = vpop.permute.xlu0 %2683
    %v2686 = vmul.f32 %v2668, %v2684
    %2688 = vrot.lane.b32.xlu0 %v2686, 32
    %v2689 = vpop.permute.xlu0 %2688
    %2691 = vrot.lane.b32.xlu0 %v2581, 64
    %v2692 = vpop.permute.xlu0 %2691
    %v2694 = vsel %vm281, %v2689, %v2692
    %v2696 = vsel %vm385, %v2694, 0
    %2698 = vmatprep.subr.mxu0 0.0
    %2699 = vmatpush1.msra.mxu0 %v265
    %2700 = vmatprep.subr.mxu0 0.0
    %2701 = vmatpush1.msra.mxu0 %v266
    %2702 = vmatprep.subr.mxu0 0.0
    %2703 = vmatpush1.msra.mxu0 %v267
    %2704 = vmatprep.subr.mxu0 0.0
    %2705 = vmatpush1.msra.mxu0 %v268
    %2706 = vmatprep.subr.mxu0 0.0
    %2707 = vmatpush1.msra.mxu0 %v269
    %2708 = vmatprep.subr.mxu0 0.0
    %2709 = vmatpush1.msra.mxu0 %v270
    %2710 = vmatprep.subr.mxu0 0.0
    %2711 = vmatpush1.msra.mxu0 %v271
    %2712 = vmatprep.subr.mxu0 0.0
    %2713 = vmatpush1.msra.mxu0 %v272
    %2714 = vmatprep.subr.mxu0 0.0
    %2715 = vmatpush1.msra.mxu0 0.0
    %2716 = vmatprep.subr.mxu0 0.0
    %2717 = vmatpush1.msra.mxu0 0.0
    %2718 = vmatprep.subr.mxu0 0.0
    %2719 = vmatpush1.msra.mxu0 0.0
    %2720 = vmatprep.subr.mxu0 0.0
    %2721 = vmatpush1.msra.mxu0 0.0
    %2722 = vmatprep.subr.mxu0 0.0
    %2723 = vmatpush1.msra.mxu0 0.0
    %2724 = vmatprep.subr.mxu0 0.0
    %2725 = vmatpush1.msra.mxu0 0.0
    %2726 = vmatprep.subr.mxu0 0.0
    %2727 = vmatpush1.msra.mxu0 0.0
    %2728 = vmatprep.subr.mxu0 0.0
    %2729 = vmatpush1.msra.mxu0 0.0
    %2730 = vmatprep.subr.mxu0 0.0
    %2731 = vmatpush1.msra.mxu0 0.0
    %2732 = vmatprep.subr.mxu0 0.0
    %2733 = vmatpush1.msra.mxu0 0.0
    %2734 = vmatprep.subr.mxu0 0.0
    %2735 = vmatpush1.msra.mxu0 0.0
    %2736 = vmatprep.subr.mxu0 0.0
    %2737 = vmatpush1.msra.mxu0 0.0
    %2738 = vmatprep.subr.mxu0 0.0
    %2739 = vmatpush1.msra.mxu0 0.0
    %2740 = vmatprep.subr.mxu0 0.0
    %2741 = vmatpush1.msra.mxu0 0.0
    %2742 = vmatprep.subr.mxu0 0.0
    %2743 = vmatpush1.msra.mxu0 0.0
    %2744 = vmatprep.subr.mxu0 0.0
    %2745 = vmatpush1.msra.mxu0 0.0
    %2746 = vmatprep.subr.mxu0 0.0
    %2747 = vmatpush1.msra.mxu0 0.0
    %2748 = vmatprep.subr.mxu0 0.0
    %2749 = vmatpush1.msra.mxu0 0.0
    %2750 = vmatprep.subr.mxu0 0.0
    %2751 = vmatpush1.msra.mxu0 0.0
    %2752 = vmatprep.subr.mxu0 0.0
    %2753 = vmatpush1.msra.mxu0 0.0
    %2754 = vmatprep.subr.mxu0 0.0
    %2755 = vmatpush1.msra.mxu0 0.0
    %2756 = vmatprep.subr.mxu0 0.0
    %2757 = vmatpush1.msra.mxu0 0.0
    %2758 = vmatprep.subr.mxu0 0.0
    %2759 = vmatpush1.msra.mxu0 0.0
    %2760 = vmatprep.subr.mxu0 0.0
    %2761 = vmatpush1.msra.mxu0 0.0
    %2762 = vmatprep.mubr.f32.mxu0 0.0
    %2763 = vmatmul.mubr.f32.gmra.mrb[0].mxu0 %v2696
    %v2764 = vpop.f32.mrb[0].mxu0
    %v2765 = vadd.f32 %v278, %v2764
    %v2766 = vpop.f32.mrb[0].mxu0
    %2767 = vdwg.mxu0
    %v2768 = vxor.u32 %v2765, 2147483648
    %v2769 = vmul.f32 %v2768, 1.442695
    %v2770 = vpow.pop %v2769
    %v2771 = vadd.f32 %v2770, 1.0
    %v2772 = vrcp.pop %v2771
    %v2773 = vmul.f32 1.0, %v2772
    %v2774 = vtanh.pop %v2765
    %v2775 = vmul.f32 %v2773, %v2575
    %2777 = vrot.lane.b32.xlu0 %v2774, 64
    %v2778 = vpop.permute.xlu0 %2777
    %v2780 = vmul.f32 %v2773, %v2778
    %2782 = vrot.lane.b32.xlu0 %v2780, 32
    %v2783 = vpop.permute.xlu0 %2782
    %v2785 = vadd.f32 %v2775, %v2783
    %v2786 = vtanh.pop %v2785
    %2788 = vrot.lane.b32.xlu0 %v2786, 64
    %v2789 = vpop.permute.xlu0 %2788
    %v2791 = vmul.f32 %v2773, %v2789
    %2793 = vrot.lane.b32.xlu0 %v2791, 32
    %v2794 = vpop.permute.xlu0 %2793
    %s2796 = scalar_lea.vmem [#allocation3], 88
    %2797 = vst.msk [vmem:[%s2796] sm:$0xff] %vm281, %v2794
    %s2798 = scalar_lea.vmem [#allocation2], 96
    %v2799 = vld [vmem:[%s2798] sm:$0xff]
    %v2800 = vsel %vm281, %v2689, 0
    %2802 = vmatprep.subr.mxu0 0.0
    %2803 = vmatpush1.msra.mxu0 %v261
    %2804 = vmatprep.subr.mxu0 0.0
    %2805 = vmatpush1.msra.mxu0 %v262
    %2806 = vmatprep.subr.mxu0 0.0
    %2807 = vmatpush1.msra.mxu0 %v263
    %2808 = vmatprep.subr.mxu0 0.0
    %2809 = vmatpush1.msra.mxu0 %v264
    %2810 = vmatprep.subr.mxu0 0.0
    %2811 = vmatpush1.msra.mxu0 0.0
    %2812 = vmatprep.subr.mxu0 0.0
    %2813 = vmatpush1.msra.mxu0 0.0
    %2814 = vmatprep.subr.mxu0 0.0
    %2815 = vmatpush1.msra.mxu0 0.0
    %2816 = vmatprep.subr.mxu0 0.0
    %2817 = vmatpush1.msra.mxu0 0.0
    %2818 = vmatprep.subr.mxu0 0.0
    %2819 = vmatpush1.msra.mxu0 0.0
    %2820 = vmatprep.subr.mxu0 0.0
    %2821 = vmatpush1.msra.mxu0 0.0
    %2822 = vmatprep.subr.mxu0 0.0
    %2823 = vmatpush1.msra.mxu0 0.0
    %2824 = vmatprep.subr.mxu0 0.0
    %2825 = vmatpush1.msra.mxu0 0.0
    %2826 = vmatprep.subr.mxu0 0.0
    %2827 = vmatpush1.msra.mxu0 0.0
    %2828 = vmatprep.subr.mxu0 0.0
    %2829 = vmatpush1.msra.mxu0 0.0
    %2830 = vmatprep.subr.mxu0 0.0
    %2831 = vmatpush1.msra.mxu0 0.0
    %2832 = vmatprep.subr.mxu0 0.0
    %2833 = vmatpush1.msra.mxu0 0.0
    %2834 = vmatprep.subr.mxu0 0.0
    %2835 = vmatpush1.msra.mxu0 0.0
    %2836 = vmatprep.subr.mxu0 0.0
    %2837 = vmatpush1.msra.mxu0 0.0
    %2838 = vmatprep.subr.mxu0 0.0
    %2839 = vmatpush1.msra.mxu0 0.0
    %2840 = vmatprep.subr.mxu0 0.0
    %2841 = vmatpush1.msra.mxu0 0.0
    %2842 = vmatprep.subr.mxu0 0.0
    %2843 = vmatpush1.msra.mxu0 0.0
    %2844 = vmatprep.subr.mxu0 0.0
    %2845 = vmatpush1.msra.mxu0 0.0
    %2846 = vmatprep.subr.mxu0 0.0
    %2847 = vmatpush1.msra.mxu0 0.0
    %2848 = vmatprep.subr.mxu0 0.0
    %2849 = vmatpush1.msra.mxu0 0.0
    %2850 = vmatprep.subr.mxu0 0.0
    %2851 = vmatpush1.msra.mxu0 0.0
    %2852 = vmatprep.subr.mxu0 0.0
    %2853 = vmatpush1.msra.mxu0 0.0
    %2854 = vmatprep.subr.mxu0 0.0
    %2855 = vmatpush1.msra.mxu0 0.0
    %2856 = vmatprep.subr.mxu0 0.0
    %2857 = vmatpush1.msra.mxu0 0.0
    %2858 = vmatprep.subr.mxu0 0.0
    %2859 = vmatpush1.msra.mxu0 0.0
    %2860 = vmatprep.subr.mxu0 0.0
    %2861 = vmatpush1.msra.mxu0 0.0
    %2862 = vmatprep.subr.mxu0 0.0
    %2863 = vmatpush1.msra.mxu0 0.0
    %2864 = vmatprep.subr.mxu0 0.0
    %2865 = vmatpush1.msra.mxu0 0.0
    %2866 = vmatprep.mubr.f32.mxu0 0.0
    %2867 = vmatmul.mubr.f32.gmra.mrb[0].mxu0 %v2800
    %v2868 = vpop.f32.mrb[0].mxu0
    %v2869 = vadd.f32 0.0, %v2868
    %v2870 = vpop.f32.mrb[0].mxu0
    %2871 = vdwg.mxu0
    %v2872 = vadd.f32 %v2799, %v2869
    %v2873 = vxor.u32 %v2872, 2147483648
    %v2874 = vmul.f32 %v2873, 1.442695
    %v2875 = vpow.pop %v2874
    %v2876 = vadd.f32 %v2875, 1.0
    %v2877 = vrcp.pop %v2876
    %v2878 = vmul.f32 1.0, %v2877
    %v2879 = vtanh.pop %v2872
    %v2880 = vmul.f32 %v2878, %v2680
    %2882 = vrot.lane.b32.xlu0 %v2879, 64
    %v2883 = vpop.permute.xlu0 %2882
    %v2885 = vmul.f32 %v2878, %v2883
    %2887 = vrot.lane.b32.xlu0 %v2885, 32
    %v2888 = vpop.permute.xlu0 %2887
    %v2890 = vadd.f32 %v2880, %v2888
    %v2891 = vtanh.pop %v2890
    %2893 = vrot.lane.b32.xlu0 %v2891, 64
    %v2894 = vpop.permute.xlu0 %2893
    %v2896 = vmul.f32 %v2878, %v2894
    %2898 = vrot.lane.b32.xlu0 %v2896, 32
    %v2899 = vpop.permute.xlu0 %2898
    %2901 = vrot.lane.b32.xlu0 %v2791, 64
    %v2902 = vpop.permute.xlu0 %2901
    %v2904 = vsel %vm281, %v2899, %v2902
    %v2906 = vsel %vm385, %v2904, 0
    %2908 = vmatprep.subr.mxu0 0.0
    %2909 = vmatpush1.msra.mxu0 %v265
    %2910 = vmatprep.subr.mxu0 0.0
    %2911 = vmatpush1.msra.mxu0 %v266
    %2912 = vmatprep.subr.mxu0 0.0
    %2913 = vmatpush1.msra.mxu0 %v267
    %2914 = vmatprep.subr.mxu0 0.0
    %2915 = vmatpush1.msra.mxu0 %v268
    %2916 = vmatprep.subr.mxu0 0.0
    %2917 = vmatpush1.msra.mxu0 %v269
    %2918 = vmatprep.subr.mxu0 0.0
    %2919 = vmatpush1.msra.mxu0 %v270
    %2920 = vmatprep.subr.mxu0 0.0
    %2921 = vmatpush1.msra.mxu0 %v271
    %2922 = vmatprep.subr.mxu0 0.0
    %2923 = vmatpush1.msra.mxu0 %v272
    %2924 = vmatprep.subr.mxu0 0.0
    %2925 = vmatpush1.msra.mxu0 0.0
    %2926 = vmatprep.subr.mxu0 0.0
    %2927 = vmatpush1.msra.mxu0 0.0
    %2928 = vmatprep.subr.mxu0 0.0
    %2929 = vmatpush1.msra.mxu0 0.0
    %2930 = vmatprep.subr.mxu0 0.0
    %2931 = vmatpush1.msra.mxu0 0.0
    %2932 = vmatprep.subr.mxu0 0.0
    %2933 = vmatpush1.msra.mxu0 0.0
    %2934 = vmatprep.subr.mxu0 0.0
    %2935 = vmatpush1.msra.mxu0 0.0
    %2936 = vmatprep.subr.mxu0 0.0
    %2937 = vmatpush1.msra.mxu0 0.0
    %2938 = vmatprep.subr.mxu0 0.0
    %2939 = vmatpush1.msra.mxu0 0.0
    %2940 = vmatprep.subr.mxu0 0.0
    %2941 = vmatpush1.msra.mxu0 0.0
    %2942 = vmatprep.subr.mxu0 0.0
    %2943 = vmatpush1.msra.mxu0 0.0
    %2944 = vmatprep.subr.mxu0 0.0
    %2945 = vmatpush1.msra.mxu0 0.0
    %2946 = vmatprep.subr.mxu0 0.0
    %2947 = vmatpush1.msra.mxu0 0.0
    %2948 = vmatprep.subr.mxu0 0.0
    %2949 = vmatpush1.msra.mxu0 0.0
    %2950 = vmatprep.subr.mxu0 0.0
    %2951 = vmatpush1.msra.mxu0 0.0
    %2952 = vmatprep.subr.mxu0 0.0
    %2953 = vmatpush1.msra.mxu0 0.0
    %2954 = vmatprep.subr.mxu0 0.0
    %2955 = vmatpush1.msra.mxu0 0.0
    %2956 = vmatprep.subr.mxu0 0.0
    %2957 = vmatpush1.msra.mxu0 0.0
    %2958 = vmatprep.subr.mxu0 0.0
    %2959 = vmatpush1.msra.mxu0 0.0
    %2960 = vmatprep.subr.mxu0 0.0
    %2961 = vmatpush1.msra.mxu0 0.0
    %2962 = vmatprep.subr.mxu0 0.0
    %2963 = vmatpush1.msra.mxu0 0.0
    %2964 = vmatprep.subr.mxu0 0.0
    %2965 = vmatpush1.msra.mxu0 0.0
    %2966 = vmatprep.subr.mxu0 0.0
    %2967 = vmatpush1.msra.mxu0 0.0
    %2968 = vmatprep.subr.mxu0 0.0
    %2969 = vmatpush1.msra.mxu0 0.0
    %2970 = vmatprep.subr.mxu0 0.0
    %2971 = vmatpush1.msra.mxu0 0.0
    %2972 = vmatprep.mubr.f32.mxu0 0.0
    %2973 = vmatmul.mubr.f32.gmra.mrb[0].mxu0 %v2906
    %v2974 = vpop.f32.mrb[0].mxu0
    %v2975 = vadd.f32 %v278, %v2974
    %v2976 = vpop.f32.mrb[0].mxu0
    %2977 = vdwg.mxu0
    %v2978 = vxor.u32 %v2975, 2147483648
    %v2979 = vmul.f32 %v2978, 1.442695
    %v2980 = vpow.pop %v2979
    %v2981 = vadd.f32 %v2980, 1.0
    %v2982 = vrcp.pop %v2981
    %v2983 = vmul.f32 1.0, %v2982
    %v2984 = vtanh.pop %v2975
    %v2985 = vmul.f32 %v2983, %v2785
    %2987 = vrot.lane.b32.xlu0 %v2984, 64
    %v2988 = vpop.permute.xlu0 %2987
    %v2990 = vmul.f32 %v2983, %v2988
    %2992 = vrot.lane.b32.xlu0 %v2990, 32
    %v2993 = vpop.permute.xlu0 %2992
    %v2995 = vadd.f32 %v2985, %v2993
    %v2996 = vtanh.pop %v2995
    %2998 = vrot.lane.b32.xlu0 %v2996, 64
    %v2999 = vpop.permute.xlu0 %2998
    %v3001 = vmul.f32 %v2983, %v2999
    %3003 = vrot.lane.b32.xlu0 %v3001, 32
    %v3004 = vpop.permute.xlu0 %3003
    %s3006 = scalar_lea.vmem [#allocation3], 96
    %3007 = vst.msk [vmem:[%s3006] sm:$0xff] %vm281, %v3004
    %s3008 = scalar_lea.vmem [#allocation2], 104
    %v3009 = vld [vmem:[%s3008] sm:$0xff]
    %v3010 = vsel %vm281, %v2899, 0
    %3012 = vmatprep.subr.mxu0 0.0
    %3013 = vmatpush1.msra.mxu0 %v261
    %3014 = vmatprep.subr.mxu0 0.0
    %3015 = vmatpush1.msra.mxu0 %v262
    %3016 = vmatprep.subr.mxu0 0.0
    %3017 = vmatpush1.msra.mxu0 %v263
    %3018 = vmatprep.subr.mxu0 0.0
    %3019 = vmatpush1.msra.mxu0 %v264
    %3020 = vmatprep.subr.mxu0 0.0
    %3021 = vmatpush1.msra.mxu0 0.0
    %3022 = vmatprep.subr.mxu0 0.0
    %3023 = vmatpush1.msra.mxu0 0.0
    %3024 = vmatprep.subr.mxu0 0.0
    %3025 = vmatpush1.msra.mxu0 0.0
    %3026 = vmatprep.subr.mxu0 0.0
    %3027 = vmatpush1.msra.mxu0 0.0
    %3028 = vmatprep.subr.mxu0 0.0
    %3029 = vmatpush1.msra.mxu0 0.0
    %3030 = vmatprep.subr.mxu0 0.0
    %3031 = vmatpush1.msra.mxu0 0.0
    %3032 = vmatprep.subr.mxu0 0.0
    %3033 = vmatpush1.msra.mxu0 0.0
    %3034 = vmatprep.subr.mxu0 0.0
    %3035 = vmatpush1.msra.mxu0 0.0
    %3036 = vmatprep.subr.mxu0 0.0
    %3037 = vmatpush1.msra.mxu0 0.0
    %3038 = vmatprep.subr.mxu0 0.0
    %3039 = vmatpush1.msra.mxu0 0.0
    %3040 = vmatprep.subr.mxu0 0.0
    %3041 = vmatpush1.msra.mxu0 0.0
    %3042 = vmatprep.subr.mxu0 0.0
    %3043 = vmatpush1.msra.mxu0 0.0
    %3044 = vmatprep.subr.mxu0 0.0
    %3045 = vmatpush1.msra.mxu0 0.0
    %3046 = vmatprep.subr.mxu0 0.0
    %3047 = vmatpush1.msra.mxu0 0.0
    %3048 = vmatprep.subr.mxu0 0.0
    %3049 = vmatpush1.msra.mxu0 0.0
    %3050 = vmatprep.subr.mxu0 0.0
    %3051 = vmatpush1.msra.mxu0 0.0
    %3052 = vmatprep.subr.mxu0 0.0
    %3053 = vmatpush1.msra.mxu0 0.0
    %3054 = vmatprep.subr.mxu0 0.0
    %3055 = vmatpush1.msra.mxu0 0.0
    %3056 = vmatprep.subr.mxu0 0.0
    %3057 = vmatpush1.msra.mxu0 0.0
    %3058 = vmatprep.subr.mxu0 0.0
    %3059 = vmatpush1.msra.mxu0 0.0
    %3060 = vmatprep.subr.mxu0 0.0
    %3061 = vmatpush1.msra.mxu0 0.0
    %3062 = vmatprep.subr.mxu0 0.0
    %3063 = vmatpush1.msra.mxu0 0.0
    %3064 = vmatprep.subr.mxu0 0.0
    %3065 = vmatpush1.msra.mxu0 0.0
    %3066 = vmatprep.subr.mxu0 0.0
    %3067 = vmatpush1.msra.mxu0 0.0
    %3068 = vmatprep.subr.mxu0 0.0
    %3069 = vmatpush1.msra.mxu0 0.0
    %3070 = vmatprep.subr.mxu0 0.0
    %3071 = vmatpush1.msra.mxu0 0.0
    %3072 = vmatprep.subr.mxu0 0.0
    %3073 = vmatpush1.msra.mxu0 0.0
    %3074 = vmatprep.subr.mxu0 0.0
    %3075 = vmatpush1.msra.mxu0 0.0
    %3076 = vmatprep.mubr.f32.mxu0 0.0
    %3077 = vmatmul.mubr.f32.gmra.mrb[0].mxu0 %v3010
    %v3078 = vpop.f32.mrb[0].mxu0
    %v3079 = vadd.f32 0.0, %v3078
    %v3080 = vpop.f32.mrb[0].mxu0
    %3081 = vdwg.mxu0
    %v3082 = vadd.f32 %v3009, %v3079
    %v3083 = vxor.u32 %v3082, 2147483648
    %v3084 = vmul.f32 %v3083, 1.442695
    %v3085 = vpow.pop %v3084
    %v3086 = vadd.f32 %v3085, 1.0
    %v3087 = vrcp.pop %v3086
    %v3088 = vmul.f32 1.0, %v3087
    %v3089 = vtanh.pop %v3082
    %v3090 = vmul.f32 %v3088, %v2890
    %3092 = vrot.lane.b32.xlu0 %v3089, 64
    %v3093 = vpop.permute.xlu0 %3092
    %v3095 = vmul.f32 %v3088, %v3093
    %3097 = vrot.lane.b32.xlu0 %v3095, 32
    %v3098 = vpop.permute.xlu0 %3097
    %v3100 = vadd.f32 %v3090, %v3098
    %v3101 = vtanh.pop %v3100
    %3103 = vrot.lane.b32.xlu0 %v3101, 64
    %v3104 = vpop.permute.xlu0 %3103
    %v3106 = vmul.f32 %v3088, %v3104
    %3108 = vrot.lane.b32.xlu0 %v3106, 32
    %v3109 = vpop.permute.xlu0 %3108
    %3111 = vrot.lane.b32.xlu0 %v3001, 64
    %v3112 = vpop.permute.xlu0 %3111
    %v3114 = vsel %vm281, %v3109, %v3112
    %v3116 = vsel %vm385, %v3114, 0
    %3118 = vmatprep.subr.mxu0 0.0
    %3119 = vmatpush1.msra.mxu0 %v265
    %3120 = vmatprep.subr.mxu0 0.0
    %3121 = vmatpush1.msra.mxu0 %v266
    %3122 = vmatprep.subr.mxu0 0.0
    %3123 = vmatpush1.msra.mxu0 %v267
    %3124 = vmatprep.subr.mxu0 0.0
    %3125 = vmatpush1.msra.mxu0 %v268
    %3126 = vmatprep.subr.mxu0 0.0
    %3127 = vmatpush1.msra.mxu0 %v269
    %3128 = vmatprep.subr.mxu0 0.0
    %3129 = vmatpush1.msra.mxu0 %v270
    %3130 = vmatprep.subr.mxu0 0.0
    %3131 = vmatpush1.msra.mxu0 %v271
    %3132 = vmatprep.subr.mxu0 0.0
    %3133 = vmatpush1.msra.mxu0 %v272
    %3134 = vmatprep.subr.mxu0 0.0
    %3135 = vmatpush1.msra.mxu0 0.0
    %3136 = vmatprep.subr.mxu0 0.0
    %3137 = vmatpush1.msra.mxu0 0.0
    %3138 = vmatprep.subr.mxu0 0.0
    %3139 = vmatpush1.msra.mxu0 0.0
    %3140 = vmatprep.subr.mxu0 0.0
    %3141 = vmatpush1.msra.mxu0 0.0
    %3142 = vmatprep.subr.mxu0 0.0
    %3143 = vmatpush1.msra.mxu0 0.0
    %3144 = vmatprep.subr.mxu0 0.0
    %3145 = vmatpush1.msra.mxu0 0.0
    %3146 = vmatprep.subr.mxu0 0.0
    %3147 = vmatpush1.msra.mxu0 0.0
    %3148 = vmatprep.subr.mxu0 0.0
    %3149 = vmatpush1.msra.mxu0 0.0
    %3150 = vmatprep.subr.mxu0 0.0
    %3151 = vmatpush1.msra.mxu0 0.0
    %3152 = vmatprep.subr.mxu0 0.0
    %3153 = vmatpush1.msra.mxu0 0.0
    %3154 = vmatprep.subr.mxu0 0.0
    %3155 = vmatpush1.msra.mxu0 0.0
    %3156 = vmatprep.subr.mxu0 0.0
    %3157 = vmatpush1.msra.mxu0 0.0
    %3158 = vmatprep.subr.mxu0 0.0
    %3159 = vmatpush1.msra.mxu0 0.0
    %3160 = vmatprep.subr.mxu0 0.0
    %3161 = vmatpush1.msra.mxu0 0.0
    %3162 = vmatprep.subr.mxu0 0.0
    %3163 = vmatpush1.msra.mxu0 0.0
    %3164 = vmatprep.subr.mxu0 0.0
    %3165 = vmatpush1.msra.mxu0 0.0
    %3166 = vmatprep.subr.mxu0 0.0
    %3167 = vmatpush1.msra.mxu0 0.0
    %3168 = vmatprep.subr.mxu0 0.0
    %3169 = vmatpush1.msra.mxu0 0.0
    %3170 = vmatprep.subr.mxu0 0.0
    %3171 = vmatpush1.msra.mxu0 0.0
    %3172 = vmatprep.subr.mxu0 0.0
    %3173 = vmatpush1.msra.mxu0 0.0
    %3174 = vmatprep.subr.mxu0 0.0
    %3175 = vmatpush1.msra.mxu0 0.0
    %3176 = vmatprep.subr.mxu0 0.0
    %3177 = vmatpush1.msra.mxu0 0.0
    %3178 = vmatprep.subr.mxu0 0.0
    %3179 = vmatpush1.msra.mxu0 0.0
    %3180 = vmatprep.subr.mxu0 0.0
    %3181 = vmatpush1.msra.mxu0 0.0
    %3182 = vmatprep.mubr.f32.mxu0 0.0
    %3183 = vmatmul.mubr.f32.gmra.mrb[0].mxu0 %v3116
    %v3184 = vpop.f32.mrb[0].mxu0
    %v3185 = vadd.f32 %v278, %v3184
    %v3186 = vpop.f32.mrb[0].mxu0
    %3187 = vdwg.mxu0
    %v3188 = vxor.u32 %v3185, 2147483648
    %v3189 = vmul.f32 %v3188, 1.442695
    %v3190 = vpow.pop %v3189
    %v3191 = vadd.f32 %v3190, 1.0
    %v3192 = vrcp.pop %v3191
    %v3193 = vmul.f32 1.0, %v3192
    %v3194 = vtanh.pop %v3185
    %v3195 = vmul.f32 %v3193, %v2995
    %3197 = vrot.lane.b32.xlu0 %v3194, 64
    %v3198 = vpop.permute.xlu0 %3197
    %v3200 = vmul.f32 %v3193, %v3198
    %3202 = vrot.lane.b32.xlu0 %v3200, 32
    %v3203 = vpop.permute.xlu0 %3202
    %v3205 = vadd.f32 %v3195, %v3203
    %v3206 = vtanh.pop %v3205
    %3208 = vrot.lane.b32.xlu0 %v3206, 64
    %v3209 = vpop.permute.xlu0 %3208
    %v3211 = vmul.f32 %v3193, %v3209
    %3213 = vrot.lane.b32.xlu0 %v3211, 32
    %v3214 = vpop.permute.xlu0 %3213
    %s3216 = scalar_lea.vmem [#allocation3], 104
    %3217 = vst.msk [vmem:[%s3216] sm:$0xff] %vm281, %v3214
    %s3218 = scalar_lea.vmem [#allocation2], 112
    %v3219 = vld [vmem:[%s3218] sm:$0xff]
    %v3220 = vsel %vm281, %v3109, 0
    %3222 = vmatprep.subr.mxu0 0.0
    %3223 = vmatpush1.msra.mxu0 %v261
    %3224 = vmatprep.subr.mxu0 0.0
    %3225 = vmatpush1.msra.mxu0 %v262
    %3226 = vmatprep.subr.mxu0 0.0
    %3227 = vmatpush1.msra.mxu0 %v263
    %3228 = vmatprep.subr.mxu0 0.0
    %3229 = vmatpush1.msra.mxu0 %v264
    %3230 = vmatprep.subr.mxu0 0.0
    %3231 = vmatpush1.msra.mxu0 0.0
    %3232 = vmatprep.subr.mxu0 0.0
    %3233 = vmatpush1.msra.mxu0 0.0
    %3234 = vmatprep.subr.mxu0 0.0
    %3235 = vmatpush1.msra.mxu0 0.0
    %3236 = vmatprep.subr.mxu0 0.0
    %3237 = vmatpush1.msra.mxu0 0.0
    %3238 = vmatprep.subr.mxu0 0.0
    %3239 = vmatpush1.msra.mxu0 0.0
    %3240 = vmatprep.subr.mxu0 0.0
    %3241 = vmatpush1.msra.mxu0 0.0
    %3242 = vmatprep.subr.mxu0 0.0
    %3243 = vmatpush1.msra.mxu0 0.0
    %3244 = vmatprep.subr.mxu0 0.0
    %3245 = vmatpush1.msra.mxu0 0.0
    %3246 = vmatprep.subr.mxu0 0.0
    %3247 = vmatpush1.msra.mxu0 0.0
    %3248 = vmatprep.subr.mxu0 0.0
    %3249 = vmatpush1.msra.mxu0 0.0
    %3250 = vmatprep.subr.mxu0 0.0
    %3251 = vmatpush1.msra.mxu0 0.0
    %3252 = vmatprep.subr.mxu0 0.0
    %3253 = vmatpush1.msra.mxu0 0.0
    %3254 = vmatprep.subr.mxu0 0.0
    %3255 = vmatpush1.msra.mxu0 0.0
    %3256 = vmatprep.subr.mxu0 0.0
    %3257 = vmatpush1.msra.mxu0 0.0
    %3258 = vmatprep.subr.mxu0 0.0
    %3259 = vmatpush1.msra.mxu0 0.0
    %3260 = vmatprep.subr.mxu0 0.0
    %3261 = vmatpush1.msra.mxu0 0.0
    %3262 = vmatprep.subr.mxu0 0.0
    %3263 = vmatpush1.msra.mxu0 0.0
    %3264 = vmatprep.subr.mxu0 0.0
    %3265 = vmatpush1.msra.mxu0 0.0
    %3266 = vmatprep.subr.mxu0 0.0
    %3267 = vmatpush1.msra.mxu0 0.0
    %3268 = vmatprep.subr.mxu0 0.0
    %3269 = vmatpush1.msra.mxu0 0.0
    %3270 = vmatprep.subr.mxu0 0.0
    %3271 = vmatpush1.msra.mxu0 0.0
    %3272 = vmatprep.subr.mxu0 0.0
    %3273 = vmatpush1.msra.mxu0 0.0
    %3274 = vmatprep.subr.mxu0 0.0
    %3275 = vmatpush1.msra.mxu0 0.0
    %3276 = vmatprep.subr.mxu0 0.0
    %3277 = vmatpush1.msra.mxu0 0.0
    %3278 = vmatprep.subr.mxu0 0.0
    %3279 = vmatpush1.msra.mxu0 0.0
    %3280 = vmatprep.subr.mxu0 0.0
    %3281 = vmatpush1.msra.mxu0 0.0
    %3282 = vmatprep.subr.mxu0 0.0
    %3283 = vmatpush1.msra.mxu0 0.0
    %3284 = vmatprep.subr.mxu0 0.0
    %3285 = vmatpush1.msra.mxu0 0.0
    %3286 = vmatprep.mubr.f32.mxu0 0.0
    %3287 = vmatmul.mubr.f32.gmra.mrb[0].mxu0 %v3220
    %v3288 = vpop.f32.mrb[0].mxu0
    %v3289 = vadd.f32 0.0, %v3288
    %v3290 = vpop.f32.mrb[0].mxu0
    %3291 = vdwg.mxu0
    %v3292 = vadd.f32 %v3219, %v3289
    %v3293 = vxor.u32 %v3292, 2147483648
    %v3294 = vmul.f32 %v3293, 1.442695
    %v3295 = vpow.pop %v3294
    %v3296 = vadd.f32 %v3295, 1.0
    %v3297 = vrcp.pop %v3296
    %v3298 = vmul.f32 1.0, %v3297
    %v3299 = vtanh.pop %v3292
    %v3300 = vmul.f32 %v3298, %v3100
    %3302 = vrot.lane.b32.xlu0 %v3299, 64
    %v3303 = vpop.permute.xlu0 %3302
    %v3305 = vmul.f32 %v3298, %v3303
    %3307 = vrot.lane.b32.xlu0 %v3305, 32
    %v3308 = vpop.permute.xlu0 %3307
    %v3310 = vadd.f32 %v3300, %v3308
    %v3311 = vtanh.pop %v3310
    %3313 = vrot.lane.b32.xlu0 %v3311, 64
    %v3314 = vpop.permute.xlu0 %3313
    %v3316 = vmul.f32 %v3298, %v3314
    %3318 = vrot.lane.b32.xlu0 %v3316, 32
    %v3319 = vpop.permute.xlu0 %3318
    %3321 = vrot.lane.b32.xlu0 %v3211, 64
    %v3322 = vpop.permute.xlu0 %3321
    %v3324 = vsel %vm281, %v3319, %v3322
    %v3326 = vsel %vm385, %v3324, 0
    %3328 = vmatprep.subr.mxu0 0.0
    %3329 = vmatpush1.msra.mxu0 %v265
    %3330 = vmatprep.subr.mxu0 0.0
    %3331 = vmatpush1.msra.mxu0 %v266
    %3332 = vmatprep.subr.mxu0 0.0
    %3333 = vmatpush1.msra.mxu0 %v267
    %3334 = vmatprep.subr.mxu0 0.0
    %3335 = vmatpush1.msra.mxu0 %v268
    %3336 = vmatprep.subr.mxu0 0.0
    %3337 = vmatpush1.msra.mxu0 %v269
    %3338 = vmatprep.subr.mxu0 0.0
    %3339 = vmatpush1.msra.mxu0 %v270
    %3340 = vmatprep.subr.mxu0 0.0
    %3341 = vmatpush1.msra.mxu0 %v271
    %3342 = vmatprep.subr.mxu0 0.0
    %3343 = vmatpush1.msra.mxu0 %v272
    %3344 = vmatprep.subr.mxu0 0.0
    %3345 = vmatpush1.msra.mxu0 0.0
    %3346 = vmatprep.subr.mxu0 0.0
    %3347 = vmatpush1.msra.mxu0 0.0
    %3348 = vmatprep.subr.mxu0 0.0
    %3349 = vmatpush1.msra.mxu0 0.0
    %3350 = vmatprep.subr.mxu0 0.0
    %3351 = vmatpush1.msra.mxu0 0.0
    %3352 = vmatprep.subr.mxu0 0.0
    %3353 = vmatpush1.msra.mxu0 0.0
    %3354 = vmatprep.subr.mxu0 0.0
    %3355 = vmatpush1.msra.mxu0 0.0
    %3356 = vmatprep.subr.mxu0 0.0
    %3357 = vmatpush1.msra.mxu0 0.0
    %3358 = vmatprep.subr.mxu0 0.0
    %3359 = vmatpush1.msra.mxu0 0.0
    %3360 = vmatprep.subr.mxu0 0.0
    %3361 = vmatpush1.msra.mxu0 0.0
    %3362 = vmatprep.subr.mxu0 0.0
    %3363 = vmatpush1.msra.mxu0 0.0
    %3364 = vmatprep.subr.mxu0 0.0
    %3365 = vmatpush1.msra.mxu0 0.0
    %3366 = vmatprep.subr.mxu0 0.0
    %3367 = vmatpush1.msra.mxu0 0.0
    %3368 = vmatprep.subr.mxu0 0.0
    %3369 = vmatpush1.msra.mxu0 0.0
    %3370 = vmatprep.subr.mxu0 0.0
    %3371 = vmatpush1.msra.mxu0 0.0
    %3372 = vmatprep.subr.mxu0 0.0
    %3373 = vmatpush1.msra.mxu0 0.0
    %3374 = vmatprep.subr.mxu0 0.0
    %3375 = vmatpush1.msra.mxu0 0.0
    %3376 = vmatprep.subr.mxu0 0.0
    %3377 = vmatpush1.msra.mxu0 0.0
    %3378 = vmatprep.subr.mxu0 0.0
    %3379 = vmatpush1.msra.mxu0 0.0
    %3380 = vmatprep.subr.mxu0 0.0
    %3381 = vmatpush1.msra.mxu0 0.0
    %3382 = vmatprep.subr.mxu0 0.0
    %3383 = vmatpush1.msra.mxu0 0.0
    %3384 = vmatprep.subr.mxu0 0.0
    %3385 = vmatpush1.msra.mxu0 0.0
    %3386 = vmatprep.subr.mxu0 0.0
    %3387 = vmatpush1.msra.mxu0 0.0
    %3388 = vmatprep.subr.mxu0 0.0
    %3389 = vmatpush1.msra.mxu0 0.0
    %3390 = vmatprep.subr.mxu0 0.0
    %3391 = vmatpush1.msra.mxu0 0.0
    %3392 = vmatprep.mubr.f32.mxu0 0.0
    %3393 = vmatmul.mubr.f32.gmra.mrb[0].mxu0 %v3326
    %v3394 = vpop.f32.mrb[0].mxu0
    %v3395 = vadd.f32 %v278, %v3394
    %v3396 = vpop.f32.mrb[0].mxu0
    %3397 = vdwg.mxu0
    %v3398 = vxor.u32 %v3395, 2147483648
    %v3399 = vmul.f32 %v3398, 1.442695
    %v3400 = vpow.pop %v3399
    %v3401 = vadd.f32 %v3400, 1.0
    %v3402 = vrcp.pop %v3401
    %v3403 = vmul.f32 1.0, %v3402
    %v3404 = vtanh.pop %v3395
    %v3405 = vmul.f32 %v3403, %v3205
    %3407 = vrot.lane.b32.xlu0 %v3404, 64
    %v3408 = vpop.permute.xlu0 %3407
    %v3410 = vmul.f32 %v3403, %v3408
    %3412 = vrot.lane.b32.xlu0 %v3410, 32
    %v3413 = vpop.permute.xlu0 %3412
    %v3415 = vadd.f32 %v3405, %v3413
    %v3416 = vtanh.pop %v3415
    %3418 = vrot.lane.b32.xlu0 %v3416, 64
    %v3419 = vpop.permute.xlu0 %3418
    %v3421 = vmul.f32 %v3403, %v3419
    %3423 = vrot.lane.b32.xlu0 %v3421, 32
    %v3424 = vpop.permute.xlu0 %3423
    %s3426 = scalar_lea.vmem [#allocation3], 112
    %3427 = vst.msk [vmem:[%s3426] sm:$0xff] %vm281, %v3424
    %s3428 = scalar_lea.vmem [#allocation2], 120
    %v3429 = vld [vmem:[%s3428] sm:$0xff]
    %v3430 = vsel %vm281, %v3319, 0
    %3432 = vmatprep.subr.mxu0 0.0
    %3433 = vmatpush1.msra.mxu0 %v261
    %3434 = vmatprep.subr.mxu0 0.0
    %3435 = vmatpush1.msra.mxu0 %v262
    %3436 = vmatprep.subr.mxu0 0.0
    %3437 = vmatpush1.msra.mxu0 %v263
    %3438 = vmatprep.subr.mxu0 0.0
    %3439 = vmatpush1.msra.mxu0 %v264
    %3440 = vmatprep.subr.mxu0 0.0
    %3441 = vmatpush1.msra.mxu0 0.0
    %3442 = vmatprep.subr.mxu0 0.0
    %3443 = vmatpush1.msra.mxu0 0.0
    %3444 = vmatprep.subr.mxu0 0.0
    %3445 = vmatpush1.msra.mxu0 0.0
    %3446 = vmatprep.subr.mxu0 0.0
    %3447 = vmatpush1.msra.mxu0 0.0
    %3448 = vmatprep.subr.mxu0 0.0
    %3449 = vmatpush1.msra.mxu0 0.0
    %3450 = vmatprep.subr.mxu0 0.0
    %3451 = vmatpush1.msra.mxu0 0.0
    %3452 = vmatprep.subr.mxu0 0.0
    %3453 = vmatpush1.msra.mxu0 0.0
    %3454 = vmatprep.subr.mxu0 0.0
    %3455 = vmatpush1.msra.mxu0 0.0
    %3456 = vmatprep.subr.mxu0 0.0
    %3457 = vmatpush1.msra.mxu0 0.0
    %3458 = vmatprep.subr.mxu0 0.0
    %3459 = vmatpush1.msra.mxu0 0.0
    %3460 = vmatprep.subr.mxu0 0.0
    %3461 = vmatpush1.msra.mxu0 0.0
    %3462 = vmatprep.subr.mxu0 0.0
    %3463 = vmatpush1.msra.mxu0 0.0
    %3464 = vmatprep.subr.mxu0 0.0
    %3465 = vmatpush1.msra.mxu0 0.0
    %3466 = vmatprep.subr.mxu0 0.0
    %3467 = vmatpush1.msra.mxu0 0.0
    %3468 = vmatprep.subr.mxu0 0.0
    %3469 = vmatpush1.msra.mxu0 0.0
    %3470 = vmatprep.subr.mxu0 0.0
    %3471 = vmatpush1.msra.mxu0 0.0
    %3472 = vmatprep.subr.mxu0 0.0
    %3473 = vmatpush1.msra.mxu0 0.0
    %3474 = vmatprep.subr.mxu0 0.0
    %3475 = vmatpush1.msra.mxu0 0.0
    %3476 = vmatprep.subr.mxu0 0.0
    %3477 = vmatpush1.msra.mxu0 0.0
    %3478 = vmatprep.subr.mxu0 0.0
    %3479 = vmatpush1.msra.mxu0 0.0
    %3480 = vmatprep.subr.mxu0 0.0
    %3481 = vmatpush1.msra.mxu0 0.0
    %3482 = vmatprep.subr.mxu0 0.0
    %3483 = vmatpush1.msra.mxu0 0.0
    %3484 = vmatprep.subr.mxu0 0.0
    %3485 = vmatpush1.msra.mxu0 0.0
    %3486 = vmatprep.subr.mxu0 0.0
    %3487 = vmatpush1.msra.mxu0 0.0
    %3488 = vmatprep.subr.mxu0 0.0
    %3489 = vmatpush1.msra.mxu0 0.0
    %3490 = vmatprep.subr.mxu0 0.0
    %3491 = vmatpush1.msra.mxu0 0.0
    %3492 = vmatprep.subr.mxu0 0.0
    %3493 = vmatpush1.msra.mxu0 0.0
    %3494 = vmatprep.subr.mxu0 0.0
    %3495 = vmatpush1.msra.mxu0 0.0
    %3496 = vmatprep.mubr.f32.mxu0 0.0
    %3497 = vmatmul.mubr.f32.gmra.mrb[0].mxu0 %v3430
    %v3498 = vpop.f32.mrb[0].mxu0
    %v3499 = vadd.f32 0.0, %v3498
    %v3500 = vpop.f32.mrb[0].mxu0
    %3501 = vdwg.mxu0
    %v3502 = vadd.f32 %v3429, %v3499
    %v3503 = vxor.u32 %v3502, 2147483648
    %v3504 = vmul.f32 %v3503, 1.442695
    %v3505 = vpow.pop %v3504
    %v3506 = vadd.f32 %v3505, 1.0
    %v3507 = vrcp.pop %v3506
    %v3508 = vmul.f32 1.0, %v3507
    %v3509 = vtanh.pop %v3502
    %v3510 = vmul.f32 %v3508, %v3310
    %3512 = vrot.lane.b32.xlu0 %v3509, 64
    %v3513 = vpop.permute.xlu0 %3512
    %v3515 = vmul.f32 %v3508, %v3513
    %3517 = vrot.lane.b32.xlu0 %v3515, 32
    %v3518 = vpop.permute.xlu0 %3517
    %v3520 = vadd.f32 %v3510, %v3518
    %v3521 = vtanh.pop %v3520
    %3523 = vrot.lane.b32.xlu0 %v3521, 64
    %v3524 = vpop.permute.xlu0 %3523
    %v3526 = vmul.f32 %v3508, %v3524
    %3528 = vrot.lane.b32.xlu0 %v3526, 32
    %v3529 = vpop.permute.xlu0 %3528
    %3531 = vrot.lane.b32.xlu0 %v3421, 64
    %v3532 = vpop.permute.xlu0 %3531
    %v3534 = vsel %vm281, %v3529, %v3532
    %v3536 = vsel %vm385, %v3534, 0
    %3538 = vmatprep.subr.mxu0 0.0
    %3539 = vmatpush1.msra.mxu0 %v265
    %3540 = vmatprep.subr.mxu0 0.0
    %3541 = vmatpush1.msra.mxu0 %v266
    %3542 = vmatprep.subr.mxu0 0.0
    %3543 = vmatpush1.msra.mxu0 %v267
    %3544 = vmatprep.subr.mxu0 0.0
    %3545 = vmatpush1.msra.mxu0 %v268
    %3546 = vmatprep.subr.mxu0 0.0
    %3547 = vmatpush1.msra.mxu0 %v269
    %3548 = vmatprep.subr.mxu0 0.0
    %3549 = vmatpush1.msra.mxu0 %v270
    %3550 = vmatprep.subr.mxu0 0.0
    %3551 = vmatpush1.msra.mxu0 %v271
    %3552 = vmatprep.subr.mxu0 0.0
    %3553 = vmatpush1.msra.mxu0 %v272
    %3554 = vmatprep.subr.mxu0 0.0
    %3555 = vmatpush1.msra.mxu0 0.0
    %3556 = vmatprep.subr.mxu0 0.0
    %3557 = vmatpush1.msra.mxu0 0.0
    %3558 = vmatprep.subr.mxu0 0.0
    %3559 = vmatpush1.msra.mxu0 0.0
    %3560 = vmatprep.subr.mxu0 0.0
    %3561 = vmatpush1.msra.mxu0 0.0
    %3562 = vmatprep.subr.mxu0 0.0
    %3563 = vmatpush1.msra.mxu0 0.0
    %3564 = vmatprep.subr.mxu0 0.0
    %3565 = vmatpush1.msra.mxu0 0.0
    %3566 = vmatprep.subr.mxu0 0.0
    %3567 = vmatpush1.msra.mxu0 0.0
    %3568 = vmatprep.subr.mxu0 0.0
    %3569 = vmatpush1.msra.mxu0 0.0
    %3570 = vmatprep.subr.mxu0 0.0
    %3571 = vmatpush1.msra.mxu0 0.0
    %3572 = vmatprep.subr.mxu0 0.0
    %3573 = vmatpush1.msra.mxu0 0.0
    %3574 = vmatprep.subr.mxu0 0.0
    %3575 = vmatpush1.msra.mxu0 0.0
    %3576 = vmatprep.subr.mxu0 0.0
    %3577 = vmatpush1.msra.mxu0 0.0
    %3578 = vmatprep.subr.mxu0 0.0
    %3579 = vmatpush1.msra.mxu0 0.0
    %3580 = vmatprep.subr.mxu0 0.0
    %3581 = vmatpush1.msra.mxu0 0.0
    %3582 = vmatprep.subr.mxu0 0.0
    %3583 = vmatpush1.msra.mxu0 0.0
    %3584 = vmatprep.subr.mxu0 0.0
    %3585 = vmatpush1.msra.mxu0 0.0
    %3586 = vmatprep.subr.mxu0 0.0
    %3587 = vmatpush1.msra.mxu0 0.0
    %3588 = vmatprep.subr.mxu0 0.0
    %3589 = vmatpush1.msra.mxu0 0.0
    %3590 = vmatprep.subr.mxu0 0.0
    %3591 = vmatpush1.msra.mxu0 0.0
    %3592 = vmatprep.subr.mxu0 0.0
    %3593 = vmatpush1.msra.mxu0 0.0
    %3594 = vmatprep.subr.mxu0 0.0
    %3595 = vmatpush1.msra.mxu0 0.0
    %3596 = vmatprep.subr.mxu0 0.0
    %3597 = vmatpush1.msra.mxu0 0.0
    %3598 = vmatprep.subr.mxu0 0.0
    %3599 = vmatpush1.msra.mxu0 0.0
    %3600 = vmatprep.subr.mxu0 0.0
    %3601 = vmatpush1.msra.mxu0 0.0
    %3602 = vmatprep.mubr.f32.mxu0 0.0
    %3603 = vmatmul.mubr.f32.gmra.mrb[0].mxu0 %v3536
    %v3604 = vpop.f32.mrb[0].mxu0
    %v3605 = vadd.f32 %v278, %v3604
    %v3606 = vpop.f32.mrb[0].mxu0
    %3607 = vdwg.mxu0
    %v3608 = vxor.u32 %v3605, 2147483648
    %v3609 = vmul.f32 %v3608, 1.442695
    %v3610 = vpow.pop %v3609
    %v3611 = vadd.f32 %v3610, 1.0
    %v3612 = vrcp.pop %v3611
    %v3613 = vmul.f32 1.0, %v3612
    %v3614 = vtanh.pop %v3605
    %v3615 = vmul.f32 %v3613, %v3415
    %3617 = vrot.lane.b32.xlu0 %v3614, 64
    %v3618 = vpop.permute.xlu0 %3617
    %v3620 = vmul.f32 %v3613, %v3618
    %3622 = vrot.lane.b32.xlu0 %v3620, 32
    %v3623 = vpop.permute.xlu0 %3622
    %v3625 = vadd.f32 %v3615, %v3623
    %v3626 = vtanh.pop %v3625
    %3628 = vrot.lane.b32.xlu0 %v3626, 64
    %v3629 = vpop.permute.xlu0 %3628
    %v3631 = vmul.f32 %v3613, %v3629
    %3633 = vrot.lane.b32.xlu0 %v3631, 32
    %v3634 = vpop.permute.xlu0 %3633
    %s3636 = scalar_lea.vmem [#allocation3], 120
    %3637 = vst.msk [vmem:[%s3636] sm:$0xff] %vm281, %v3634
    %v3638 = vld [vmem:[#allocation3] sm:$0xff]
    %v3639 = vld [vmem:[#allocation3 + $0x8] sm:$0xff]
    %v3640 = vld [vmem:[#allocation3 + $0x10] sm:$0xff]
    %v3641 = vld [vmem:[#allocation3 + $0x18] sm:$0xff]
    %v3642 = vld [vmem:[#allocation3 + $0x20] sm:$0xff]
    %v3643 = vld [vmem:[#allocation3 + $0x28] sm:$0xff]
    %v3644 = vld [vmem:[#allocation3 + $0x30] sm:$0xff]
    %v3645 = vld [vmem:[#allocation3 + $0x38] sm:$0xff]
    %v3646 = vld [vmem:[#allocation3 + $0x40] sm:$0xff]
    %v3647 = vld [vmem:[#allocation3 + $0x48] sm:$0xff]
    %v3648 = vld [vmem:[#allocation3 + $0x50] sm:$0xff]
    %v3649 = vld [vmem:[#allocation3 + $0x58] sm:$0xff]
    %v3650 = vld [vmem:[#allocation3 + $0x60] sm:$0xff]
    %v3651 = vld [vmem:[#allocation3 + $0x68] sm:$0xff]
    %v3652 = vld [vmem:[#allocation3 + $0x70] sm:$0xff]
    %v3653 = vld [vmem:[#allocation3 + $0x78] sm:$0xff]
    %v3654 = vsel %vm281, %v3638, -inf
    %3655 = vmax.xlane.f32.xlu0 %v3654
    %v3656 = vpop.xlane.xlu0 %3655
    %v3657 = vsel %vm281, %v3639, -inf
    %3658 = vmax.xlane.f32.xlu0 %v3657
    %v3659 = vpop.xlane.xlu0 %3658
    %v3660 = vsel %vm281, %v3640, -inf
    %3661 = vmax.xlane.f32.xlu0 %v3660
    %v3662 = vpop.xlane.xlu0 %3661
    %v3663 = vsel %vm281, %v3641, -inf
    %3664 = vmax.xlane.f32.xlu0 %v3663
    %v3665 = vpop.xlane.xlu0 %3664
    %v3666 = vsel %vm281, %v3642, -inf
    %3667 = vmax.xlane.f32.xlu0 %v3666
    %v3668 = vpop.xlane.xlu0 %3667
    %v3669 = vsel %vm281, %v3643, -inf
    %3670 = vmax.xlane.f32.xlu0 %v3669
    %v3671 = vpop.xlane.xlu0 %3670
    %v3672 = vsel %vm281, %v3644, -inf
    %3673 = vmax.xlane.f32.xlu0 %v3672
    %v3674 = vpop.xlane.xlu0 %3673
    %v3675 = vsel %vm281, %v3645, -inf
    %3676 = vmax.xlane.f32.xlu0 %v3675
    %v3677 = vpop.xlane.xlu0 %3676
    %v3678 = vsel %vm281, %v3646, -inf
    %3679 = vmax.xlane.f32.xlu0 %v3678
    %v3680 = vpop.xlane.xlu0 %3679
    %v3681 = vsel %vm281, %v3647, -inf
    %3682 = vmax.xlane.f32.xlu0 %v3681
    %v3683 = vpop.xlane.xlu0 %3682
    %v3684 = vsel %vm281, %v3648, -inf
    %3685 = vmax.xlane.f32.xlu0 %v3684
    %v3686 = vpop.xlane.xlu0 %3685
    %v3687 = vsel %vm281, %v3649, -inf
    %3688 = vmax.xlane.f32.xlu0 %v3687
    %v3689 = vpop.xlane.xlu0 %3688
    %v3690 = vsel %vm281, %v3650, -inf
    %3691 = vmax.xlane.f32.xlu0 %v3690
    %v3692 = vpop.xlane.xlu0 %3691
    %v3693 = vsel %vm281, %v3651, -inf
    %3694 = vmax.xlane.f32.xlu0 %v3693
    %v3695 = vpop.xlane.xlu0 %3694
    %v3696 = vsel %vm281, %v3652, -inf
    %3697 = vmax.xlane.f32.xlu0 %v3696
    %v3698 = vpop.xlane.xlu0 %3697
    %v3699 = vsel %vm281, %v3653, -inf
    %3700 = vmax.xlane.f32.xlu0 %v3699
    %v3701 = vpop.xlane.xlu0 %3700
    %v3702 = vsub.f32 %v3638, %v3656
    %v3703 = vsub.f32 %v3639, %v3659
    %v3704 = vsub.f32 %v3640, %v3662
    %v3705 = vsub.f32 %v3641, %v3665
    %v3706 = vsub.f32 %v3642, %v3668
    %v3707 = vsub.f32 %v3643, %v3671
    %v3708 = vsub.f32 %v3644, %v3674
    %v3709 = vsub.f32 %v3645, %v3677
    %v3710 = vsub.f32 %v3646, %v3680
    %v3711 = vsub.f32 %v3647, %v3683
    %v3712 = vsub.f32 %v3648, %v3686
    %v3713 = vsub.f32 %v3649, %v3689
    %v3714 = vsub.f32 %v3650, %v3692
    %v3715 = vsub.f32 %v3651, %v3695
    %v3716 = vsub.f32 %v3652, %v3698
    %v3717 = vsub.f32 %v3653, %v3701
    %v3718 = vmul.f32 %v3702, 1.442695
    %v3719 = vpow.pop %v3718
    %v3720 = vmul.f32 %v3703, 1.442695
    %v3721 = vpow.pop %v3720
    %v3722 = vmul.f32 %v3704, 1.442695
    %v3723 = vpow.pop %v3722
    %v3724 = vmul.f32 %v3705, 1.442695
    %v3725 = vpow.pop %v3724
    %v3726 = vmul.f32 %v3706, 1.442695
    %v3727 = vpow.pop %v3726
    %v3728 = vmul.f32 %v3707, 1.442695
    %v3729 = vpow.pop %v3728
    %v3730 = vmul.f32 %v3708, 1.442695
    %v3731 = vpow.pop %v3730
    %v3732 = vmul.f32 %v3709, 1.442695
    %v3733 = vpow.pop %v3732
    %v3734 = vmul.f32 %v3710, 1.442695
    %v3735 = vpow.pop %v3734
    %v3736 = vmul.f32 %v3711, 1.442695
    %v3737 = vpow.pop %v3736
    %v3738 = vmul.f32 %v3712, 1.442695
    %v3739 = vpow.pop %v3738
    %v3740 = vmul.f32 %v3713, 1.442695
    %v3741 = vpow.pop %v3740
    %v3742 = vmul.f32 %v3714, 1.442695
    %v3743 = vpow.pop %v3742
    %v3744 = vmul.f32 %v3715, 1.442695
    %v3745 = vpow.pop %v3744
    %v3746 = vmul.f32 %v3716, 1.442695
    %v3747 = vpow.pop %v3746
    %v3748 = vmul.f32 %v3717, 1.442695
    %v3749 = vpow.pop %v3748
    %v3750 = vsel %vm281, %v3719, 0.0
    %3751 = vadd.xlane.f32.xlu0 %v3750
    %v3752 = vpop.xlane.xlu0 %3751
    %v3753 = vsel %vm281, %v3721, 0.0
    %3754 = vadd.xlane.f32.xlu0 %v3753
    %v3755 = vpop.xlane.xlu0 %3754
    %v3756 = vsel %vm281, %v3723, 0.0
    %3757 = vadd.xlane.f32.xlu0 %v3756
    %v3758 = vpop.xlane.xlu0 %3757
    %v3759 = vsel %vm281, %v3725, 0.0
    %3760 = vadd.xlane.f32.xlu0 %v3759
    %v3761 = vpop.xlane.xlu0 %3760
    %v3762 = vsel %vm281, %v3727, 0.0
    %3763 = vadd.xlane.f32.xlu0 %v3762
    %v3764 = vpop.xlane.xlu0 %3763
    %v3765 = vsel %vm281, %v3729, 0.0
    %3766 = vadd.xlane.f32.xlu0 %v3765
    %v3767 = vpop.xlane.xlu0 %3766
    %v3768 = vsel %vm281, %v3731, 0.0
    %3769 = vadd.xlane.f32.xlu0 %v3768
    %v3770 = vpop.xlane.xlu0 %3769
    %v3771 = vsel %vm281, %v3733, 0.0
    %3772 = vadd.xlane.f32.xlu0 %v3771
    %v3773 = vpop.xlane.xlu0 %3772
    %v3774 = vsel %vm281, %v3735, 0.0
    %3775 = vadd.xlane.f32.xlu0 %v3774
    %v3776 = vpop.xlane.xlu0 %3775
    %v3777 = vsel %vm281, %v3737, 0.0
    %3778 = vadd.xlane.f32.xlu0 %v3777
    %v3779 = vpop.xlane.xlu0 %3778
    %v3780 = vsel %vm281, %v3739, 0.0
    %3781 = vadd.xlane.f32.xlu0 %v3780
    %v3782 = vpop.xlane.xlu0 %3781
    %v3783 = vsel %vm281, %v3741, 0.0
    %3784 = vadd.xlane.f32.xlu0 %v3783
    %v3785 = vpop.xlane.xlu0 %3784
    %v3786 = vsel %vm281, %v3743, 0.0
    %3787 = vadd.xlane.f32.xlu0 %v3786
    %v3788 = vpop.xlane.xlu0 %3787
    %v3789 = vsel %vm281, %v3745, 0.0
    %3790 = vadd.xlane.f32.xlu0 %v3789
    %v3791 = vpop.xlane.xlu0 %3790
    %v3792 = vsel %vm281, %v3747, 0.0
    %3793 = vadd.xlane.f32.xlu0 %v3792
    %v3794 = vpop.xlane.xlu0 %3793
    %v3795 = vsel %vm281, %v3749, 0.0
    %3796 = vadd.xlane.f32.xlu0 %v3795
    %v3797 = vpop.xlane.xlu0 %3796
    %v3798 = vrcp.pop %v3752
    %v3799 = vmul.f32 %v3719, %v3798
    %v3800 = vrcp.pop %v3755
    %v3801 = vmul.f32 %v3721, %v3800
    %v3802 = vrcp.pop %v3758
    %v3803 = vmul.f32 %v3723, %v3802
    %v3804 = vrcp.pop %v3761
    %v3805 = vmul.f32 %v3725, %v3804
    %v3806 = vrcp.pop %v3764
    %v3807 = vmul.f32 %v3727, %v3806
    %v3808 = vrcp.pop %v3767
    %v3809 = vmul.f32 %v3729, %v3808
    %v3810 = vrcp.pop %v3770
    %v3811 = vmul.f32 %v3731, %v3810
    %v3812 = vrcp.pop %v3773
    %v3813 = vmul.f32 %v3733, %v3812
    %v3814 = vrcp.pop %v3776
    %v3815 = vmul.f32 %v3735, %v3814
    %v3816 = vrcp.pop %v3779
    %v3817 = vmul.f32 %v3737, %v3816
    %v3818 = vrcp.pop %v3782
    %v3819 = vmul.f32 %v3739, %v3818
    %v3820 = vrcp.pop %v3785
    %v3821 = vmul.f32 %v3741, %v3820
    %v3822 = vrcp.pop %v3788
    %v3823 = vmul.f32 %v3743, %v3822
    %v3824 = vrcp.pop %v3791
    %v3825 = vmul.f32 %v3745, %v3824
    %v3826 = vrcp.pop %v3794
    %v3827 = vmul.f32 %v3747, %v3826
    %v3828 = vrcp.pop %v3797
    %v3829 = vmul.f32 %v3749, %v3828
    %3830 = vst.msk [vmem:[#allocation3] sm:$0xff] %vm281, %v3799
    %3831 = vst.msk [vmem:[#allocation3 + $0x8] sm:$0xff] %vm281, %v3801
    %3832 = vst.msk [vmem:[#allocation3 + $0x10] sm:$0xff] %vm281, %v3803
    %3833 = vst.msk [vmem:[#allocation3 + $0x18] sm:$0xff] %vm281, %v3805
    %3834 = vst.msk [vmem:[#allocation3 + $0x20] sm:$0xff] %vm281, %v3807
    %3835 = vst.msk [vmem:[#allocation3 + $0x28] sm:$0xff] %vm281, %v3809
    %3836 = vst.msk [vmem:[#allocation3 + $0x30] sm:$0xff] %vm281, %v3811
    %3837 = vst.msk [vmem:[#allocation3 + $0x38] sm:$0xff] %vm281, %v3813
    %3838 = vst.msk [vmem:[#allocation3 + $0x40] sm:$0xff] %vm281, %v3815
    %3839 = vst.msk [vmem:[#allocation3 + $0x48] sm:$0xff] %vm281, %v3817
    %3840 = vst.msk [vmem:[#allocation3 + $0x50] sm:$0xff] %vm281, %v3819
    %3841 = vst.msk [vmem:[#allocation3 + $0x58] sm:$0xff] %vm281, %v3821
    %3842 = vst.msk [vmem:[#allocation3 + $0x60] sm:$0xff] %vm281, %v3823
    %3843 = vst.msk [vmem:[#allocation3 + $0x68] sm:$0xff] %vm281, %v3825
    %3844 = vst.msk [vmem:[#allocation3 + $0x70] sm:$0xff] %vm281, %v3827
    %3845 = vst.msk [vmem:[#allocation3 + $0x78] sm:$0xff] %vm281, %v3829
    %v3846 = vld [vmem:[#allocation3] ss:$8 sm:$0xf]
    %v3847 = vld [vmem:[#allocation3] ss:$8 sm:$0xf0]
    %v3848 = vor.u32 %v3846, %v3847
    %s3849 = scalar_lea.vmem [#allocation3], 64
    %v3850 = vld [vmem:[%s3849] ss:$8 sm:$0xf]
    %v3851 = vld [vmem:[%s3849] ss:$8 sm:$0xf0]
    %v3852 = vor.u32 %v3850, %v3851
    %v3853 = vld [vmem:[%s1] sm:$0xff]
    %vm3854 = vcmask 130048
    %v3856 = vsel %vm3854, %v3853, 0
    %3858 = vmatprep.subr.mxu0 0.0
    %3859 = vmatpush1.msra.mxu0 %v3848
    %3860 = vmatprep.subr.mxu0 0.0
    %3861 = vmatpush1.msra.mxu0 %v3852
    %3862 = vmatprep.subr.mxu0 0.0
    %3863 = vmatpush1.msra.mxu0 0.0
    %3864 = vmatprep.subr.mxu0 0.0
    %3865 = vmatpush1.msra.mxu0 0.0
    %3866 = vmatprep.subr.mxu0 0.0
    %3867 = vmatpush1.msra.mxu0 0.0
    %3868 = vmatprep.subr.mxu0 0.0
    %3869 = vmatpush1.msra.mxu0 0.0
    %3870 = vmatprep.subr.mxu0 0.0
    %3871 = vmatpush1.msra.mxu0 0.0
    %3872 = vmatprep.subr.mxu0 0.0
    %3873 = vmatpush1.msra.mxu0 0.0
    %3874 = vmatprep.subr.mxu0 0.0
    %3875 = vmatpush1.msra.mxu0 0.0
    %3876 = vmatprep.subr.mxu0 0.0
    %3877 = vmatpush1.msra.mxu0 0.0
    %3878 = vmatprep.subr.mxu0 0.0
    %3879 = vmatpush1.msra.mxu0 0.0
    %3880 = vmatprep.subr.mxu0 0.0
    %3881 = vmatpush1.msra.mxu0 0.0
    %3882 = vmatprep.subr.mxu0 0.0
    %3883 = vmatpush1.msra.mxu0 0.0
    %3884 = vmatprep.subr.mxu0 0.0
    %3885 = vmatpush1.msra.mxu0 0.0
    %3886 = vmatprep.subr.mxu0 0.0
    %3887 = vmatpush1.msra.mxu0 0.0
    %3888 = vmatprep.subr.mxu0 0.0
    %3889 = vmatpush1.msra.mxu0 0.0
    %3890 = vmatprep.subr.mxu0 0.0
    %3891 = vmatpush1.msra.mxu0 0.0
    %3892 = vmatprep.subr.mxu0 0.0
    %3893 = vmatpush1.msra.mxu0 0.0
    %3894 = vmatprep.subr.mxu0 0.0
    %3895 = vmatpush1.msra.mxu0 0.0
    %3896 = vmatprep.subr.mxu0 0.0
    %3897 = vmatpush1.msra.mxu0 0.0
    %3898 = vmatprep.subr.mxu0 0.0
    %3899 = vmatpush1.msra.mxu0 0.0
    %3900 = vmatprep.subr.mxu0 0.0
    %3901 = vmatpush1.msra.mxu0 0.0
    %3902 = vmatprep.subr.mxu0 0.0
    %3903 = vmatpush1.msra.mxu0 0.0
    %3904 = vmatprep.subr.mxu0 0.0
    %3905 = vmatpush1.msra.mxu0 0.0
    %3906 = vmatprep.subr.mxu0 0.0
    %3907 = vmatpush1.msra.mxu0 0.0
    %3908 = vmatprep.subr.mxu0 0.0
    %3909 = vmatpush1.msra.mxu0 0.0
    %3910 = vmatprep.subr.mxu0 0.0
    %3911 = vmatpush1.msra.mxu0 0.0
    %3912 = vmatprep.subr.mxu0 0.0
    %3913 = vmatpush1.msra.mxu0 0.0
    %3914 = vmatprep.subr.mxu0 0.0
    %3915 = vmatpush1.msra.mxu0 0.0
    %3916 = vmatprep.subr.mxu0 0.0
    %3917 = vmatpush1.msra.mxu0 0.0
    %3918 = vmatprep.subr.mxu0 0.0
    %3919 = vmatpush1.msra.mxu0 0.0
    %3920 = vmatprep.subr.mxu0 0.0
    %3921 = vmatpush1.msra.mxu0 0.0
    %3922 = vmatprep.mubr.f32.mxu0 0.0
    %3923 = vmatmul.mubr.f32.gmra.mrb[0].mxu0 %v3856
    %v3924 = vpop.f32.mrb[0].mxu0
    %v3925 = vadd.f32 0.0, %v3924
    %v3926 = vpop.f32.mrb[0].mxu0
    %3927 = vdwg.mxu0
    %3928 = vst.msk [vmem:[#allocation4] sm:$0xff] %vm281, %v3925
    %s3929 = scalar_lea.vmem [#allocation3], 1
    %v3930 = vld [vmem:[%s3929] ss:$8 sm:$0xf]
    %v3931 = vld [vmem:[%s3929] ss:$8 sm:$0xf0]
    %v3932 = vor.u32 %v3930, %v3931
    %s3933 = scalar_lea.vmem [#allocation3], 65
    %v3934 = vld [vmem:[%s3933] ss:$8 sm:$0xf]
    %v3935 = vld [vmem:[%s3933] ss:$8 sm:$0xf0]
    %v3936 = vor.u32 %v3934, %v3935
    %s3937 = scalar_lea.vmem %s1, 8
    %v3938 = vld [vmem:[%s3937] sm:$0xff]
    %v3940 = vsel %vm3854, %v3938, 0
    %3942 = vmatprep.subr.mxu0 0.0
    %3943 = vmatpush1.msra.mxu0 %v3932
    %3944 = vmatprep.subr.mxu0 0.0
    %3945 = vmatpush1.msra.mxu0 %v3936
    %3946 = vmatprep.subr.mxu0 0.0
    %3947 = vmatpush1.msra.mxu0 0.0
    %3948 = vmatprep.subr.mxu0 0.0
    %3949 = vmatpush1.msra.mxu0 0.0
    %3950 = vmatprep.subr.mxu0 0.0
    %3951 = vmatpush1.msra.mxu0 0.0
    %3952 = vmatprep.subr.mxu0 0.0
    %3953 = vmatpush1.msra.mxu0 0.0
    %3954 = vmatprep.subr.mxu0 0.0
    %3955 = vmatpush1.msra.mxu0 0.0
    %3956 = vmatprep.subr.mxu0 0.0
    %3957 = vmatpush1.msra.mxu0 0.0
    %3958 = vmatprep.subr.mxu0 0.0
    %3959 = vmatpush1.msra.mxu0 0.0
    %3960 = vmatprep.subr.mxu0 0.0
    %3961 = vmatpush1.msra.mxu0 0.0
    %3962 = vmatprep.subr.mxu0 0.0
    %3963 = vmatpush1.msra.mxu0 0.0
    %3964 = vmatprep.subr.mxu0 0.0
    %3965 = vmatpush1.msra.mxu0 0.0
    %3966 = vmatprep.subr.mxu0 0.0
    %3967 = vmatpush1.msra.mxu0 0.0
    %3968 = vmatprep.subr.mxu0 0.0
    %3969 = vmatpush1.msra.mxu0 0.0
    %3970 = vmatprep.subr.mxu0 0.0
    %3971 = vmatpush1.msra.mxu0 0.0
    %3972 = vmatprep.subr.mxu0 0.0
    %3973 = vmatpush1.msra.mxu0 0.0
    %3974 = vmatprep.subr.mxu0 0.0
    %3975 = vmatpush1.msra.mxu0 0.0
    %3976 = vmatprep.subr.mxu0 0.0
    %3977 = vmatpush1.msra.mxu0 0.0
    %3978 = vmatprep.subr.mxu0 0.0
    %3979 = vmatpush1.msra.mxu0 0.0
    %3980 = vmatprep.subr.mxu0 0.0
    %3981 = vmatpush1.msra.mxu0 0.0
    %3982 = vmatprep.subr.mxu0 0.0
    %3983 = vmatpush1.msra.mxu0 0.0
    %3984 = vmatprep.subr.mxu0 0.0
    %3985 = vmatpush1.msra.mxu0 0.0
    %3986 = vmatprep.subr.mxu0 0.0
    %3987 = vmatpush1.msra.mxu0 0.0
    %3988 = vmatprep.subr.mxu0 0.0
    %3989 = vmatpush1.msra.mxu0 0.0
    %3990 = vmatprep.subr.mxu0 0.0
    %3991 = vmatpush1.msra.mxu0 0.0
    %3992 = vmatprep.subr.mxu0 0.0
    %3993 = vmatpush1.msra.mxu0 0.0
    %3994 = vmatprep.subr.mxu0 0.0
    %3995 = vmatpush1.msra.mxu0 0.0
    %3996 = vmatprep.subr.mxu0 0.0
    %3997 = vmatpush1.msra.mxu0 0.0
    %3998 = vmatprep.subr.mxu0 0.0
    %3999 = vmatpush1.msra.mxu0 0.0
    %4000 = vmatprep.subr.mxu0 0.0
    %4001 = vmatpush1.msra.mxu0 0.0
    %4002 = vmatprep.subr.mxu0 0.0
    %4003 = vmatpush1.msra.mxu0 0.0
    %4004 = vmatprep.subr.mxu0 0.0
    %4005 = vmatpush1.msra.mxu0 0.0
    %4006 = vmatprep.mubr.f32.mxu0 0.0
    %4007 = vmatmul.mubr.f32.gmra.mrb[0].mxu0 %v3940
    %v4008 = vpop.f32.mrb[0].mxu0
    %v4009 = vadd.f32 0.0, %v4008
    %v4010 = vpop.f32.mrb[0].mxu0
    %4011 = vdwg.mxu0
    %s4012 = scalar_lea.vmem [#allocation4], 8
    %4013 = vst.msk [vmem:[%s4012] sm:$0xff] %vm281, %v4009
    %s4014 = scalar_lea.vmem [#allocation3], 2
    %v4015 = vld [vmem:[%s4014] ss:$8 sm:$0xf]
    %v4016 = vld [vmem:[%s4014] ss:$8 sm:$0xf0]
    %v4017 = vor.u32 %v4015, %v4016
    %s4018 = scalar_lea.vmem [#allocation3], 66
    %v4019 = vld [vmem:[%s4018] ss:$8 sm:$0xf]
    %v4020 = vld [vmem:[%s4018] ss:$8 sm:$0xf0]
    %v4021 = vor.u32 %v4019, %v4020
    %s4022 = scalar_lea.vmem %s1, 16
    %v4023 = vld [vmem:[%s4022] sm:$0xff]
    %v4025 = vsel %vm3854, %v4023, 0
    %4027 = vmatprep.subr.mxu0 0.0
    %4028 = vmatpush1.msra.mxu0 %v4017
    %4029 = vmatprep.subr.mxu0 0.0
    %4030 = vmatpush1.msra.mxu0 %v4021
    %4031 = vmatprep.subr.mxu0 0.0
    %4032 = vmatpush1.msra.mxu0 0.0
    %4033 = vmatprep.subr.mxu0 0.0
    %4034 = vmatpush1.msra.mxu0 0.0
    %4035 = vmatprep.subr.mxu0 0.0
    %4036 = vmatpush1.msra.mxu0 0.0
    %4037 = vmatprep.subr.mxu0 0.0
    %4038 = vmatpush1.msra.mxu0 0.0
    %4039 = vmatprep.subr.mxu0 0.0
    %4040 = vmatpush1.msra.mxu0 0.0
    %4041 = vmatprep.subr.mxu0 0.0
    %4042 = vmatpush1.msra.mxu0 0.0
    %4043 = vmatprep.subr.mxu0 0.0
    %4044 = vmatpush1.msra.mxu0 0.0
    %4045 = vmatprep.subr.mxu0 0.0
    %4046 = vmatpush1.msra.mxu0 0.0
    %4047 = vmatprep.subr.mxu0 0.0
    %4048 = vmatpush1.msra.mxu0 0.0
    %4049 = vmatprep.subr.mxu0 0.0
    %4050 = vmatpush1.msra.mxu0 0.0
    %4051 = vmatprep.subr.mxu0 0.0
    %4052 = vmatpush1.msra.mxu0 0.0
    %4053 = vmatprep.subr.mxu0 0.0
    %4054 = vmatpush1.msra.mxu0 0.0
    %4055 = vmatprep.subr.mxu0 0.0
    %4056 = vmatpush1.msra.mxu0 0.0
    %4057 = vmatprep.subr.mxu0 0.0
    %4058 = vmatpush1.msra.mxu0 0.0
    %4059 = vmatprep.subr.mxu0 0.0
    %4060 = vmatpush1.msra.mxu0 0.0
    %4061 = vmatprep.subr.mxu0 0.0
    %4062 = vmatpush1.msra.mxu0 0.0
    %4063 = vmatprep.subr.mxu0 0.0
    %4064 = vmatpush1.msra.mxu0 0.0
    %4065 = vmatprep.subr.mxu0 0.0
    %4066 = vmatpush1.msra.mxu0 0.0
    %4067 = vmatprep.subr.mxu0 0.0
    %4068 = vmatpush1.msra.mxu0 0.0
    %4069 = vmatprep.subr.mxu0 0.0
    %4070 = vmatpush1.msra.mxu0 0.0
    %4071 = vmatprep.subr.mxu0 0.0
    %4072 = vmatpush1.msra.mxu0 0.0
    %4073 = vmatprep.subr.mxu0 0.0
    %4074 = vmatpush1.msra.mxu0 0.0
    %4075 = vmatprep.subr.mxu0 0.0
    %4076 = vmatpush1.msra.mxu0 0.0
    %4077 = vmatprep.subr.mxu0 0.0
    %4078 = vmatpush1.msra.mxu0 0.0
    %4079 = vmatprep.subr.mxu0 0.0
    %4080 = vmatpush1.msra.mxu0 0.0
    %4081 = vmatprep.subr.mxu0 0.0
    %4082 = vmatpush1.msra.mxu0 0.0
    %4083 = vmatprep.subr.mxu0 0.0
    %4084 = vmatpush1.msra.mxu0 0.0
    %4085 = vmatprep.subr.mxu0 0.0
    %4086 = vmatpush1.msra.mxu0 0.0
    %4087 = vmatprep.subr.mxu0 0.0
    %4088 = vmatpush1.msra.mxu0 0.0
    %4089 = vmatprep.subr.mxu0 0.0
    %4090 = vmatpush1.msra.mxu0 0.0
    %4091 = vmatprep.mubr.f32.mxu0 0.0
    %4092 = vmatmul.mubr.f32.gmra.mrb[0].mxu0 %v4025
    %v4093 = vpop.f32.mrb[0].mxu0
    %v4094 = vadd.f32 0.0, %v4093
    %v4095 = vpop.f32.mrb[0].mxu0
    %4096 = vdwg.mxu0
    %s4097 = scalar_lea.vmem [#allocation4], 16
    %4098 = vst.msk [vmem:[%s4097] sm:$0xff] %vm281, %v4094
    %s4099 = scalar_lea.vmem [#allocation3], 3
    %v4100 = vld [vmem:[%s4099] ss:$8 sm:$0xf]
    %v4101 = vld [vmem:[%s4099] ss:$8 sm:$0xf0]
    %v4102 = vor.u32 %v4100, %v4101
    %s4103 = scalar_lea.vmem [#allocation3], 67
    %v4104 = vld [vmem:[%s4103] ss:$8 sm:$0xf]
    %v4105 = vld [vmem:[%s4103] ss:$8 sm:$0xf0]
    %v4106 = vor.u32 %v4104, %v4105
    %s4107 = scalar_lea.vmem %s1, 24
    %v4108 = vld [vmem:[%s4107] sm:$0xff]
    %v4110 = vsel %vm3854, %v4108, 0
    %4112 = vmatprep.subr.mxu0 0.0
    %4113 = vmatpush1.msra.mxu0 %v4102
    %4114 = vmatprep.subr.mxu0 0.0
    %4115 = vmatpush1.msra.mxu0 %v4106
    %4116 = vmatprep.subr.mxu0 0.0
    %4117 = vmatpush1.msra.mxu0 0.0
    %4118 = vmatprep.subr.mxu0 0.0
    %4119 = vmatpush1.msra.mxu0 0.0
    %4120 = vmatprep.subr.mxu0 0.0
    %4121 = vmatpush1.msra.mxu0 0.0
    %4122 = vmatprep.subr.mxu0 0.0
    %4123 = vmatpush1.msra.mxu0 0.0
    %4124 = vmatprep.subr.mxu0 0.0
    %4125 = vmatpush1.msra.mxu0 0.0
    %4126 = vmatprep.subr.mxu0 0.0
    %4127 = vmatpush1.msra.mxu0 0.0
    %4128 = vmatprep.subr.mxu0 0.0
    %4129 = vmatpush1.msra.mxu0 0.0
    %4130 = vmatprep.subr.mxu0 0.0
    %4131 = vmatpush1.msra.mxu0 0.0
    %4132 = vmatprep.subr.mxu0 0.0
    %4133 = vmatpush1.msra.mxu0 0.0
    %4134 = vmatprep.subr.mxu0 0.0
    %4135 = vmatpush1.msra.mxu0 0.0
    %4136 = vmatprep.subr.mxu0 0.0
    %4137 = vmatpush1.msra.mxu0 0.0
    %4138 = vmatprep.subr.mxu0 0.0
    %4139 = vmatpush1.msra.mxu0 0.0
    %4140 = vmatprep.subr.mxu0 0.0
    %4141 = vmatpush1.msra.mxu0 0.0
    %4142 = vmatprep.subr.mxu0 0.0
    %4143 = vmatpush1.msra.mxu0 0.0
    %4144 = vmatprep.subr.mxu0 0.0
    %4145 = vmatpush1.msra.mxu0 0.0
    %4146 = vmatprep.subr.mxu0 0.0
    %4147 = vmatpush1.msra.mxu0 0.0
    %4148 = vmatprep.subr.mxu0 0.0
    %4149 = vmatpush1.msra.mxu0 0.0
    %4150 = vmatprep.subr.mxu0 0.0
    %4151 = vmatpush1.msra.mxu0 0.0
    %4152 = vmatprep.subr.mxu0 0.0
    %4153 = vmatpush1.msra.mxu0 0.0
    %4154 = vmatprep.subr.mxu0 0.0
    %4155 = vmatpush1.msra.mxu0 0.0
    %4156 = vmatprep.subr.mxu0 0.0
    %4157 = vmatpush1.msra.mxu0 0.0
    %4158 = vmatprep.subr.mxu0 0.0
    %4159 = vmatpush1.msra.mxu0 0.0
    %4160 = vmatprep.subr.mxu0 0.0
    %4161 = vmatpush1.msra.mxu0 0.0
    %4162 = vmatprep.subr.mxu0 0.0
    %4163 = vmatpush1.msra.mxu0 0.0
    %4164 = vmatprep.subr.mxu0 0.0
    %4165 = vmatpush1.msra.mxu0 0.0
    %4166 = vmatprep.subr.mxu0 0.0
    %4167 = vmatpush1.msra.mxu0 0.0
    %4168 = vmatprep.subr.mxu0 0.0
    %4169 = vmatpush1.msra.mxu0 0.0
    %4170 = vmatprep.subr.mxu0 0.0
    %4171 = vmatpush1.msra.mxu0 0.0
    %4172 = vmatprep.subr.mxu0 0.0
    %4173 = vmatpush1.msra.mxu0 0.0
    %4174 = vmatprep.subr.mxu0 0.0
    %4175 = vmatpush1.msra.mxu0 0.0
    %4176 = vmatprep.mubr.f32.mxu0 0.0
    %4177 = vmatmul.mubr.f32.gmra.mrb[0].mxu0 %v4110
    %v4178 = vpop.f32.mrb[0].mxu0
    %v4179 = vadd.f32 0.0, %v4178
    %v4180 = vpop.f32.mrb[0].mxu0
    %4181 = vdwg.mxu0
    %s4182 = scalar_lea.vmem [#allocation4], 24
    %4183 = vst.msk [vmem:[%s4182] sm:$0xff] %vm281, %v4179
    %s4184 = scalar_lea.vmem [#allocation3], 4
    %v4185 = vld [vmem:[%s4184] ss:$8 sm:$0xf]
    %v4186 = vld [vmem:[%s4184] ss:$8 sm:$0xf0]
    %v4187 = vor.u32 %v4185, %v4186
    %s4188 = scalar_lea.vmem [#allocation3], 68
    %v4189 = vld [vmem:[%s4188] ss:$8 sm:$0xf]
    %v4190 = vld [vmem:[%s4188] ss:$8 sm:$0xf0]
    %v4191 = vor.u32 %v4189, %v4190
    %s4192 = scalar_lea.vmem %s1, 32
    %v4193 = vld [vmem:[%s4192] sm:$0xff]
    %v4195 = vsel %vm3854, %v4193, 0
    %4197 = vmatprep.subr.mxu0 0.0
    %4198 = vmatpush1.msra.mxu0 %v4187
    %4199 = vmatprep.subr.mxu0 0.0
    %4200 = vmatpush1.msra.mxu0 %v4191
    %4201 = vmatprep.subr.mxu0 0.0
    %4202 = vmatpush1.msra.mxu0 0.0
    %4203 = vmatprep.subr.mxu0 0.0
    %4204 = vmatpush1.msra.mxu0 0.0
    %4205 = vmatprep.subr.mxu0 0.0
    %4206 = vmatpush1.msra.mxu0 0.0
    %4207 = vmatprep.subr.mxu0 0.0
    %4208 = vmatpush1.msra.mxu0 0.0
    %4209 = vmatprep.subr.mxu0 0.0
    %4210 = vmatpush1.msra.mxu0 0.0
    %4211 = vmatprep.subr.mxu0 0.0
    %4212 = vmatpush1.msra.mxu0 0.0
    %4213 = vmatprep.subr.mxu0 0.0
    %4214 = vmatpush1.msra.mxu0 0.0
    %4215 = vmatprep.subr.mxu0 0.0
    %4216 = vmatpush1.msra.mxu0 0.0
    %4217 = vmatprep.subr.mxu0 0.0
    %4218 = vmatpush1.msra.mxu0 0.0
    %4219 = vmatprep.subr.mxu0 0.0
    %4220 = vmatpush1.msra.mxu0 0.0
    %4221 = vmatprep.subr.mxu0 0.0
    %4222 = vmatpush1.msra.mxu0 0.0
    %4223 = vmatprep.subr.mxu0 0.0
    %4224 = vmatpush1.msra.mxu0 0.0
    %4225 = vmatprep.subr.mxu0 0.0
    %4226 = vmatpush1.msra.mxu0 0.0
    %4227 = vmatprep.subr.mxu0 0.0
    %4228 = vmatpush1.msra.mxu0 0.0
    %4229 = vmatprep.subr.mxu0 0.0
    %4230 = vmatpush1.msra.mxu0 0.0
    %4231 = vmatprep.subr.mxu0 0.0
    %4232 = vmatpush1.msra.mxu0 0.0
    %4233 = vmatprep.subr.mxu0 0.0
    %4234 = vmatpush1.msra.mxu0 0.0
    %4235 = vmatprep.subr.mxu0 0.0
    %4236 = vmatpush1.msra.mxu0 0.0
    %4237 = vmatprep.subr.mxu0 0.0
    %4238 = vmatpush1.msra.mxu0 0.0
    %4239 = vmatprep.subr.mxu0 0.0
    %4240 = vmatpush1.msra.mxu0 0.0
    %4241 = vmatprep.subr.mxu0 0.0
    %4242 = vmatpush1.msra.mxu0 0.0
    %4243 = vmatprep.subr.mxu0 0.0
    %4244 = vmatpush1.msra.mxu0 0.0
    %4245 = vmatprep.subr.mxu0 0.0
    %4246 = vmatpush1.msra.mxu0 0.0
    %4247 = vmatprep.subr.mxu0 0.0
    %4248 = vmatpush1.msra.mxu0 0.0
    %4249 = vmatprep.subr.mxu0 0.0
    %4250 = vmatpush1.msra.mxu0 0.0
    %4251 = vmatprep.subr.mxu0 0.0
    %4252 = vmatpush1.msra.mxu0 0.0
    %4253 = vmatprep.subr.mxu0 0.0
    %4254 = vmatpush1.msra.mxu0 0.0
    %4255 = vmatprep.subr.mxu0 0.0
    %4256 = vmatpush1.msra.mxu0 0.0
    %4257 = vmatprep.subr.mxu0 0.0
    %4258 = vmatpush1.msra.mxu0 0.0
    %4259 = vmatprep.subr.mxu0 0.0
    %4260 = vmatpush1.msra.mxu0 0.0
    %4261 = vmatprep.mubr.f32.mxu0 0.0
    %4262 = vmatmul.mubr.f32.gmra.mrb[0].mxu0 %v4195
    %v4263 = vpop.f32.mrb[0].mxu0
    %v4264 = vadd.f32 0.0, %v4263
    %v4265 = vpop.f32.mrb[0].mxu0
    %4266 = vdwg.mxu0
    %s4267 = scalar_lea.vmem [#allocation4], 32
    %4268 = vst.msk [vmem:[%s4267] sm:$0xff] %vm281, %v4264
    %s4269 = scalar_lea.vmem [#allocation3], 5
    %v4270 = vld [vmem:[%s4269] ss:$8 sm:$0xf]
    %v4271 = vld [vmem:[%s4269] ss:$8 sm:$0xf0]
    %v4272 = vor.u32 %v4270, %v4271
    %s4273 = scalar_lea.vmem [#allocation3], 69
    %v4274 = vld [vmem:[%s4273] ss:$8 sm:$0xf]
    %v4275 = vld [vmem:[%s4273] ss:$8 sm:$0xf0]
    %v4276 = vor.u32 %v4274, %v4275
    %s4277 = scalar_lea.vmem %s1, 40
    %v4278 = vld [vmem:[%s4277] sm:$0xff]
    %v4280 = vsel %vm3854, %v4278, 0
    %4282 = vmatprep.subr.mxu0 0.0
    %4283 = vmatpush1.msra.mxu0 %v4272
    %4284 = vmatprep.subr.mxu0 0.0
    %4285 = vmatpush1.msra.mxu0 %v4276
    %4286 = vmatprep.subr.mxu0 0.0
    %4287 = vmatpush1.msra.mxu0 0.0
    %4288 = vmatprep.subr.mxu0 0.0
    %4289 = vmatpush1.msra.mxu0 0.0
    %4290 = vmatprep.subr.mxu0 0.0
    %4291 = vmatpush1.msra.mxu0 0.0
    %4292 = vmatprep.subr.mxu0 0.0
    %4293 = vmatpush1.msra.mxu0 0.0
    %4294 = vmatprep.subr.mxu0 0.0
    %4295 = vmatpush1.msra.mxu0 0.0
    %4296 = vmatprep.subr.mxu0 0.0
    %4297 = vmatpush1.msra.mxu0 0.0
    %4298 = vmatprep.subr.mxu0 0.0
    %4299 = vmatpush1.msra.mxu0 0.0
    %4300 = vmatprep.subr.mxu0 0.0
    %4301 = vmatpush1.msra.mxu0 0.0
    %4302 = vmatprep.subr.mxu0 0.0
    %4303 = vmatpush1.msra.mxu0 0.0
    %4304 = vmatprep.subr.mxu0 0.0
    %4305 = vmatpush1.msra.mxu0 0.0
    %4306 = vmatprep.subr.mxu0 0.0
    %4307 = vmatpush1.msra.mxu0 0.0
    %4308 = vmatprep.subr.mxu0 0.0
    %4309 = vmatpush1.msra.mxu0 0.0
    %4310 = vmatprep.subr.mxu0 0.0
    %4311 = vmatpush1.msra.mxu0 0.0
    %4312 = vmatprep.subr.mxu0 0.0
    %4313 = vmatpush1.msra.mxu0 0.0
    %4314 = vmatprep.subr.mxu0 0.0
    %4315 = vmatpush1.msra.mxu0 0.0
    %4316 = vmatprep.subr.mxu0 0.0
    %4317 = vmatpush1.msra.mxu0 0.0
    %4318 = vmatprep.subr.mxu0 0.0
    %4319 = vmatpush1.msra.mxu0 0.0
    %4320 = vmatprep.subr.mxu0 0.0
    %4321 = vmatpush1.msra.mxu0 0.0
    %4322 = vmatprep.subr.mxu0 0.0
    %4323 = vmatpush1.msra.mxu0 0.0
    %4324 = vmatprep.subr.mxu0 0.0
    %4325 = vmatpush1.msra.mxu0 0.0
    %4326 = vmatprep.subr.mxu0 0.0
    %4327 = vmatpush1.msra.mxu0 0.0
    %4328 = vmatprep.subr.mxu0 0.0
    %4329 = vmatpush1.msra.mxu0 0.0
    %4330 = vmatprep.subr.mxu0 0.0
    %4331 = vmatpush1.msra.mxu0 0.0
    %4332 = vmatprep.subr.mxu0 0.0
    %4333 = vmatpush1.msra.mxu0 0.0
    %4334 = vmatprep.subr.mxu0 0.0
    %4335 = vmatpush1.msra.mxu0 0.0
    %4336 = vmatprep.subr.mxu0 0.0
    %4337 = vmatpush1.msra.mxu0 0.0
    %4338 = vmatprep.subr.mxu0 0.0
    %4339 = vmatpush1.msra.mxu0 0.0
    %4340 = vmatprep.subr.mxu0 0.0
    %4341 = vmatpush1.msra.mxu0 0.0
    %4342 = vmatprep.subr.mxu0 0.0
    %4343 = vmatpush1.msra.mxu0 0.0
    %4344 = vmatprep.subr.mxu0 0.0
    %4345 = vmatpush1.msra.mxu0 0.0
    %4346 = vmatprep.mubr.f32.mxu0 0.0
    %4347 = vmatmul.mubr.f32.gmra.mrb[0].mxu0 %v4280
    %v4348 = vpop.f32.mrb[0].mxu0
    %v4349 = vadd.f32 0.0, %v4348
    %v4350 = vpop.f32.mrb[0].mxu0
    %4351 = vdwg.mxu0
    %s4352 = scalar_lea.vmem [#allocation4], 40
    %4353 = vst.msk [vmem:[%s4352] sm:$0xff] %vm281, %v4349
    %s4354 = scalar_lea.vmem [#allocation3], 6
    %v4355 = vld [vmem:[%s4354] ss:$8 sm:$0xf]
    %v4356 = vld [vmem:[%s4354] ss:$8 sm:$0xf0]
    %v4357 = vor.u32 %v4355, %v4356
    %s4358 = scalar_lea.vmem [#allocation3], 70
    %v4359 = vld [vmem:[%s4358] ss:$8 sm:$0xf]
    %v4360 = vld [vmem:[%s4358] ss:$8 sm:$0xf0]
    %v4361 = vor.u32 %v4359, %v4360
    %s4362 = scalar_lea.vmem %s1, 48
    %v4363 = vld [vmem:[%s4362] sm:$0xff]
    %v4365 = vsel %vm3854, %v4363, 0
    %4367 = vmatprep.subr.mxu0 0.0
    %4368 = vmatpush1.msra.mxu0 %v4357
    %4369 = vmatprep.subr.mxu0 0.0
    %4370 = vmatpush1.msra.mxu0 %v4361
    %4371 = vmatprep.subr.mxu0 0.0
    %4372 = vmatpush1.msra.mxu0 0.0
    %4373 = vmatprep.subr.mxu0 0.0
    %4374 = vmatpush1.msra.mxu0 0.0
    %4375 = vmatprep.subr.mxu0 0.0
    %4376 = vmatpush1.msra.mxu0 0.0
    %4377 = vmatprep.subr.mxu0 0.0
    %4378 = vmatpush1.msra.mxu0 0.0
    %4379 = vmatprep.subr.mxu0 0.0
    %4380 = vmatpush1.msra.mxu0 0.0
    %4381 = vmatprep.subr.mxu0 0.0
    %4382 = vmatpush1.msra.mxu0 0.0
    %4383 = vmatprep.subr.mxu0 0.0
    %4384 = vmatpush1.msra.mxu0 0.0
    %4385 = vmatprep.subr.mxu0 0.0
    %4386 = vmatpush1.msra.mxu0 0.0
    %4387 = vmatprep.subr.mxu0 0.0
    %4388 = vmatpush1.msra.mxu0 0.0
    %4389 = vmatprep.subr.mxu0 0.0
    %4390 = vmatpush1.msra.mxu0 0.0
    %4391 = vmatprep.subr.mxu0 0.0
    %4392 = vmatpush1.msra.mxu0 0.0
    %4393 = vmatprep.subr.mxu0 0.0
    %4394 = vmatpush1.msra.mxu0 0.0
    %4395 = vmatprep.subr.mxu0 0.0
    %4396 = vmatpush1.msra.mxu0 0.0
    %4397 = vmatprep.subr.mxu0 0.0
    %4398 = vmatpush1.msra.mxu0 0.0
    %4399 = vmatprep.subr.mxu0 0.0
    %4400 = vmatpush1.msra.mxu0 0.0
    %4401 = vmatprep.subr.mxu0 0.0
    %4402 = vmatpush1.msra.mxu0 0.0
    %4403 = vmatprep.subr.mxu0 0.0
    %4404 = vmatpush1.msra.mxu0 0.0
    %4405 = vmatprep.subr.mxu0 0.0
    %4406 = vmatpush1.msra.mxu0 0.0
    %4407 = vmatprep.subr.mxu0 0.0
    %4408 = vmatpush1.msra.mxu0 0.0
    %4409 = vmatprep.subr.mxu0 0.0
    %4410 = vmatpush1.msra.mxu0 0.0
    %4411 = vmatprep.subr.mxu0 0.0
    %4412 = vmatpush1.msra.mxu0 0.0
    %4413 = vmatprep.subr.mxu0 0.0
    %4414 = vmatpush1.msra.mxu0 0.0
    %4415 = vmatprep.subr.mxu0 0.0
    %4416 = vmatpush1.msra.mxu0 0.0
    %4417 = vmatprep.subr.mxu0 0.0
    %4418 = vmatpush1.msra.mxu0 0.0
    %4419 = vmatprep.subr.mxu0 0.0
    %4420 = vmatpush1.msra.mxu0 0.0
    %4421 = vmatprep.subr.mxu0 0.0
    %4422 = vmatpush1.msra.mxu0 0.0
    %4423 = vmatprep.subr.mxu0 0.0
    %4424 = vmatpush1.msra.mxu0 0.0
    %4425 = vmatprep.subr.mxu0 0.0
    %4426 = vmatpush1.msra.mxu0 0.0
    %4427 = vmatprep.subr.mxu0 0.0
    %4428 = vmatpush1.msra.mxu0 0.0
    %4429 = vmatprep.subr.mxu0 0.0
    %4430 = vmatpush1.msra.mxu0 0.0
    %4431 = vmatprep.mubr.f32.mxu0 0.0
    %4432 = vmatmul.mubr.f32.gmra.mrb[0].mxu0 %v4365
    %v4433 = vpop.f32.mrb[0].mxu0
    %v4434 = vadd.f32 0.0, %v4433
    %v4435 = vpop.f32.mrb[0].mxu0
    %4436 = vdwg.mxu0
    %s4437 = scalar_lea.vmem [#allocation4], 48
    %4438 = vst.msk [vmem:[%s4437] sm:$0xff] %vm281, %v4434
    %s4439 = scalar_lea.vmem [#allocation3], 7
    %v4440 = vld [vmem:[%s4439] ss:$8 sm:$0xf]
    %v4441 = vld [vmem:[%s4439] ss:$8 sm:$0xf0]
    %v4442 = vor.u32 %v4440, %v4441
    %s4443 = scalar_lea.vmem [#allocation3], 71
    %v4444 = vld [vmem:[%s4443] ss:$8 sm:$0xf]
    %v4445 = vld [vmem:[%s4443] ss:$8 sm:$0xf0]
    %v4446 = vor.u32 %v4444, %v4445
    %s4447 = scalar_lea.vmem %s1, 56
    %v4448 = vld [vmem:[%s4447] sm:$0xff]
    %v4450 = vsel %vm3854, %v4448, 0
    %4452 = vmatprep.subr.mxu0 0.0
    %4453 = vmatpush1.msra.mxu0 %v4442
    %4454 = vmatprep.subr.mxu0 0.0
    %4455 = vmatpush1.msra.mxu0 %v4446
    %4456 = vmatprep.subr.mxu0 0.0
    %4457 = vmatpush1.msra.mxu0 0.0
    %4458 = vmatprep.subr.mxu0 0.0
    %4459 = vmatpush1.msra.mxu0 0.0
    %4460 = vmatprep.subr.mxu0 0.0
    %4461 = vmatpush1.msra.mxu0 0.0
    %4462 = vmatprep.subr.mxu0 0.0
    %4463 = vmatpush1.msra.mxu0 0.0
    %4464 = vmatprep.subr.mxu0 0.0
    %4465 = vmatpush1.msra.mxu0 0.0
    %4466 = vmatprep.subr.mxu0 0.0
    %4467 = vmatpush1.msra.mxu0 0.0
    %4468 = vmatprep.subr.mxu0 0.0
    %4469 = vmatpush1.msra.mxu0 0.0
    %4470 = vmatprep.subr.mxu0 0.0
    %4471 = vmatpush1.msra.mxu0 0.0
    %4472 = vmatprep.subr.mxu0 0.0
    %4473 = vmatpush1.msra.mxu0 0.0
    %4474 = vmatprep.subr.mxu0 0.0
    %4475 = vmatpush1.msra.mxu0 0.0
    %4476 = vmatprep.subr.mxu0 0.0
    %4477 = vmatpush1.msra.mxu0 0.0
    %4478 = vmatprep.subr.mxu0 0.0
    %4479 = vmatpush1.msra.mxu0 0.0
    %4480 = vmatprep.subr.mxu0 0.0
    %4481 = vmatpush1.msra.mxu0 0.0
    %4482 = vmatprep.subr.mxu0 0.0
    %4483 = vmatpush1.msra.mxu0 0.0
    %4484 = vmatprep.subr.mxu0 0.0
    %4485 = vmatpush1.msra.mxu0 0.0
    %4486 = vmatprep.subr.mxu0 0.0
    %4487 = vmatpush1.msra.mxu0 0.0
    %4488 = vmatprep.subr.mxu0 0.0
    %4489 = vmatpush1.msra.mxu0 0.0
    %4490 = vmatprep.subr.mxu0 0.0
    %4491 = vmatpush1.msra.mxu0 0.0
    %4492 = vmatprep.subr.mxu0 0.0
    %4493 = vmatpush1.msra.mxu0 0.0
    %4494 = vmatprep.subr.mxu0 0.0
    %4495 = vmatpush1.msra.mxu0 0.0
    %4496 = vmatprep.subr.mxu0 0.0
    %4497 = vmatpush1.msra.mxu0 0.0
    %4498 = vmatprep.subr.mxu0 0.0
    %4499 = vmatpush1.msra.mxu0 0.0
    %4500 = vmatprep.subr.mxu0 0.0
    %4501 = vmatpush1.msra.mxu0 0.0
    %4502 = vmatprep.subr.mxu0 0.0
    %4503 = vmatpush1.msra.mxu0 0.0
    %4504 = vmatprep.subr.mxu0 0.0
    %4505 = vmatpush1.msra.mxu0 0.0
    %4506 = vmatprep.subr.mxu0 0.0
    %4507 = vmatpush1.msra.mxu0 0.0
    %4508 = vmatprep.subr.mxu0 0.0
    %4509 = vmatpush1.msra.mxu0 0.0
    %4510 = vmatprep.subr.mxu0 0.0
    %4511 = vmatpush1.msra.mxu0 0.0
    %4512 = vmatprep.subr.mxu0 0.0
    %4513 = vmatpush1.msra.mxu0 0.0
    %4514 = vmatprep.subr.mxu0 0.0
    %4515 = vmatpush1.msra.mxu0 0.0
    %4516 = vmatprep.mubr.f32.mxu0 0.0
    %4517 = vmatmul.mubr.f32.gmra.mrb[0].mxu0 %v4450
    %v4518 = vpop.f32.mrb[0].mxu0
    %v4519 = vadd.f32 0.0, %v4518
    %v4520 = vpop.f32.mrb[0].mxu0
    %4521 = vdwg.mxu0
    %s4522 = scalar_lea.vmem [#allocation4], 56
    %4523 = vst.msk [vmem:[%s4522] sm:$0xff] %vm281, %v4519
    // Predicated region
    $region30: #{tpu_custom_call.1} parent=1 // pred_check
      _
    $region31: #{tpu_custom_call.1} parent=1 // pred_check_branch
      %4525 = sbr.rel (0) target = $region33
    $region32: #{tpu_custom_call.1} parent=1 // pred_region
      %s4527 = ssub.s32 1024, 1024
      %4528 = vsyncadd [#allocation5], %s4527
      %s4529 = sshll.u32 [#allocation4], 4
      %s4530 = int_to_ptr.vmem [resolvable:$true] %s4529
      %4535 = dma.vmem_to_hbm [thread:$0]  %s4530, 1024, %s7, [#allocation5], 128, 128, 8
    $region33: #{tpu_custom_call.1} parent=1 // pred_fallthru
      _
    // Predicated region
    $region34: #{tpu_custom_call.1} parent=1 // pred_check
      _
    $region35: #{tpu_custom_call.1} parent=1 // pred_check_branch
      %4537 = sbr.rel (0) target = $region37
    $region36: #{tpu_custom_call.1} parent=1 // pred_region
      %4538 = dma.done [#allocation5], 1024
    $region37: #{tpu_custom_call.1} parent=1 // pred_fallthru
      _
    %4539 = vsyncpa [#allocation5], 1

</llo_original>
